<compile_context>
chip_gen: v7x
topology: tpu7x:2x2x1
jax: 0.10.0
libtpu: 0.0.40
codegen_flags: <defaults>
</compile_context>

<pallas_src>
import functools

import jax
import jax.numpy as jnp
from jax.experimental import pallas as pl
from jax.experimental.pallas import tpu as pltpu


# ----------------------------- Pallas kernel -------------------------------


def _agcrn_cell_kernel(feat_ref, sup_ref, wg_ref, bg_ref, wu_ref, bu_ref,
                       out_ref, *, n, b_blk, dim_in, hidden, k2, mm_dtype):
    """One batch-chunk of the fused AGCRN cell.

    feat_ref : (1, N, B*Din + B*H)   node-major [x blocks | state blocks]
    sup_ref  : (K2*N, N)             stacked Chebyshev supports
    wg_ref   : (K2*B*C, 2*B*H)       gate weight, batch-block-diagonal
    bg_ref   : (1, 2*B*H)            gate bias  [z cols | r cols] (f32)
    wu_ref   : (K2*B*C, B*H)         update weight, batch-block-diagonal
    bu_ref   : (1, B*H)              update bias (f32)
    out_ref  : (1, N, B*H)           new hidden state (f32)
    """
    bd = b_blk * dim_in
    bh = b_blk * hidden

    feat = feat_ref[0]                              # (N, B*Din + B*H)
    state = feat[:, bd:].astype(jnp.float32)        # (N, B*H)
    sup = sup_ref[...]                              # (K2*N, N)

    # ---- stage 1 (gate): every support x every batch in ONE MXU matmul.
    xg = jnp.dot(sup, feat, preferred_element_type=jnp.float32)  # (K2*N, B*C)

    # Relayout rows (k, n) -> lanes (k, ...): K2 static row slices + one lane
    # concat (load/store + XLU slots; MXU stays busy).
    gate_wide = jnp.concatenate(
        [xg[k * n:(k + 1) * n, :] for k in range(k2)], axis=-1)  # (N, K2*B*C)

    # ---- stage 2 (gate): single projection matmul, f32 accumulation.
    zr = jnp.dot(gate_wide.astype(mm_dtype), wg_ref[...],
                 preferred_element_type=jnp.float32) + bg_ref[...]
    zr = jax.nn.sigmoid(zr)                         # (N, 2*B*H) = [z | r]
    z = zr[:, :bh]
    r = zr[:, bh:]

    # ---- candidate pass: reuse S_k @ x from xg, only compute S_k @ (z*state).
    zs = (z * state).astype(mm_dtype)               # (N, B*H)
    xg2 = jnp.dot(sup, zs, preferred_element_type=jnp.float32)   # (K2*N, B*H)

    cand_parts = []
    for k in range(k2):
        cand_parts.append(xg[k * n:(k + 1) * n, :bd])   # S_k @ x      (all b)
        cand_parts.append(xg2[k * n:(k + 1) * n, :])    # S_k @ (z*s)  (all b)
    cand_wide = jnp.concatenate(cand_parts, axis=-1)    # (N, K2*B*C)

    hc = jnp.tanh(jnp.dot(cand_wide.astype(mm_dtype), wu_ref[...],
                          preferred_element_type=jnp.float32) + bu_ref[...])

    # ---- GRU update (float32 VPU math).
    out_ref[0] = (r * state + (1.0 - r) * hc).astype(out_ref.dtype)


# ------------------------------ forward pass --------------------------------


@functools.partial(
    jax.jit,
    static_argnames=("b_blk", "compute_dtype", "single_buffer_constants"))
def _agcrn_forward(x, state, sup_stack, wg, bg, wu, bu, *, b_blk,
                   compute_dtype, single_buffer_constants):
    b_sz, n, dim_in = x.shape
    hidden = state.shape[-1]
    k2 = sup_stack.shape[0]
    c = dim_in + hidden
    g = b_sz // b_blk

    # ---- node-major, batch-in-lanes activation slab (layout plumbing, free).
    xf = (x.reshape(g, b_blk, n, dim_in).transpose(0, 2, 1, 3)
          .reshape(g, n, b_blk * dim_in))
    sf = (state.reshape(g, b_blk, n, hidden).transpose(0, 2, 1, 3)
          .reshape(g, n, b_blk * hidden))
    feat = jnp.concatenate([xf, sf], axis=-1).astype(compute_dtype)

    sup2d = sup_stack.reshape(k2 * n, n).astype(compute_dtype)

    # ---- batch-block-diagonal projection weights.  Row ordering matches the
    # kernel lane layout: per support k -> [x rows (b-major) | s rows (b-major)].
    eye_b = jnp.eye(b_blk, dtype=jnp.float32)

    def block_diag(w):                       # (K2, Cin, O) -> (K2, B*Cin, B*O)
        cin, o = w.shape[1], w.shape[2]
        return jnp.einsum('kco,be->kbceo', w, eye_b).reshape(
            k2, b_blk * cin, b_blk * o)

    wg3 = wg.reshape(k2, c, 2 * hidden).astype(jnp.float32)
    wu3 = wu.reshape(k2, c, hidden).astype(jnp.float32)

    def gate_cols(w):                        # (K2, Cin, 2H) -> cols [z | r]
        return jnp.concatenate([block_diag(w[..., :hidden]),
                                block_diag(w[..., hidden:])], axis=-1)

    wg_bd = jnp.concatenate(
        [gate_cols(wg3[:, :dim_in, :]), gate_cols(wg3[:, dim_in:, :])],
        axis=1).reshape(k2 * b_blk * c,
                        2 * b_blk * hidden).astype(compute_dtype)
    wu_bd = jnp.concatenate(
        [block_diag(wu3[:, :dim_in, :]), block_diag(wu3[:, dim_in:, :])],
        axis=1).reshape(k2 * b_blk * c, b_blk * hidden).astype(compute_dtype)

    bg_w = jnp.concatenate([jnp.tile(bg[:hidden], b_blk),
                            jnp.tile(bg[hidden:], b_blk)]).reshape(
                                1, 2 * b_blk * hidden).astype(jnp.float32)
    bu_w = jnp.tile(bu, b_blk).reshape(1, b_blk * hidden).astype(jnp.float32)

    const_kw = {}
    if single_buffer_constants:
        # Constant-index operands never change across the grid -> one buffer.
        const_kw = dict(pipeline_mode=pl.Buffered(1))

    kernel = functools.partial(_agcrn_cell_kernel, n=n, b_blk=b_blk,
                               dim_in=dim_in, hidden=hidden, k2=k2,
                               mm_dtype=compute_dtype)

    out = pl.pallas_call(
        kernel,
        out_shape=jax.ShapeDtypeStruct((g, n, b_blk * hidden), jnp.float32),
        grid_spec=pltpu.PrefetchScalarGridSpec(
            num_scalar_prefetch=0,
            grid=(g,),
            in_specs=[
                pl.BlockSpec((1, n, b_blk * c), lambda i: (i, 0, 0)),
                pl.BlockSpec((k2 * n, n), lambda i: (0, 0), **const_kw),
                pl.BlockSpec((k2 * b_blk * c, 2 * b_blk * hidden),
                             lambda i: (0, 0), **const_kw),
                pl.BlockSpec((1, 2 * b_blk * hidden), lambda i: (0, 0)),
                pl.BlockSpec((k2 * b_blk * c, b_blk * hidden),
                             lambda i: (0, 0), **const_kw),
                pl.BlockSpec((1, b_blk * hidden), lambda i: (0, 0)),
            ],
            out_specs=pl.BlockSpec((1, n, b_blk * hidden),
                                   lambda i: (i, 0, 0)),
        ),
        compiler_params=pltpu.CompilerParams(
            dimension_semantics=("parallel",),
            vmem_limit_bytes=64 * 1024 * 1024),
    )(feat, sup2d, wg_bd, bg_w, wu_bd, bu_w)

    # (G, N, B_BLK*H) node-major -> (B, N, H)
    return (out.reshape(g, n, b_blk, hidden).transpose(0, 2, 1, 3)
            .reshape(b_sz, n, hidden))


def agcrn_cell_pallas(x, state, sup_stack, wg, bg, wu, bu, *, b_blk=None,
                      compute_dtype=jnp.bfloat16):
    """x:(B,N,Din) state:(B,N,H) sup_stack:(K2,N,N) wg:(K2*C,2H) wu:(K2*C,H)."""
    b_sz = x.shape[0]
    hidden = state.shape[-1]

    if b_blk is None:
        divisors = [d for d in range(1, b_sz + 1) if b_sz % d == 0]
        max_par = max(b_sz // 2, 1)       # keep >= 2 grid chunks when possible
        dense = [d for d in divisors if d <= max_par and d * hidden >= 128]
        if dense:
            b_blk = dense[0]              # lane-dense, minimal FLOP inflation
        else:
            b_blk = max(d for d in divisors if d <= max_par)
    assert b_sz % b_blk == 0, (b_sz, b_blk)

    common = dict(b_blk=b_blk, compute_dtype=compute_dtype)
    try:
        out = _agcrn_forward(x, state, sup_stack, wg, bg, wu, bu,
                             single_buffer_constants=True, **common)
        return jax.block_until_ready(out)
    except Exception:
        # pl.Buffered(1) unsupported by this jax version/backend: fall back to
        # the default double-buffered pipeline for the constant operands.
        return _agcrn_forward(x, state, sup_stack, wg, bg, wu, bu,
                              single_buffer_constants=False, **common)


# -------------------------- pure-JAX reference ------------------------------


def _agcn_ref(feat, sup_stack, w, b):
    # feat: (B, N, C), sup_stack: (K2, N, N)
    xg = jnp.einsum('knm,bmc->bknc', sup_stack, feat)
    B, K2, N, C = xg.shape
    xg = jnp.transpose(xg, (0, 2, 1, 3)).reshape(B, N, K2 * C)
    return jnp.einsum('bni,io->bno', xg, w) + b


def agcrn_cell_ref(x, state, sup_stack, wg, bg, wu, bu, hidden):
    xs = jnp.concatenate([x, state], axis=-1)
    zr = jax.nn.sigmoid(_agcn_ref(xs, sup_stack, wg, bg))
    z, r = zr[..., :hidden], zr[..., hidden:]
    cand = jnp.concatenate([x, z * state], axis=-1)
    hc = jnp.tanh(_agcn_ref(cand, sup_stack, wu, bu))
    return r * state + (1.0 - r) * hc


# ------------------------------- helpers ------------------------------------


def build_support_set(supports, cheb_k):
    """Matches AGCN.forward: for each support, [I, A, 2A T_{k-1} - T_{k-2}]."""
    sup_list = []
    for a in supports:
        n = a.shape[0]
        ks = [jnp.eye(n, dtype=a.dtype), a]
        for _ in range(2, cheb_k):
            ks.append(2.0 * a @ ks[-1] - ks[-2])
        sup_list.extend(ks)
    return jnp.stack(sup_list, axis=0)  # (2*cheb_k, N, N)


def xavier_normal(key, fan_in, fan_out):
    std = (2.0 / (fan_in + fan_out)) ** 0.5
    return std * jax.random.normal(key, (fan_in, fan_out), jnp.float32)


# --------------------------------- main --------------------------------------


if __name__ == "__main__":
    # small, module-consistent shapes; B=4 -> 2 batches folded per grid step,
    # grid=(2,) so both TensorCores of a megacore chip get a "parallel" chunk.
    B, N, DIM_IN, HIDDEN, CHEB_K = 4, 16, 4, 32, 3
    K2 = 2 * CHEB_K
    C = DIM_IN + HIDDEN

    key = jax.random.PRNGKey(0)
    kx, ks, ka1, ka2, kwg, kwu, kbg, kbu = jax.random.split(key, 8)

    x = jax.random.normal(kx, (B, N, DIM_IN), jnp.float32)
    state = jax.random.normal(ks, (B, N, HIDDEN), jnp.float32)

    # two row-normalized random adjacency supports
    a1 = jax.nn.softmax(jax.random.normal(ka1, (N, N), jnp.float32), axis=-1)
    a2 = jax.nn.softmax(jax.random.normal(ka2, (N, N), jnp.float32), axis=-1)
    sup_stack = build_support_set([a1, a2], CHEB_K)   # (K2, N, N)

    # deterministic parameters (non-zero biases so the bias path is exercised)
    wg = xavier_normal(kwg, K2 * C, 2 * HIDDEN)
    bg = 0.1 * jax.random.normal(kbg, (2 * HIDDEN,), jnp.float32)
    wu = xavier_normal(kwu, K2 * C, HIDDEN)
    bu = 0.1 * jax.random.normal(kbu, (HIDDEN,), jnp.float32)

    h_ref = agcrn_cell_ref(x, state, sup_stack, wg, bg, wu, bu, HIDDEN)

    # exact-semantics check: float32 MXU operands
    h32 = agcrn_cell_pallas(x, state, sup_stack, wg, bg, wu, bu,
                            compute_dtype=jnp.float32)
    h32 = jax.block_until_ready(h32)
    assert h32.shape == (B, N, HIDDEN)
    assert jnp.allclose(h32, h_ref, rtol=1e-4, atol=1e-4), (
        float(jnp.max(jnp.abs(h32 - h_ref))))

    # default fast path: bf16 MXU operands, f32 accumulation + f32 gating
    h = agcrn_cell_pallas(x, state, sup_stack, wg, bg, wu, bu)
    h = jax.block_until_ready(h)
    assert h.shape == (B, N, HIDDEN)
    assert jnp.allclose(h, h_ref, rtol=5e-2, atol=5e-2), (
        float(jnp.max(jnp.abs(h - h_ref))))

    print("KERNEL_OK")
</pallas_src>

<mosaic_0001>
module attributes {stable_mosaic.version = 11 : i64} {
  func.func @_agcrn_cell_kernel(%arg0: i32, %arg1: memref<1x16x72xf32, #tpu.memory_space<vmem>>, %arg2: memref<96x16xf32, #tpu.memory_space<vmem>>, %arg3: memref<432x128xf32, #tpu.memory_space<vmem>>, %arg4: memref<1x128xf32, #tpu.memory_space<vmem>>, %arg5: memref<432x64xf32, #tpu.memory_space<vmem>>, %arg6: memref<1x64xf32, #tpu.memory_space<vmem>>, %arg7: memref<1x16x64xf32, #tpu.memory_space<vmem>>) attributes {dimension_semantics = [#tpu.dimension_semantics<parallel>], iteration_bounds = array<i64: 2>, scalar_prefetch = 0 : i64, scratch_operands = 0 : i64, tpu.core_type = #tpu.core_type<tc>, window_params = [{transform_indices = @transform_0, window_bounds = array<i64: 1, 16, 72>}, {pipeline_mode = #tpu.pipeline_mode<synchronous>, transform_indices = @transform_1, window_bounds = array<i64: 96, 16>}, {pipeline_mode = #tpu.pipeline_mode<synchronous>, transform_indices = @transform_2, window_bounds = array<i64: 432, 128>}, {pipeline_mode = #tpu.pipeline_mode<synchronous>, transform_indices = @transform_3, window_bounds = array<i64: 1, 128>}, {pipeline_mode = #tpu.pipeline_mode<synchronous>, transform_indices = @transform_4, window_bounds = array<i64: 432, 64>}, {pipeline_mode = #tpu.pipeline_mode<synchronous>, transform_indices = @transform_5, window_bounds = array<i64: 1, 64>}, {transform_indices = @transform_6, window_bounds = array<i64: 1, 16, 64>}]} {
    %c0 = arith.constant 0 : index
    %c0_0 = arith.constant 0 : index
    %c0_1 = arith.constant 0 : index
    %0 = vector.load %arg1[%c0, %c0_0, %c0_1] : memref<1x16x72xf32, #tpu.memory_space<vmem>>, vector<1x16x72xf32>
    %1 = vector.shape_cast %0 : vector<1x16x72xf32> to vector<16x72xf32>
    %2 = vector.extract_strided_slice %1 {offsets = [0, 8], sizes = [16, 64], strides = [1, 1]} : vector<16x72xf32> to vector<16x64xf32>
    %c0_2 = arith.constant 0 : index
    %c0_3 = arith.constant 0 : index
    %3 = vector.load %arg2[%c0_2, %c0_3] : memref<96x16xf32, #tpu.memory_space<vmem>>, vector<96x16xf32>
    %cst = arith.constant dense<0.000000e+00> : vector<96x72xf32>
    %4 = tpu.matmul %3, %1, %cst {dimension_numbers = #tpu.dot_dimension_numbers<[1], [0], [0], [1], [0, 0, 1, 1], [], []>} : vector<96x16xf32>, vector<16x72xf32>, vector<96x72xf32> -> vector<96x72xf32>
    %5 = vector.extract_strided_slice %4 {offsets = [0, 0], sizes = [16, 72], strides = [1, 1]} : vector<96x72xf32> to vector<16x72xf32>
    %6 = vector.extract_strided_slice %4 {offsets = [16, 0], sizes = [16, 72], strides = [1, 1]} : vector<96x72xf32> to vector<16x72xf32>
    %7 = vector.extract_strided_slice %4 {offsets = [32, 0], sizes = [16, 72], strides = [1, 1]} : vector<96x72xf32> to vector<16x72xf32>
    %8 = vector.extract_strided_slice %4 {offsets = [48, 0], sizes = [16, 72], strides = [1, 1]} : vector<96x72xf32> to vector<16x72xf32>
    %9 = vector.extract_strided_slice %4 {offsets = [64, 0], sizes = [16, 72], strides = [1, 1]} : vector<96x72xf32> to vector<16x72xf32>
    %10 = vector.extract_strided_slice %4 {offsets = [80, 0], sizes = [16, 72], strides = [1, 1]} : vector<96x72xf32> to vector<16x72xf32>
    %11 = tpu.concatenate %5, %6, %7, %8, %9, %10 in 1 : vector<16x72xf32>, vector<16x72xf32>, vector<16x72xf32>, vector<16x72xf32>, vector<16x72xf32>, vector<16x72xf32> -> vector<16x432xf32>
    %c0_4 = arith.constant 0 : index
    %c0_5 = arith.constant 0 : index
    %12 = vector.load %arg3[%c0_4, %c0_5] : memref<432x128xf32, #tpu.memory_space<vmem>>, vector<432x128xf32>
    %cst_6 = arith.constant dense<0.000000e+00> : vector<16x128xf32>
    %13 = tpu.matmul %11, %12, %cst_6 {dimension_numbers = #tpu.dot_dimension_numbers<[1], [0], [0], [1], [0, 0, 1, 1], [], []>} : vector<16x432xf32>, vector<432x128xf32>, vector<16x128xf32> -> vector<16x128xf32>
    %c0_7 = arith.constant 0 : index
    %c0_8 = arith.constant 0 : index
    %14 = vector.load %arg4[%c0_7, %c0_8] : memref<1x128xf32, #tpu.memory_space<vmem>>, vector<1x128xf32>
    %15 = vector.broadcast %14 : vector<1x128xf32> to vector<16x128xf32>
    %16 = arith.addf %13, %15 : vector<16x128xf32>
    %17 = arith.negf %16 : vector<16x128xf32>
    %18 = math.exp %17 : vector<16x128xf32>
    %cst_9 = arith.constant 1.000000e+00 : f32
    %19 = vector.broadcast %cst_9 : f32 to vector<16x128xf32>
    %20 = arith.addf %19, %18 : vector<16x128xf32>
    %21 = arith.divf %19, %20 : vector<16x128xf32>
    %22 = vector.extract_strided_slice %21 {offsets = [0, 0], sizes = [16, 64], strides = [1, 1]} : vector<16x128xf32> to vector<16x64xf32>
    %23 = vector.extract_strided_slice %21 {offsets = [0, 64], sizes = [16, 64], strides = [1, 1]} : vector<16x128xf32> to vector<16x64xf32>
    %24 = arith.mulf %22, %2 : vector<16x64xf32>
    %cst_10 = arith.constant dense<0.000000e+00> : vector<96x64xf32>
    %25 = tpu.matmul %3, %24, %cst_10 {dimension_numbers = #tpu.dot_dimension_numbers<[1], [0], [0], [1], [0, 0, 1, 1], [], []>} : vector<96x16xf32>, vector<16x64xf32>, vector<96x64xf32> -> vector<96x64xf32>
    %26 = vector.extract_strided_slice %4 {offsets = [0, 0], sizes = [16, 8], strides = [1, 1]} : vector<96x72xf32> to vector<16x8xf32>
    %27 = vector.extract_strided_slice %25 {offsets = [0, 0], sizes = [16, 64], strides = [1, 1]} : vector<96x64xf32> to vector<16x64xf32>
    %28 = vector.extract_strided_slice %4 {offsets = [16, 0], sizes = [16, 8], strides = [1, 1]} : vector<96x72xf32> to vector<16x8xf32>
    %29 = vector.extract_strided_slice %25 {offsets = [16, 0], sizes = [16, 64], strides = [1, 1]} : vector<96x64xf32> to vector<16x64xf32>
    %30 = vector.extract_strided_slice %4 {offsets = [32, 0], sizes = [16, 8], strides = [1, 1]} : vector<96x72xf32> to vector<16x8xf32>
    %31 = vector.extract_strided_slice %25 {offsets = [32, 0], sizes = [16, 64], strides = [1, 1]} : vector<96x64xf32> to vector<16x64xf32>
    %32 = vector.extract_strided_slice %4 {offsets = [48, 0], sizes = [16, 8], strides = [1, 1]} : vector<96x72xf32> to vector<16x8xf32>
    %33 = vector.extract_strided_slice %25 {offsets = [48, 0], sizes = [16, 64], strides = [1, 1]} : vector<96x64xf32> to vector<16x64xf32>
    %34 = vector.extract_strided_slice %4 {offsets = [64, 0], sizes = [16, 8], strides = [1, 1]} : vector<96x72xf32> to vector<16x8xf32>
    %35 = vector.extract_strided_slice %25 {offsets = [64, 0], sizes = [16, 64], strides = [1, 1]} : vector<96x64xf32> to vector<16x64xf32>
    %36 = vector.extract_strided_slice %4 {offsets = [80, 0], sizes = [16, 8], strides = [1, 1]} : vector<96x72xf32> to vector<16x8xf32>
    %37 = vector.extract_strided_slice %25 {offsets = [80, 0], sizes = [16, 64], strides = [1, 1]} : vector<96x64xf32> to vector<16x64xf32>
    %38 = tpu.concatenate %26, %27, %28, %29, %30, %31, %32, %33, %34, %35, %36, %37 in 1 : vector<16x8xf32>, vector<16x64xf32>, vector<16x8xf32>, vector<16x64xf32>, vector<16x8xf32>, vector<16x64xf32>, vector<16x8xf32>, vector<16x64xf32>, vector<16x8xf32>, vector<16x64xf32>, vector<16x8xf32>, vector<16x64xf32> -> vector<16x432xf32>
    %c0_11 = arith.constant 0 : index
    %c0_12 = arith.constant 0 : index
    %39 = vector.load %arg5[%c0_11, %c0_12] : memref<432x64xf32, #tpu.memory_space<vmem>>, vector<432x64xf32>
    %cst_13 = arith.constant dense<0.000000e+00> : vector<16x64xf32>
    %40 = tpu.matmul %38, %39, %cst_13 {dimension_numbers = #tpu.dot_dimension_numbers<[1], [0], [0], [1], [0, 0, 1, 1], [], []>} : vector<16x432xf32>, vector<432x64xf32>, vector<16x64xf32> -> vector<16x64xf32>
    %c0_14 = arith.constant 0 : index
    %c0_15 = arith.constant 0 : index
    %41 = vector.load %arg6[%c0_14, %c0_15] : memref<1x64xf32, #tpu.memory_space<vmem>>, vector<1x64xf32>
    %42 = vector.broadcast %41 : vector<1x64xf32> to vector<16x64xf32>
    %43 = arith.addf %40, %42 : vector<16x64xf32>
    %44 = math.tanh %43 : vector<16x64xf32>
    %45 = arith.mulf %23, %2 : vector<16x64xf32>
    %cst_16 = arith.constant 1.000000e+00 : f32
    %46 = vector.broadcast %cst_16 : f32 to vector<16x64xf32>
    %47 = arith.subf %46, %23 : vector<16x64xf32>
    %48 = arith.mulf %47, %44 : vector<16x64xf32>
    %49 = arith.addf %45, %48 : vector<16x64xf32>
    %c0_17 = arith.constant 0 : index
    %c0_18 = arith.constant 0 : index
    %c0_19 = arith.constant 0 : index
    %50 = vector.load %arg7[%c0_17, %c0_18, %c0_19] : memref<1x16x64xf32, #tpu.memory_space<vmem>>, vector<1x16x64xf32>
    %51 = vector.shape_cast %50 : vector<1x16x64xf32> to vector<16x64xf32>
    %52 = vector.shape_cast %49 : vector<16x64xf32> to vector<1x16x64xf32>
    tpu.vector_store %arg7[%c0_17, %c0_18, %c0_19], %52 {strides = array<i32>} : memref<1x16x64xf32, #tpu.memory_space<vmem>>, vector<1x16x64xf32>,
    return
  }
  func.func @transform_0(%arg0: i32) -> (i32, i32, i32) {
    %c0_i32 = arith.constant 0 : i32
    %c0_i32_0 = arith.constant 0 : i32
    %c0_i32_1 = arith.constant 0 : i32
    return %arg0, %c0_i32, %c0_i32_0 : i32, i32, i32
  }
  func.func @transform_1(%arg0: i32) -> (i32, i32) {
    %c0_i32 = arith.constant 0 : i32
    %c0_i32_0 = arith.constant 0 : i32
    %c0_i32_1 = arith.constant 0 : i32
    return %c0_i32, %c0_i32_0 : i32, i32
  }
  func.func @transform_2(%arg0: i32) -> (i32, i32) {
    %c0_i32 = arith.constant 0 : i32
    %c0_i32_0 = arith.constant 0 : i32
    %c0_i32_1 = arith.constant 0 : i32
    return %c0_i32, %c0_i32_0 : i32, i32
  }
  func.func @transform_3(%arg0: i32) -> (i32, i32) {
    %c0_i32 = arith.constant 0 : i32
    %c0_i32_0 = arith.constant 0 : i32
    %c0_i32_1 = arith.constant 0 : i32
    return %c0_i32, %c0_i32_0 : i32, i32
  }
  func.func @transform_4(%arg0: i32) -> (i32, i32) {
    %c0_i32 = arith.constant 0 : i32
    %c0_i32_0 = arith.constant 0 : i32
    %c0_i32_1 = arith.constant 0 : i32
    return %c0_i32, %c0_i32_0 : i32, i32
  }
  func.func @transform_5(%arg0: i32) -> (i32, i32) {
    %c0_i32 = arith.constant 0 : i32
    %c0_i32_0 = arith.constant 0 : i32
    %c0_i32_1 = arith.constant 0 : i32
    return %c0_i32, %c0_i32_0 : i32, i32
  }
  func.func @transform_6(%arg0: i32) -> (i32, i32, i32) {
    %c0_i32 = arith.constant 0 : i32
    %c0_i32_0 = arith.constant 0 : i32
    %c0_i32_1 = arith.constant 0 : i32
    return %arg0, %c0_i32, %c0_i32_0 : i32, i32, i32
  }
}

module attributes {stable_mosaic.version = 11 : i64} {
  func.func @_agcrn_cell_kernel(%arg0: i32, %arg1: memref<1x16x72xf32, #tpu.memory_space<vmem>>, %arg2: memref<96x16xf32, #tpu.memory_space<vmem>>, %arg3: memref<432x128xf32, #tpu.memory_space<vmem>>, %arg4: memref<1x128xf32, #tpu.memory_space<vmem>>, %arg5: memref<432x64xf32, #tpu.memory_space<vmem>>, %arg6: memref<1x64xf32, #tpu.memory_space<vmem>>, %arg7: memref<1x16x64xf32, #tpu.memory_space<vmem>>) attributes {dimension_semantics = [#tpu.dimension_semantics<parallel>], iteration_bounds = array<i64: 2>, scalar_prefetch = 0 : i64, scratch_operands = 0 : i64, tpu.core_type = #tpu.core_type<tc>, window_params = [{transform_indices = @transform_0, window_bounds = array<i64: 1, 16, 72>}, {pipeline_mode = #tpu.pipeline_mode<synchronous>, transform_indices = @transform_1, window_bounds = array<i64: 96, 16>}, {pipeline_mode = #tpu.pipeline_mode<synchronous>, transform_indices = @transform_2, window_bounds = array<i64: 432, 128>}, {pipeline_mode = #tpu.pipeline_mode<synchronous>, transform_indices = @transform_3, window_bounds = array<i64: 1, 128>}, {pipeline_mode = #tpu.pipeline_mode<synchronous>, transform_indices = @transform_4, window_bounds = array<i64: 432, 64>}, {pipeline_mode = #tpu.pipeline_mode<synchronous>, transform_indices = @transform_5, window_bounds = array<i64: 1, 64>}, {transform_indices = @transform_6, window_bounds = array<i64: 1, 16, 64>}]} {
    %c0 = arith.constant 0 : index
    %c0_0 = arith.constant 0 : index
    %c0_1 = arith.constant 0 : index
    %0 = vector.load %arg1[%c0, %c0_0, %c0_1] : memref<1x16x72xf32, #tpu.memory_space<vmem>>, vector<1x16x72xf32>
    %1 = vector.shape_cast %0 : vector<1x16x72xf32> to vector<16x72xf32>
    %2 = vector.extract_strided_slice %1 {offsets = [0, 8], sizes = [16, 64], strides = [1, 1]} : vector<16x72xf32> to vector<16x64xf32>
    %c0_2 = arith.constant 0 : index
    %c0_3 = arith.constant 0 : index
    %3 = vector.load %arg2[%c0_2, %c0_3] : memref<96x16xf32, #tpu.memory_space<vmem>>, vector<96x16xf32>
    %cst = arith.constant dense<0.000000e+00> : vector<96x72xf32>
    %4 = tpu.matmul %3, %1, %cst {dimension_numbers = #tpu.dot_dimension_numbers<[1], [0], [0], [1], [0, 0, 1, 1], [], []>} : vector<96x16xf32>, vector<16x72xf32>, vector<96x72xf32> -> vector<96x72xf32>
    %5 = vector.extract_strided_slice %4 {offsets = [0, 0], sizes = [16, 72], strides = [1, 1]} : vector<96x72xf32> to vector<16x72xf32>
    %6 = vector.extract_strided_slice %4 {offsets = [16, 0], sizes = [16, 72], strides = [1, 1]} : vector<96x72xf32> to vector<16x72xf32>
    %7 = vector.extract_strided_slice %4 {offsets = [32, 0], sizes = [16, 72], strides = [1, 1]} : vector<96x72xf32> to vector<16x72xf32>
    %8 = vector.extract_strided_slice %4 {offsets = [48, 0], sizes = [16, 72], strides = [1, 1]} : vector<96x72xf32> to vector<16x72xf32>
    %9 = vector.extract_strided_slice %4 {offsets = [64, 0], sizes = [16, 72], strides = [1, 1]} : vector<96x72xf32> to vector<16x72xf32>
    %10 = vector.extract_strided_slice %4 {offsets = [80, 0], sizes = [16, 72], strides = [1, 1]} : vector<96x72xf32> to vector<16x72xf32>
    %11 = tpu.concatenate %5, %6, %7, %8, %9, %10 in 1 : vector<16x72xf32>, vector<16x72xf32>, vector<16x72xf32>, vector<16x72xf32>, vector<16x72xf32>, vector<16x72xf32> -> vector<16x432xf32>
    %c0_4 = arith.constant 0 : index
    %c0_5 = arith.constant 0 : index
    %12 = vector.load %arg3[%c0_4, %c0_5] : memref<432x128xf32, #tpu.memory_space<vmem>>, vector<432x128xf32>
    %cst_6 = arith.constant dense<0.000000e+00> : vector<16x128xf32>
    %13 = tpu.matmul %11, %12, %cst_6 {dimension_numbers = #tpu.dot_dimension_numbers<[1], [0], [0], [1], [0, 0, 1, 1], [], []>} : vector<16x432xf32>, vector<432x128xf32>, vector<16x128xf32> -> vector<16x128xf32>
    %c0_7 = arith.constant 0 : index
    %c0_8 = arith.constant 0 : index
    %14 = vector.load %arg4[%c0_7, %c0_8] : memref<1x128xf32, #tpu.memory_space<vmem>>, vector<1x128xf32>
    %15 = vector.broadcast %14 : vector<1x128xf32> to vector<16x128xf32>
    %16 = arith.addf %13, %15 : vector<16x128xf32>
    %17 = arith.negf %16 : vector<16x128xf32>
    %18 = math.exp %17 : vector<16x128xf32>
    %cst_9 = arith.constant 1.000000e+00 : f32
    %19 = vector.broadcast %cst_9 : f32 to vector<16x128xf32>
    %20 = arith.addf %19, %18 : vector<16x128xf32>
    %21 = arith.divf %19, %20 : vector<16x128xf32>
    %22 = vector.extract_strided_slice %21 {offsets = [0, 0], sizes = [16, 64], strides = [1, 1]} : vector<16x128xf32> to vector<16x64xf32>
    %23 = vector.extract_strided_slice %21 {offsets = [0, 64], sizes = [16, 64], strides = [1, 1]} : vector<16x128xf32> to vector<16x64xf32>
    %24 = arith.mulf %22, %2 : vector<16x64xf32>
    %cst_10 = arith.constant dense<0.000000e+00> : vector<96x64xf32>
    %25 = tpu.matmul %3, %24, %cst_10 {dimension_numbers = #tpu.dot_dimension_numbers<[1], [0], [0], [1], [0, 0, 1, 1], [], []>} : vector<96x16xf32>, vector<16x64xf32>, vector<96x64xf32> -> vector<96x64xf32>
    %26 = vector.extract_strided_slice %4 {offsets = [0, 0], sizes = [16, 8], strides = [1, 1]} : vector<96x72xf32> to vector<16x8xf32>
    %27 = vector.extract_strided_slice %25 {offsets = [0, 0], sizes = [16, 64], strides = [1, 1]} : vector<96x64xf32> to vector<16x64xf32>
    %28 = vector.extract_strided_slice %4 {offsets = [16, 0], sizes = [16, 8], strides = [1, 1]} : vector<96x72xf32> to vector<16x8xf32>
    %29 = vector.extract_strided_slice %25 {offsets = [16, 0], sizes = [16, 64], strides = [1, 1]} : vector<96x64xf32> to vector<16x64xf32>
    %30 = vector.extract_strided_slice %4 {offsets = [32, 0], sizes = [16, 8], strides = [1, 1]} : vector<96x72xf32> to vector<16x8xf32>
    %31 = vector.extract_strided_slice %25 {offsets = [32, 0], sizes = [16, 64], strides = [1, 1]} : vector<96x64xf32> to vector<16x64xf32>
    %32 = vector.extract_strided_slice %4 {offsets = [48, 0], sizes = [16, 8], strides = [1, 1]} : vector<96x72xf32> to vector<16x8xf32>
    %33 = vector.extract_strided_slice %25 {offsets = [48, 0], sizes = [16, 64], strides = [1, 1]} : vector<96x64xf32> to vector<16x64xf32>
    %34 = vector.extract_strided_slice %4 {offsets = [64, 0], sizes = [16, 8], strides = [1, 1]} : vector<96x72xf32> to vector<16x8xf32>
    %35 = vector.extract_strided_slice %25 {offsets = [64, 0], sizes = [16, 64], strides = [1, 1]} : vector<96x64xf32> to vector<16x64xf32>
    %36 = vector.extract_strided_slice %4 {offsets = [80, 0], sizes = [16, 8], strides = [1, 1]} : vector<96x72xf32> to vector<16x8xf32>
    %37 = vector.extract_strided_slice %25 {offsets = [80, 0], sizes = [16, 64], strides = [1, 1]} : vector<96x64xf32> to vector<16x64xf32>
    %38 = tpu.concatenate %26, %27, %28, %29, %30, %31, %32, %33, %34, %35, %36, %37 in 1 : vector<16x8xf32>, vector<16x64xf32>, vector<16x8xf32>, vector<16x64xf32>, vector<16x8xf32>, vector<16x64xf32>, vector<16x8xf32>, vector<16x64xf32>, vector<16x8xf32>, vector<16x64xf32>, vector<16x8xf32>, vector<16x64xf32> -> vector<16x432xf32>
    %c0_11 = arith.constant 0 : index
    %c0_12 = arith.constant 0 : index
    %39 = vector.load %arg5[%c0_11, %c0_12] : memref<432x64xf32, #tpu.memory_space<vmem>>, vector<432x64xf32>
    %cst_13 = arith.constant dense<0.000000e+00> : vector<16x64xf32>
    %40 = tpu.matmul %38, %39, %cst_13 {dimension_numbers = #tpu.dot_dimension_numbers<[1], [0], [0], [1], [0, 0, 1, 1], [], []>} : vector<16x432xf32>, vector<432x64xf32>, vector<16x64xf32> -> vector<16x64xf32>
    %c0_14 = arith.constant 0 : index
    %c0_15 = arith.constant 0 : index
    %41 = vector.load %arg6[%c0_14, %c0_15] : memref<1x64xf32, #tpu.memory_space<vmem>>, vector<1x64xf32>
    %42 = vector.broadcast %41 : vector<1x64xf32> to vector<16x64xf32>
    %43 = arith.addf %40, %42 : vector<16x64xf32>
    %44 = math.tanh %43 : vector<16x64xf32>
    %45 = arith.mulf %23, %2 : vector<16x64xf32>
    %cst_16 = arith.constant 1.000000e+00 : f32
    %46 = vector.broadcast %cst_16 : f32 to vector<16x64xf32>
    %47 = arith.subf %46, %23 : vector<16x64xf32>
    %48 = arith.mulf %47, %44 : vector<16x64xf32>
    %49 = arith.addf %45, %48 : vector<16x64xf32>
    %c0_17 = arith.constant 0 : index
    %c0_18 = arith.constant 0 : index
    %c0_19 = arith.constant 0 : index
    %50 = vector.load %arg7[%c0_17, %c0_18, %c0_19] : memref<1x16x64xf32, #tpu.memory_space<vmem>>, vector<1x16x64xf32>
    %51 = vector.shape_cast %50 : vector<1x16x64xf32> to vector<16x64xf32>
    %52 = vector.shape_cast %49 : vector<16x64xf32> to vector<1x16x64xf32>
    tpu.vector_store %arg7[%c0_17, %c0_18, %c0_19], %52 {strides = array<i32>} : memref<1x16x64xf32, #tpu.memory_space<vmem>>, vector<1x16x64xf32>,
    return
  }
  func.func @transform_0(%arg0: i32) -> (i32, i32, i32) {
    %c0_i32 = arith.constant 0 : i32
    %c0_i32_0 = arith.constant 0 : i32
    %c0_i32_1 = arith.constant 0 : i32
    return %arg0, %c0_i32, %c0_i32_0 : i32, i32, i32
  }
  func.func @transform_1(%arg0: i32) -> (i32, i32) {
    %c0_i32 = arith.constant 0 : i32
    %c0_i32_0 = arith.constant 0 : i32
    %c0_i32_1 = arith.constant 0 : i32
    return %c0_i32, %c0_i32_0 : i32, i32
  }
  func.func @transform_2(%arg0: i32) -> (i32, i32) {
    %c0_i32 = arith.constant 0 : i32
    %c0_i32_0 = arith.constant 0 : i32
    %c0_i32_1 = arith.constant 0 : i32
    return %c0_i32, %c0_i32_0 : i32, i32
  }
  func.func @transform_3(%arg0: i32) -> (i32, i32) {
    %c0_i32 = arith.constant 0 : i32
    %c0_i32_0 = arith.constant 0 : i32
    %c0_i32_1 = arith.constant 0 : i32
    return %c0_i32, %c0_i32_0 : i32, i32
  }
  func.func @transform_4(%arg0: i32) -> (i32, i32) {
    %c0_i32 = arith.constant 0 : i32
    %c0_i32_0 = arith.constant 0 : i32
    %c0_i32_1 = arith.constant 0 : i32
    return %c0_i32, %c0_i32_0 : i32, i32
  }
  func.func @transform_5(%arg0: i32) -> (i32, i32) {
    %c0_i32 = arith.constant 0 : i32
    %c0_i32_0 = arith.constant 0 : i32
    %c0_i32_1 = arith.constant 0 : i32
    return %c0_i32, %c0_i32_0 : i32, i32
  }
  func.func @transform_6(%arg0: i32) -> (i32, i32, i32) {
    %c0_i32 = arith.constant 0 : i32
    %c0_i32_0 = arith.constant 0 : i32
    %c0_i32_1 = arith.constant 0 : i32
    return %arg0, %c0_i32, %c0_i32_0 : i32, i32, i32
  }
}

</mosaic_0001>

<llo_original>
// kernel: tile.29
$region0: #{tile.29}
  %s0 = inlined_call_operand.vmem [shape: f32[2,32], index: 0, kind: input, shape index: {}]
  %s1 = inlined_call_operand.hbm [shape: f32[1,64], index: 1, kind: output, shape index: {}]
  $region1: #{tile.29} parent=0
    #allocation0 [shape = 'u8[512]{0}', space=vmem, size = 0x400, scoped, tag = 'operand span for operand 1']
    #allocation1 [shape = 's32[1]{0}', space=sflag, size = 0x4, scoped, tag = 'scoped memory for tile.29']
    #allocation2 [shape = 'u8[4096]{0}', space=vmem, size = 0x1000, scoped, tag = 'scoped mem for output reshape']
    #allocation3 [shape = 'u8[4096]{0}', space=vmem, size = 0x1000, scoped, tag = 'scoped mem for input reshape']
    %2 = vsyncpa [#allocation1], 0
    %s4 = sshllo.u32 0, 2
    %v5 = vld [vmem:[%s0] sm:%s4]
    %6 = vst [vmem:[#allocation3] sm:%s4] %v5
    %v7 = vld [vmem:[#allocation3] sm:$0x1]
    %vm8 = vcmask 261120
    %9 = vst.msk [vmem:[#allocation2] sm:$0x1] %vm8, %v7
    %s10 = scalar_lea.vmem [#allocation3], 1
    %v11 = vld [vmem:[%s10] sm:$0x1]
    %12 = vrot.lane.b32.xlu0 %v11, 32
    %v13 = vpop.permute.xlu0 %12
    %vm14 = vcmask 523520
    %15 = vst.msk [vmem:[#allocation2] sm:$0x1] %vm14, %v13
    %s17 = sshllo.u32 0, 1
    %v19 = vld [vmem:[#allocation2] sm:%s17]
    %s20 = sshllo.u32 0, 1
    %21 = vst [vmem:[#allocation0] sm:%s20] %v19
    %s23 = ssub.s32 16, 16
    %24 = vsyncadd [#allocation1], %s23
    %s26 = sshll.u32 [#allocation0], 4
    %s27 = int_to_ptr.vmem [resolvable:$true] %s26
    %29 = dma.vmem_to_hbm [thread:$0]  %s27, 16, %s1, [#allocation1]
    %30 = dma.done [#allocation1], 16
    %31 = vsyncpa [#allocation1], 1

// kernel: tile.28
$region0: #{tile.28}
  #allocation0 [shape = 's32[1]{0}', space=sflag, size = 0x4, scoped, tag = 'scoped memory for tile.28']
  %s0 = inlined_call_operand.vmem [shape: f32[32], index: 0, kind: input, shape index: {}]
  %s1 = inlined_call_operand.vmem [shape: f32[2,32], index: 1, kind: output, shape index: {}]
  // Predicated region
  $region2: #{tile.28} parent=0 // pred_check
    _
  $region3: #{tile.28} parent=0 // pred_check_branch
    %3 = sbr.rel (0) target = $region5
  $region4: #{tile.28} parent=0 // pred_region
    _
  $region5: #{tile.28} parent=0 // pred_fallthru
    _
  %v4 = vld [vmem:[%s0] ss:$0 sm:$0xff]
  %5 = vst [vmem:[%s1] sm:$0x3] %v4

// kernel: tile.19
$region0: #{tile.19}
  %s0 = inlined_call_operand.vmem [shape: f32[2,32], index: 0, kind: input, shape index: {}]
  %s1 = inlined_call_operand.vmem [shape: f32[64], index: 1, kind: output, shape index: {}]
  $region1: #{tile.19} parent=0
    #allocation0 [shape = 'u8[4096]{0}', space=vmem, size = 0x1000, scoped, tag = 'scoped mem for output reshape']
    #allocation1 [shape = 'u8[4096]{0}', space=vmem, size = 0x1000, scoped, tag = 'scoped mem for input reshape']
    %s3 = sshllo.u32 0, 2
    %v4 = vld [vmem:[%s0] sm:%s3]
    %5 = vst [vmem:[#allocation1] sm:%s3] %v4
    %v6 = vld [vmem:[#allocation1] sm:$0x1]
    %vm7 = vcmask 261120
    %8 = vst.msk [vmem:[#allocation0] sm:$0x1] %vm7, %v6
    %s9 = scalar_lea.vmem [#allocation1], 1
    %v10 = vld [vmem:[%s9] sm:$0x1]
    %11 = vrot.lane.b32.xlu0 %v10, 32
    %v12 = vpop.permute.xlu0 %11
    %vm13 = vcmask 523520
    %14 = vst.msk [vmem:[#allocation0] sm:$0x1] %vm13, %v12
    %s16 = sshllo.u32 0, 1
    %v18 = vld [vmem:[#allocation0] sm:%s16]
    %s19 = sshllo.u32 0, 1
    %20 = vst [vmem:[%s1] sm:%s19] %v18

// kernel: _agcrn_forward.1
$region0: #{_agcrn_forward.1}
  #allocation0 [shape = 'u32[]', space=smem, size = 0x4, offset = 0x4, fixed_abs, tag = 'smem constant byte address 0x4 - core index']
  #allocation1 [shape = 'u32[144,128]{1,0:T(1,128)}', space=vmem, size = 0x12000, scoped, tag = 'internal scratch']
  %s0 = inlined_call_operand.hbm [shape: f32[2,16,72], index: 0, kind: input, shape index: {}]
  %s1 = inlined_call_operand.hbm [shape: f32[96,16], index: 1, kind: input, shape index: {}]
  %s2 = inlined_call_operand.hbm [shape: f32[432,128], index: 2, kind: input, shape index: {}]
  %s3 = inlined_call_operand.hbm [shape: f32[1,128], index: 3, kind: input, shape index: {}]
  %s4 = inlined_call_operand.hbm [shape: f32[432,64], index: 4, kind: input, shape index: {}]
  %s5 = inlined_call_operand.hbm [shape: f32[1,64], index: 5, kind: input, shape index: {}]
  %s6 = inlined_call_operand.hbm [shape: f32[2,16,64], index: 6, kind: output, shape index: {}]
  %s7 = sld [smem:[#allocation0]]
  $region81: #{_agcrn_forward.1} parent=0
    _
  %s9 = ssub.s32 1, %s7
  %s10 = scalar_select 0, %s9, %s7
  $region1: #{_agcrn_forward.1} parent=0
    #allocation2 [shape = 'u8[16384]{0}', space=vmem, size = 0x4000, scoped, tag = 'input window, operand 0']
    #allocation3 [shape = 's32[2]{0}', space=sflag, size = 0x8, scoped, tag = 'scoped memory for _agcrn_forward.1']
    #allocation4 [shape = 's32[2]{0}', space=sflag, size = 0x8, scoped, tag = 'scoped memory for _agcrn_forward.1']
    #allocation5 [shape = 'u8[49152]{0}', space=vmem, size = 0xc000, scoped, tag = 'input window, operand 1, single buffered']
    #allocation6 [shape = 's32[1]{0}', space=sflag, size = 0x4, scoped, tag = 'scoped memory for _agcrn_forward.1']
    #allocation7 [shape = 'u8[221184]{0}', space=vmem, size = 0x36000, scoped, tag = 'input window, operand 2, single buffered']
    #allocation8 [shape = 'u8[512]{0}', space=vmem, size = 0x400, scoped, tag = 'input window, operand 3, single buffered']
    #allocation9 [shape = 's32[1]{0}', space=sflag, size = 0x4, scoped, tag = 'scoped memory for _agcrn_forward.1']
    #allocation10 [shape = 'u8[221184]{0}', space=vmem, size = 0x36000, scoped, tag = 'input window, operand 4, single buffered']
    #allocation11 [shape = 'u8[512]{0}', space=vmem, size = 0x400, scoped, tag = 'input window, operand 5, single buffered']
    #allocation12 [shape = 's32[1]{0}', space=sflag, size = 0x4, scoped, tag = 'scoped memory for _agcrn_forward.1']
    #allocation13 [shape = 'u8[16384]{0}', space=vmem, size = 0x4000, scoped, tag = 'output window, operand 0']
    %11 = vsyncpa [#allocation3], 0
    %s12 = scalar_lea.sflag [#allocation3], 1
    %13 = vsyncpa %s12, 0
    %14 = vsyncpa [#allocation6], 0
    %15 = vsyncpa [#allocation9], 0
    %16 = vsyncpa [#allocation12], 0
    %17 = vsyncpa [#allocation4], 0
    %s18 = scalar_lea.sflag [#allocation4], 1
    %19 = vsyncpa %s18, 0
    loop: start=0, step=1, limit=4
    $region2: #{_agcrn_forward.1} parent=1 // loop_pre_header
      _
    $region3: #{_agcrn_forward.1} parent=1 // loop_header
      %s21 = sphi 0, %s25
      %p22 = scmp.ge.s32.totalorder %s21, 4
      %s31 = sphi 0, %s33
      %s34 = sphi 0, %s31
      %s35 = sphi 0, %s34
      %s51 = sphi 0, %s35
      %s55 = sphi 0, %s55
      %s57 = sphi 0, %s55
      %s58 = sphi 0, %s57
      %s72 = sphi 0, %s58
      %s76 = sphi 0, %s76
      %s78 = sphi 0, %s76
      %s79 = sphi 0, %s78
      %s93 = sphi 0, %s79
      %s97 = sphi 0, %s97
      %s99 = sphi 0, %s97
      %s100 = sphi 0, %s99
      %s114 = sphi 0, %s100
      %s118 = sphi 0, %s118
      %s120 = sphi 0, %s118
      %s121 = sphi 0, %s120
      %s135 = sphi 0, %s121
      %s139 = sphi 0, %s139
      %s141 = sphi 0, %s139
      %s142 = sphi 0, %s141
      %s156 = sphi 0, %s142
      %s162 = sphi 0, %s164
      %s165 = sphi 0, %s162
      %s166 = sphi 0, %s165
      %s182 = sphi 0, %s166
    $region4: #{_agcrn_forward.1} parent=1 // loop_header_branch
      %24 = sbr.rel (%p22) target = $region8
    $region5: #{_agcrn_forward.1} parent=1 // loop_body
      %s26 = ssub.s32 %s21, 1
      %s27 = ssub.s32 %s21, 2
      %s28 = sadd.s32 %s21, 1
      %s29 = ssub.s32 %s21, %s28
      %p30 = scmp.eq.s32.totalorder %s29, 0
      %s32 = sadd.s32 %s31, 1
      %s33 = scalar_select %p30, %s31, %s32
      %p36 = pneg %p30
      %p37 = scmp.eq.s32.totalorder %s21, 1
      %p38 = por %p36, %p37
      %p39 = scmp.ne.s32.totalorder %s31, %s34
      %p40 = scmp.eq.s32.totalorder %s21, 0
      %p41 = por %p39, %p40
      %p42 = scmp.ne.s32.totalorder %s31, %s34
      %p43 = scmp.eq.s32.totalorder %s26, 1
      %p44 = por %p42, %p43
      %p45 = scmp.ne.s32.totalorder %s34, %s35
      %p46 = scmp.eq.s32.totalorder %s26, 0
      %p47 = por %p45, %p46
      %p48 = scmp.ne.s32.totalorder %s34, %s35
      %p49 = scmp.eq.s32.totalorder %s27, 1
      %p50 = por %p48, %p49
      %p52 = scmp.ne.s32.totalorder %s35, %s51
      %p53 = scmp.eq.s32.totalorder %s27, 0
      %p54 = por %p52, %p53
      %s56 = sadd.s32 %s55, 1
      %p59 = scmp.eq.s32.totalorder %s21, 1
      %p60 = scmp.ne.s32.totalorder %s55, %s57
      %p61 = scmp.eq.s32.totalorder %s21, 0
      %p62 = por %p60, %p61
      %p63 = scmp.ne.s32.totalorder %s55, %s57
      %p64 = scmp.eq.s32.totalorder %s26, 1
      %p65 = por %p63, %p64
      %p66 = scmp.ne.s32.totalorder %s57, %s58
      %p67 = scmp.eq.s32.totalorder %s26, 0
      %p68 = por %p66, %p67
      %p69 = scmp.ne.s32.totalorder %s57, %s58
      %p70 = scmp.eq.s32.totalorder %s27, 1
      %p71 = por %p69, %p70
      %p73 = scmp.ne.s32.totalorder %s58, %s72
      %p74 = scmp.eq.s32.totalorder %s27, 0
      %p75 = por %p73, %p74
      %s77 = sadd.s32 %s76, 1
      %p80 = scmp.eq.s32.totalorder %s21, 1
      %p81 = scmp.ne.s32.totalorder %s76, %s78
      %p82 = scmp.eq.s32.totalorder %s21, 0
      %p83 = por %p81, %p82
      %p84 = scmp.ne.s32.totalorder %s76, %s78
      %p85 = scmp.eq.s32.totalorder %s26, 1
      %p86 = por %p84, %p85
      %p87 = scmp.ne.s32.totalorder %s78, %s79
      %p88 = scmp.eq.s32.totalorder %s26, 0
      %p89 = por %p87, %p88
      %p90 = scmp.ne.s32.totalorder %s78, %s79
      %p91 = scmp.eq.s32.totalorder %s27, 1
      %p92 = por %p90, %p91
      %p94 = scmp.ne.s32.totalorder %s79, %s93
      %p95 = scmp.eq.s32.totalorder %s27, 0
      %p96 = por %p94, %p95
      %s98 = sadd.s32 %s97, 1
      %p101 = scmp.eq.s32.totalorder %s21, 1
      %p102 = scmp.ne.s32.totalorder %s97, %s99
      %p103 = scmp.eq.s32.totalorder %s21, 0
      %p104 = por %p102, %p103
      %p105 = scmp.ne.s32.totalorder %s97, %s99
      %p106 = scmp.eq.s32.totalorder %s26, 1
      %p107 = por %p105, %p106
      %p108 = scmp.ne.s32.totalorder %s99, %s100
      %p109 = scmp.eq.s32.totalorder %s26, 0
      %p110 = por %p108, %p109
      %p111 = scmp.ne.s32.totalorder %s99, %s100
      %p112 = scmp.eq.s32.totalorder %s27, 1
      %p113 = por %p111, %p112
      %p115 = scmp.ne.s32.totalorder %s100, %s114
      %p116 = scmp.eq.s32.totalorder %s27, 0
      %p117 = por %p115, %p116
      %s119 = sadd.s32 %s118, 1
      %p122 = scmp.eq.s32.totalorder %s21, 1
      %p123 = scmp.ne.s32.totalorder %s118, %s120
      %p124 = scmp.eq.s32.totalorder %s21, 0
      %p125 = por %p123, %p124
      %p126 = scmp.ne.s32.totalorder %s118, %s120
      %p127 = scmp.eq.s32.totalorder %s26, 1
      %p128 = por %p126, %p127
      %p129 = scmp.ne.s32.totalorder %s120, %s121
      %p130 = scmp.eq.s32.totalorder %s26, 0
      %p131 = por %p129, %p130
      %p132 = scmp.ne.s32.totalorder %s120, %s121
      %p133 = scmp.eq.s32.totalorder %s27, 1
      %p134 = por %p132, %p133
      %p136 = scmp.ne.s32.totalorder %s121, %s135
      %p137 = scmp.eq.s32.totalorder %s27, 0
      %p138 = por %p136, %p137
      %s140 = sadd.s32 %s139, 1
      %p143 = scmp.eq.s32.totalorder %s21, 1
      %p144 = scmp.ne.s32.totalorder %s139, %s141
      %p145 = scmp.eq.s32.totalorder %s21, 0
      %p146 = por %p144, %p145
      %p147 = scmp.ne.s32.totalorder %s139, %s141
      %p148 = scmp.eq.s32.totalorder %s26, 1
      %p149 = por %p147, %p148
      %p150 = scmp.ne.s32.totalorder %s141, %s142
      %p151 = scmp.eq.s32.totalorder %s26, 0
      %p152 = por %p150, %p151
      %p153 = scmp.ne.s32.totalorder %s141, %s142
      %p154 = scmp.eq.s32.totalorder %s27, 1
      %p155 = por %p153, %p154
      %p157 = scmp.ne.s32.totalorder %s142, %s156
      %p158 = scmp.eq.s32.totalorder %s27, 0
      %p159 = por %p157, %p158
      %s160 = ssub.s32 %s21, %s28
      %p161 = scmp.eq.s32.totalorder %s160, 0
      %s163 = sadd.s32 %s162, 1
      %s164 = scalar_select %p161, %s162, %s163
      %p167 = pneg %p161
      %p168 = scmp.eq.s32.totalorder %s21, 1
      %p169 = por %p167, %p168
      %p170 = scmp.ne.s32.totalorder %s162, %s165
      %p171 = scmp.eq.s32.totalorder %s21, 0
      %p172 = por %p170, %p171
      %p173 = scmp.ne.s32.totalorder %s162, %s165
      %p174 = scmp.eq.s32.totalorder %s26, 1
      %p175 = por %p173, %p174
      %p176 = scmp.ne.s32.totalorder %s165, %s166
      %p177 = scmp.eq.s32.totalorder %s26, 0
      %p178 = por %p176, %p177
      %p179 = scmp.ne.s32.totalorder %s165, %s166
      %p180 = scmp.eq.s32.totalorder %s27, 1
      %p181 = por %p179, %p180
      %p183 = scmp.ne.s32.totalorder %s166, %s182
      %p184 = scmp.eq.s32.totalorder %s27, 0
      %p185 = por %p183, %p184
      %p186 = scmp.le.s32.totalorder 1, %s21
      %p187 = scmp.lt.s32.totalorder %s21, 3
      %p188 = pnand %p186, %p187
      %p189 = pneg %p188
      // Predicated region
      $region9: #{_agcrn_forward.1} parent=5 // pred_check
        _
      $region10: #{_agcrn_forward.1} parent=5 // pred_check_branch
        %191 = sbr.rel (%p188) target = $region12
      $region11: #{_agcrn_forward.1} parent=5 // pred_region
        %s192 = ssub.s32 %s21, 1
        // Predicated region
        $region13: #{_agcrn_forward.1} parent=11 // pred_check
          %p193 = pneg %p68
        $region14: #{_agcrn_forward.1} parent=11 // pred_check_branch
          %195 = sbr.rel (%p193) target = $region16
        $region15: #{_agcrn_forward.1} parent=11 // pred_region
          %s197 = ssub.s32 1536, 1536
          %198 = vsyncadd [#allocation6], %s197
          %s199 = sshll.u32 [#allocation5], 4
          %s200 = int_to_ptr.vmem [resolvable:$true] %s199
          %205 = dma.hbm_to_vmem [thread:$0]  %s1, 1536, %s200, [#allocation6], 128, 128, 8
        $region16: #{_agcrn_forward.1} parent=11 // pred_fallthru
          _
        // Predicated region
        $region17: #{_agcrn_forward.1} parent=11 // pred_check
          %p206 = pneg %p89
        $region18: #{_agcrn_forward.1} parent=11 // pred_check_branch
          %208 = sbr.rel (%p206) target = $region20
        $region19: #{_agcrn_forward.1} parent=11 // pred_region
          %s210 = ssub.s32 6912, 6912
          %211 = vsyncadd [#allocation6], %s210
          %s212 = sshll.u32 [#allocation7], 4
          %s213 = int_to_ptr.vmem [resolvable:$true] %s212
          %218 = dma.hbm_to_vmem [thread:$0]  %s2, 6912, %s213, [#allocation6], 128, 128, 8
        $region20: #{_agcrn_forward.1} parent=11 // pred_fallthru
          _
        // Predicated region
        $region21: #{_agcrn_forward.1} parent=11 // pred_check
          %p219 = pneg %p110
        $region22: #{_agcrn_forward.1} parent=11 // pred_check_branch
          %221 = sbr.rel (%p219) target = $region24
        $region23: #{_agcrn_forward.1} parent=11 // pred_region
          %s223 = ssub.s32 16, 16
          %224 = vsyncadd [#allocation9], %s223
          %s226 = sshll.u32 [#allocation8], 4
          %s227 = int_to_ptr.vmem [resolvable:$true] %s226
          %229 = dma.hbm_to_vmem [thread:$0]  %s3, 16, %s227, [#allocation9]
        $region24: #{_agcrn_forward.1} parent=11 // pred_fallthru
          _
        // Predicated region
        $region25: #{_agcrn_forward.1} parent=11 // pred_check
          %p230 = pneg %p131
        $region26: #{_agcrn_forward.1} parent=11 // pred_check_branch
          %232 = sbr.rel (%p230) target = $region28
        $region27: #{_agcrn_forward.1} parent=11 // pred_region
          %s234 = ssub.s32 6912, 6912
          %235 = vsyncadd [#allocation9], %s234
          %s236 = sshll.u32 [#allocation10], 4
          %s237 = int_to_ptr.vmem [resolvable:$true] %s236
          %242 = dma.hbm_to_vmem [thread:$0]  %s4, 6912, %s237, [#allocation9], 128, 128, 8
        $region28: #{_agcrn_forward.1} parent=11 // pred_fallthru
          _
        // Predicated region
        $region29: #{_agcrn_forward.1} parent=11 // pred_check
          %p243 = pneg %p152
        $region30: #{_agcrn_forward.1} parent=11 // pred_check_branch
          %245 = sbr.rel (%p243) target = $region32
        $region31: #{_agcrn_forward.1} parent=11 // pred_region
          %s247 = ssub.s32 16, 16
          %248 = vsyncadd [#allocation12], %s247
          %s250 = sshll.u32 [#allocation11], 4
          %s251 = int_to_ptr.vmem [resolvable:$true] %s250
          %253 = dma.hbm_to_vmem [thread:$0]  %s5, 16, %s251, [#allocation12]
        $region32: #{_agcrn_forward.1} parent=11 // pred_fallthru
          _
      $region12: #{_agcrn_forward.1} parent=5 // pred_fallthru
        _
      %p254 = scmp.lt.s32.totalorder %s21, 2
      // Predicated region
      $region33: #{_agcrn_forward.1} parent=5 // pred_check
        %p255 = pneg %p254
      $region34: #{_agcrn_forward.1} parent=5 // pred_check_branch
        %257 = sbr.rel (%p255) target = $region36
      $region35: #{_agcrn_forward.1} parent=5 // pred_region
        // Predicated region
        $region37: #{_agcrn_forward.1} parent=35 // pred_check
          %p258 = pneg %p41
        $region38: #{_agcrn_forward.1} parent=35 // pred_check_branch
          %260 = sbr.rel (%p258) target = $region40
        $region39: #{_agcrn_forward.1} parent=35 // pred_region
          %s261 = sand.u32 %s31, 1
          %s262 = scalar_lea.sflag [#allocation3], %s261
          %s263 = sand.u32 %s31, 1
          %s264 = smul.addr %s263, 16
          %s265 = scalar_lea.vmem [#allocation2], %s264
          %s267 = ssub.s32 256, 256
          %268 = vsyncadd %s262, %s267
          %s269 = smul.addr %s21, 2
          %s270 = smul.addr %s269, 128
          %s271 = scalar_lea.hbm %s0, %s270
          %s272 = sshll.u32 %s265, 4
          %s273 = int_to_ptr.vmem [resolvable:$true] %s272
          %278 = dma.hbm_to_vmem [thread:$0]  %s271, 256, %s273, %s262, 128, 128, 8
        $region40: #{_agcrn_forward.1} parent=35 // pred_fallthru
          _
      $region36: #{_agcrn_forward.1} parent=5 // pred_fallthru
        _
      %p279 = scmp.le.s32.totalorder 1, %s21
      %p280 = scmp.lt.s32.totalorder %s21, 3
      %p281 = pnand %p279, %p280
      %p282 = pneg %p281
      // Predicated region
      $region41: #{_agcrn_forward.1} parent=5 // pred_check
        _
      $region42: #{_agcrn_forward.1} parent=5 // pred_check_branch
        %284 = sbr.rel (%p281) target = $region44
      $region43: #{_agcrn_forward.1} parent=5 // pred_region
        %s285 = ssub.s32 %s21, 1
        %s286 = sand.u32 %s34, 1
        %s287 = scalar_lea.sflag [#allocation3], %s286
        %s288 = sand.u32 %s34, 1
        %s289 = smul.addr %s288, 16
        %s290 = scalar_lea.vmem [#allocation2], %s289
        // Predicated region
        $region45: #{_agcrn_forward.1} parent=43 // pred_check
          %p291 = pneg %p47
        $region46: #{_agcrn_forward.1} parent=43 // pred_check_branch
          %293 = sbr.rel (%p291) target = $region48
        $region47: #{_agcrn_forward.1} parent=43 // pred_region
          %294 = dma.done %s287, 256
        $region48: #{_agcrn_forward.1} parent=43 // pred_fallthru
          _
        // Predicated region
        $region49: #{_agcrn_forward.1} parent=43 // pred_check
          %p295 = pneg %p68
        $region50: #{_agcrn_forward.1} parent=43 // pred_check_branch
          %297 = sbr.rel (%p295) target = $region52
        $region51: #{_agcrn_forward.1} parent=43 // pred_region
          %298 = dma.done [#allocation6], 1536
        $region52: #{_agcrn_forward.1} parent=43 // pred_fallthru
          _
        // Predicated region
        $region53: #{_agcrn_forward.1} parent=43 // pred_check
          %p299 = pneg %p89
        $region54: #{_agcrn_forward.1} parent=43 // pred_check_branch
          %301 = sbr.rel (%p299) target = $region56
        $region55: #{_agcrn_forward.1} parent=43 // pred_region
          %302 = dma.done [#allocation6], 6912
        $region56: #{_agcrn_forward.1} parent=43 // pred_fallthru
          _
        // Predicated region
        $region57: #{_agcrn_forward.1} parent=43 // pred_check
          %p303 = pneg %p110
        $region58: #{_agcrn_forward.1} parent=43 // pred_check_branch
          %305 = sbr.rel (%p303) target = $region60
        $region59: #{_agcrn_forward.1} parent=43 // pred_region
          %306 = dma.done [#allocation9], 16
        $region60: #{_agcrn_forward.1} parent=43 // pred_fallthru
          _
        // Predicated region
        $region61: #{_agcrn_forward.1} parent=43 // pred_check
          %p307 = pneg %p131
        $region62: #{_agcrn_forward.1} parent=43 // pred_check_branch
          %309 = sbr.rel (%p307) target = $region64
        $region63: #{_agcrn_forward.1} parent=43 // pred_region
          %310 = dma.done [#allocation9], 6912
        $region64: #{_agcrn_forward.1} parent=43 // pred_fallthru
          _
        // Predicated region
        $region65: #{_agcrn_forward.1} parent=43 // pred_check
          %p311 = pneg %p152
        $region66: #{_agcrn_forward.1} parent=43 // pred_check_branch
          %313 = sbr.rel (%p311) target = $region68
        $region67: #{_agcrn_forward.1} parent=43 // pred_region
          %314 = dma.done [#allocation12], 16
        $region68: #{_agcrn_forward.1} parent=43 // pred_fallthru
          _
        %s315 = sand.u32 %s34, 1
        %s316 = scalar_lea.sflag [#allocation3], %s315
        %s317 = sand.u32 %s34, 1
        %s318 = smul.addr %s317, 16
        %s319 = scalar_lea.vmem [#allocation2], %s318
        %p320 = pneg %p47
        %p321 = pneg %p44
        %p322 = pneg %p68
        %p323 = pneg %p65
        %p324 = pneg %p89
        %p325 = pneg %p86
        %p326 = pneg %p110
        %p327 = pneg %p107
        %p328 = pneg %p131
        %p329 = pneg %p128
        %p330 = pneg %p152
        %p331 = pneg %p149
        %p332 = pneg %p178
        %p333 = pneg %p175
        %s334 = sand.u32 %s165, 1
        %s335 = scalar_lea.sflag [#allocation4], %s334
        %s336 = sand.u32 %s165, 1
        %s337 = smul.addr %s336, 16
        %s338 = scalar_lea.vmem [#allocation13], %s337
        %v339 = vld [vmem:[%s290] sm:$0xff]
        %v340 = vld [vmem:[%s290 + $0x8] sm:$0xff]
        %v341 = vld [vmem:[#allocation5] sm:$0xff]
        %v342 = vld [vmem:[#allocation5 + $0x8] sm:$0xff]
        %v343 = vld [vmem:[#allocation5 + $0x10] sm:$0xff]
        %v344 = vld [vmem:[#allocation5 + $0x18] sm:$0xff]
        %v345 = vld [vmem:[#allocation5 + $0x20] sm:$0xff]
        %v346 = vld [vmem:[#allocation5 + $0x28] sm:$0xff]
        %v347 = vld [vmem:[#allocation5 + $0x30] sm:$0xff]
        %v348 = vld [vmem:[#allocation5 + $0x38] sm:$0xff]
        %v349 = vld [vmem:[#allocation5 + $0x40] sm:$0xff]
        %v350 = vld [vmem:[#allocation5 + $0x48] sm:$0xff]
        %v351 = vld [vmem:[#allocation5 + $0x50] sm:$0xff]
        %v352 = vld [vmem:[#allocation5 + $0x58] sm:$0xff]
        %vm353 = vcmask 130048
        %v355 = vsel %vm353, %v341, 0
        %v358 = vsel %vm353, %v342, 0
        %v361 = vsel %vm353, %v343, 0
        %v364 = vsel %vm353, %v344, 0
        %v367 = vsel %vm353, %v345, 0
        %v370 = vsel %vm353, %v346, 0
        %v373 = vsel %vm353, %v347, 0
        %v376 = vsel %vm353, %v348, 0
        %v379 = vsel %vm353, %v349, 0
        %v382 = vsel %vm353, %v350, 0
        %v385 = vsel %vm353, %v351, 0
        %v388 = vsel %vm353, %v352, 0
        %390 = vmatprep.subr.mxu0 0.0
        %391 = vmatpush1.msra.mxu0 %v339
        %392 = vmatprep.subr.mxu0 0.0
        %393 = vmatpush1.msra.mxu0 %v340
        %394 = vmatprep.subr.mxu0 0.0
        %395 = vmatpush1.msra.mxu0 0.0
        %396 = vmatprep.subr.mxu0 0.0
        %397 = vmatpush1.msra.mxu0 0.0
        %398 = vmatprep.subr.mxu0 0.0
        %399 = vmatpush1.msra.mxu0 0.0
        %400 = vmatprep.subr.mxu0 0.0
        %401 = vmatpush1.msra.mxu0 0.0
        %402 = vmatprep.subr.mxu0 0.0
        %403 = vmatpush1.msra.mxu0 0.0
        %404 = vmatprep.subr.mxu0 0.0
        %405 = vmatpush1.msra.mxu0 0.0
        %406 = vmatprep.subr.mxu0 0.0
        %407 = vmatpush1.msra.mxu0 0.0
        %408 = vmatprep.subr.mxu0 0.0
        %409 = vmatpush1.msra.mxu0 0.0
        %410 = vmatprep.subr.mxu0 0.0
        %411 = vmatpush1.msra.mxu0 0.0
        %412 = vmatprep.subr.mxu0 0.0
        %413 = vmatpush1.msra.mxu0 0.0
        %414 = vmatprep.subr.mxu0 0.0
        %415 = vmatpush1.msra.mxu0 0.0
        %416 = vmatprep.subr.mxu0 0.0
        %417 = vmatpush1.msra.mxu0 0.0
        %418 = vmatprep.subr.mxu0 0.0
        %419 = vmatpush1.msra.mxu0 0.0
        %420 = vmatprep.subr.mxu0 0.0
        %421 = vmatpush1.msra.mxu0 0.0
        %422 = vmatprep.subr.mxu0 0.0
        %423 = vmatpush1.msra.mxu0 0.0
        %424 = vmatprep.subr.mxu0 0.0
        %425 = vmatpush1.msra.mxu0 0.0
        %426 = vmatprep.subr.mxu0 0.0
        %427 = vmatpush1.msra.mxu0 0.0
        %428 = vmatprep.subr.mxu0 0.0
        %429 = vmatpush1.msra.mxu0 0.0
        %430 = vmatprep.subr.mxu0 0.0
        %431 = vmatpush1.msra.mxu0 0.0
        %432 = vmatprep.subr.mxu0 0.0
        %433 = vmatpush1.msra.mxu0 0.0
        %434 = vmatprep.subr.mxu0 0.0
        %435 = vmatpush1.msra.mxu0 0.0
        %436 = vmatprep.subr.mxu0 0.0
        %437 = vmatpush1.msra.mxu0 0.0
        %438 = vmatprep.subr.mxu0 0.0
        %439 = vmatpush1.msra.mxu0 0.0
        %440 = vmatprep.subr.mxu0 0.0
        %441 = vmatpush1.msra.mxu0 0.0
        %442 = vmatprep.subr.mxu0 0.0
        %443 = vmatpush1.msra.mxu0 0.0
        %444 = vmatprep.subr.mxu0 0.0
        %445 = vmatpush1.msra.mxu0 0.0
        %446 = vmatprep.subr.mxu0 0.0
        %447 = vmatpush1.msra.mxu0 0.0
        %448 = vmatprep.subr.mxu0 0.0
        %449 = vmatpush1.msra.mxu0 0.0
        %450 = vmatprep.subr.mxu0 0.0
        %451 = vmatpush1.msra.mxu0 0.0
        %452 = vmatprep.subr.mxu0 0.0
        %453 = vmatpush1.msra.mxu0 0.0
        %454 = vmatprep.mubr.f32.mxu0 0.0
        %455 = vmatmul.mubr.f32.gmra.mrb[0].mxu0 %v355
        %v456 = vpop.f32.mrb[0].mxu0
        %v457 = vadd.f32 0.0, %v456
        %v458 = vpop.f32.mrb[0].mxu0
        %459 = vmatprep.mubr.f32.mxu0 0.0
        %460 = vmatmul.mubr.f32.gmra.mrb[0].mxu0 %v358
        %v461 = vpop.f32.mrb[0].mxu0
        %v462 = vadd.f32 0.0, %v461
        %v463 = vpop.f32.mrb[0].mxu0
        %464 = vmatprep.mubr.f32.mxu0 0.0
        %465 = vmatmul.mubr.f32.gmra.mrb[0].mxu0 %v361
        %v466 = vpop.f32.mrb[0].mxu0
        %v467 = vadd.f32 0.0, %v466
        %v468 = vpop.f32.mrb[0].mxu0
        %469 = vmatprep.mubr.f32.mxu0 0.0
        %470 = vmatmul.mubr.f32.gmra.mrb[0].mxu0 %v364
        %v471 = vpop.f32.mrb[0].mxu0
        %v472 = vadd.f32 0.0, %v471
        %v473 = vpop.f32.mrb[0].mxu0
        %474 = vmatprep.mubr.f32.mxu0 0.0
        %475 = vmatmul.mubr.f32.gmra.mrb[0].mxu0 %v367
        %v476 = vpop.f32.mrb[0].mxu0
        %v477 = vadd.f32 0.0, %v476
        %v478 = vpop.f32.mrb[0].mxu0
        %479 = vmatprep.mubr.f32.mxu0 0.0
        %480 = vmatmul.mubr.f32.gmra.mrb[0].mxu0 %v370
        %v481 = vpop.f32.mrb[0].mxu0
        %v482 = vadd.f32 0.0, %v481
        %v483 = vpop.f32.mrb[0].mxu0
        %484 = vmatprep.mubr.f32.mxu0 0.0
        %485 = vmatmul.mubr.f32.gmra.mrb[0].mxu0 %v373
        %v486 = vpop.f32.mrb[0].mxu0
        %v487 = vadd.f32 0.0, %v486
        %v488 = vpop.f32.mrb[0].mxu0
        %489 = vmatprep.mubr.f32.mxu0 0.0
        %490 = vmatmul.mubr.f32.gmra.mrb[0].mxu0 %v376
        %v491 = vpop.f32.mrb[0].mxu0
        %v492 = vadd.f32 0.0, %v491
        %v493 = vpop.f32.mrb[0].mxu0
        %494 = vmatprep.mubr.f32.mxu0 0.0
        %495 = vmatmul.mubr.f32.gmra.mrb[0].mxu0 %v379
        %v496 = vpop.f32.mrb[0].mxu0
        %v497 = vadd.f32 0.0, %v496
        %v498 = vpop.f32.mrb[0].mxu0
        %499 = vmatprep.mubr.f32.mxu0 0.0
        %500 = vmatmul.mubr.f32.gmra.mrb[0].mxu0 %v382
        %v501 = vpop.f32.mrb[0].mxu0
        %v502 = vadd.f32 0.0, %v501
        %v503 = vpop.f32.mrb[0].mxu0
        %504 = vmatprep.mubr.f32.mxu0 0.0
        %505 = vmatmul.mubr.f32.gmra.mrb[0].mxu0 %v385
        %v506 = vpop.f32.mrb[0].mxu0
        %v507 = vadd.f32 0.0, %v506
        %v508 = vpop.f32.mrb[0].mxu0
        %509 = vmatprep.mubr.f32.mxu0 0.0
        %510 = vmatmul.mubr.f32.gmra.mrb[0].mxu0 %v388
        %v511 = vpop.f32.mrb[0].mxu0
        %v512 = vadd.f32 0.0, %v511
        %v513 = vpop.f32.mrb[0].mxu0
        %514 = vdwg.mxu0
        %517 = vrot.lane.b32.xlu0 %v467, 72
        %v518 = vpop.permute.xlu0 %517
        %519 = vrot.lane.b32.xlu0 %v472, 72
        %v520 = vpop.permute.xlu0 %519
        %525 = vrot.lane.b32.xlu0 %v477, 16
        %v526 = vpop.permute.xlu0 %525
        %527 = vrot.lane.b32.xlu0 %v482, 16
        %v528 = vpop.permute.xlu0 %527
        %533 = vrot.lane.b32.xlu0 %v487, 88
        %v534 = vpop.permute.xlu0 %533
        %535 = vrot.lane.b32.xlu0 %v492, 88
        %v536 = vpop.permute.xlu0 %535
        %541 = vrot.lane.b32.xlu0 %v497, 32
        %v542 = vpop.permute.xlu0 %541
        %543 = vrot.lane.b32.xlu0 %v502, 32
        %v544 = vpop.permute.xlu0 %543
        %549 = vrot.lane.b32.xlu0 %v507, 104
        %v550 = vpop.permute.xlu0 %549
        %551 = vrot.lane.b32.xlu0 %v512, 104
        %v552 = vpop.permute.xlu0 %551
        %vm555 = vcmask 588800
        %v556 = vsel %vm555, %v457, %v518
        %v557 = vsel %vm555, %v462, %v520
        %v558 = vsel %vm353, %v518, %v526
        %v559 = vsel %vm353, %v520, %v528
        %vm560 = vcmask 719872
        %v561 = vsel %vm560, %v558, %v534
        %v562 = vsel %vm560, %v559, %v536
        %vm563 = vcmask 261120
        %v564 = vsel %vm563, %v534, %v542
        %v565 = vsel %vm563, %v536, %v544
        %vm566 = vcmask 850944
        %v567 = vsel %vm566, %v564, %v550
        %v568 = vsel %vm566, %v565, %v552
        %v569 = vld [vmem:[#allocation7] sm:$0xff]
        %v570 = vld [vmem:[#allocation7 + $0x8] sm:$0xff]
        %v571 = vld [vmem:[#allocation7 + $0x10] sm:$0xff]
        %v572 = vld [vmem:[#allocation7 + $0x18] sm:$0xff]
        %v573 = vld [vmem:[#allocation7 + $0x20] sm:$0xff]
        %v574 = vld [vmem:[#allocation7 + $0x28] sm:$0xff]
        %v575 = vld [vmem:[#allocation7 + $0x30] sm:$0xff]
        %v576 = vld [vmem:[#allocation7 + $0x38] sm:$0xff]
        %v577 = vld [vmem:[#allocation7 + $0x40] sm:$0xff]
        %v578 = vld [vmem:[#allocation7 + $0x48] sm:$0xff]
        %v579 = vld [vmem:[#allocation7 + $0x50] sm:$0xff]
        %v580 = vld [vmem:[#allocation7 + $0x58] sm:$0xff]
        %v581 = vld [vmem:[#allocation7 + $0x60] sm:$0xff]
        %v582 = vld [vmem:[#allocation7 + $0x68] sm:$0xff]
        %v583 = vld [vmem:[#allocation7 + $0x70] sm:$0xff]
        %v584 = vld [vmem:[#allocation7 + $0x78] sm:$0xff]
        %v585 = vld [vmem:[#allocation7 + $0x80] sm:$0xff]
        %v586 = vld [vmem:[#allocation7 + $0x88] sm:$0xff]
        %v587 = vld [vmem:[#allocation7 + $0x90] sm:$0xff]
        %v588 = vld [vmem:[#allocation7 + $0x98] sm:$0xff]
        %v589 = vld [vmem:[#allocation7 + $0xa0] sm:$0xff]
        %v590 = vld [vmem:[#allocation7 + $0xa8] sm:$0xff]
        %v591 = vld [vmem:[#allocation7 + $0xb0] sm:$0xff]
        %v592 = vld [vmem:[#allocation7 + $0xb8] sm:$0xff]
        %v593 = vld [vmem:[#allocation7 + $0xc0] sm:$0xff]
        %v594 = vld [vmem:[#allocation7 + $0xc8] sm:$0xff]
        %v595 = vld [vmem:[#allocation7 + $0xd0] sm:$0xff]
        %v596 = vld [vmem:[#allocation7 + $0xd8] sm:$0xff]
        %v597 = vld [vmem:[#allocation7 + $0xe0] sm:$0xff]
        %v598 = vld [vmem:[#allocation7 + $0xe8] sm:$0xff]
        %v599 = vld [vmem:[#allocation7 + $0xf0] sm:$0xff]
        %v600 = vld [vmem:[#allocation7 + $0xf8] sm:$0xff]
        %v601 = vld [vmem:[#allocation7 + $0x100] sm:$0xff]
        %v602 = vld [vmem:[#allocation7 + $0x108] sm:$0xff]
        %v603 = vld [vmem:[#allocation7 + $0x110] sm:$0xff]
        %v604 = vld [vmem:[#allocation7 + $0x118] sm:$0xff]
        %v605 = vld [vmem:[#allocation7 + $0x120] sm:$0xff]
        %v606 = vld [vmem:[#allocation7 + $0x128] sm:$0xff]
        %v607 = vld [vmem:[#allocation7 + $0x130] sm:$0xff]
        %v608 = vld [vmem:[#allocation7 + $0x138] sm:$0xff]
        %v609 = vld [vmem:[#allocation7 + $0x140] sm:$0xff]
        %v610 = vld [vmem:[#allocation7 + $0x148] sm:$0xff]
        %v611 = vld [vmem:[#allocation7 + $0x150] sm:$0xff]
        %v612 = vld [vmem:[#allocation7 + $0x158] sm:$0xff]
        %v613 = vld [vmem:[#allocation7 + $0x160] sm:$0xff]
        %v614 = vld [vmem:[#allocation7 + $0x168] sm:$0xff]
        %v615 = vld [vmem:[#allocation7 + $0x170] sm:$0xff]
        %v616 = vld [vmem:[#allocation7 + $0x178] sm:$0xff]
        %v617 = vld [vmem:[#allocation7 + $0x180] sm:$0xff]
        %v618 = vld [vmem:[#allocation7 + $0x188] sm:$0xff]
        %v619 = vld [vmem:[#allocation7 + $0x190] sm:$0xff]
        %v620 = vld [vmem:[#allocation7 + $0x198] sm:$0xff]
        %v621 = vld [vmem:[#allocation7 + $0x1a0] sm:$0xff]
        %v622 = vld [vmem:[#allocation7 + $0x1a8] sm:$0xff]
        %v623 = vld [vmem:[#allocation8] sm:$0x1]
        %v625 = vlaneseq
        %v626 = vshrl.u32 %v625, 7
        %v627 = vsub.s32 0, %v626
        %v628 = vrot.slane %v623, %v627
        %vm630 = vcmask 392192
        %v631 = vsel %vm630, %v550, 0
        %v633 = vsel %vm630, %v552, 0
        %635 = vmatprep.subr.mxu0 0.0
        %636 = vmatpush1.msra.mxu0 %v569
        %637 = vmatprep.subr.mxu0 0.0
        %638 = vmatpush1.msra.mxu0 %v570
        %639 = vmatprep.subr.mxu0 0.0
        %640 = vmatpush1.msra.mxu0 %v571
        %641 = vmatprep.subr.mxu0 0.0
        %642 = vmatpush1.msra.mxu0 %v572
        %643 = vmatprep.subr.mxu0 0.0
        %644 = vmatpush1.msra.mxu0 %v573
        %645 = vmatprep.subr.mxu0 0.0
        %646 = vmatpush1.msra.mxu0 %v574
        %647 = vmatprep.subr.mxu0 0.0
        %648 = vmatpush1.msra.mxu0 %v575
        %649 = vmatprep.subr.mxu0 0.0
        %650 = vmatpush1.msra.mxu0 %v576
        %651 = vmatprep.subr.mxu0 0.0
        %652 = vmatpush1.msra.mxu0 %v577
        %653 = vmatprep.subr.mxu0 0.0
        %654 = vmatpush1.msra.mxu0 %v578
        %655 = vmatprep.subr.mxu0 0.0
        %656 = vmatpush1.msra.mxu0 %v579
        %657 = vmatprep.subr.mxu0 0.0
        %658 = vmatpush1.msra.mxu0 %v580
        %659 = vmatprep.subr.mxu0 0.0
        %660 = vmatpush1.msra.mxu0 %v581
        %661 = vmatprep.subr.mxu0 0.0
        %662 = vmatpush1.msra.mxu0 %v582
        %663 = vmatprep.subr.mxu0 0.0
        %664 = vmatpush1.msra.mxu0 %v583
        %665 = vmatprep.subr.mxu0 0.0
        %666 = vmatpush1.msra.mxu0 %v584
        %667 = vmatprep.subr.mxu0 0.0
        %668 = vmatpush1.msra.mxu0 %v585
        %669 = vmatprep.subr.mxu0 0.0
        %670 = vmatpush1.msra.mxu0 %v586
        %671 = vmatprep.subr.mxu0 0.0
        %672 = vmatpush1.msra.mxu0 %v587
        %673 = vmatprep.subr.mxu0 0.0
        %674 = vmatpush1.msra.mxu0 %v588
        %675 = vmatprep.subr.mxu0 0.0
        %676 = vmatpush1.msra.mxu0 %v589
        %677 = vmatprep.subr.mxu0 0.0
        %678 = vmatpush1.msra.mxu0 %v590
        %679 = vmatprep.subr.mxu0 0.0
        %680 = vmatpush1.msra.mxu0 %v591
        %681 = vmatprep.subr.mxu0 0.0
        %682 = vmatpush1.msra.mxu0 %v592
        %683 = vmatprep.subr.mxu0 0.0
        %684 = vmatpush1.msra.mxu0 %v593
        %685 = vmatprep.subr.mxu0 0.0
        %686 = vmatpush1.msra.mxu0 %v594
        %687 = vmatprep.subr.mxu0 0.0
        %688 = vmatpush1.msra.mxu0 %v595
        %689 = vmatprep.subr.mxu0 0.0
        %690 = vmatpush1.msra.mxu0 %v596
        %691 = vmatprep.subr.mxu0 0.0
        %692 = vmatpush1.msra.mxu0 %v597
        %693 = vmatprep.subr.mxu0 0.0
        %694 = vmatpush1.msra.mxu0 %v598
        %695 = vmatprep.subr.mxu0 0.0
        %696 = vmatpush1.msra.mxu0 %v599
        %697 = vmatprep.subr.mxu0 0.0
        %698 = vmatpush1.msra.mxu0 %v600
        %699 = vmatprep.mubr.f32.mxu0 %v561
        %700 = vmatmul.mubr.f32.gmra.mrb[0].mxu0 %v556
        %v701 = vpop.f32.mrb[0].mxu0
        %v702 = vadd.f32 %v628, %v701
        %v703 = vpop.f32.mrb[0].mxu0
        %704 = vmatprep.mubr.f32.mxu0 %v562
        %705 = vmatmul.mubr.f32.gmra.mrb[0].mxu0 %v557
        %v706 = vpop.f32.mrb[0].mxu0
        %v707 = vadd.f32 %v628, %v706
        %v708 = vpop.f32.mrb[0].mxu0
        %709 = vdwg.mxu0
        %710 = vmatprep.subr.mxu0 0.0
        %711 = vmatpush1.msra.mxu0 %v601
        %712 = vmatprep.subr.mxu0 0.0
        %713 = vmatpush1.msra.mxu0 %v602
        %714 = vmatprep.subr.mxu0 0.0
        %715 = vmatpush1.msra.mxu0 %v603
        %716 = vmatprep.subr.mxu0 0.0
        %717 = vmatpush1.msra.mxu0 %v604
        %718 = vmatprep.subr.mxu0 0.0
        %719 = vmatpush1.msra.mxu0 %v605
        %720 = vmatprep.subr.mxu0 0.0
        %721 = vmatpush1.msra.mxu0 %v606
        %722 = vmatprep.subr.mxu0 0.0
        %723 = vmatpush1.msra.mxu0 %v607
        %724 = vmatprep.subr.mxu0 0.0
        %725 = vmatpush1.msra.mxu0 %v608
        %726 = vmatprep.subr.mxu0 0.0
        %727 = vmatpush1.msra.mxu0 %v609
        %728 = vmatprep.subr.mxu0 0.0
        %729 = vmatpush1.msra.mxu0 %v610
        %730 = vmatprep.subr.mxu0 0.0
        %731 = vmatpush1.msra.mxu0 %v611
        %732 = vmatprep.subr.mxu0 0.0
        %733 = vmatpush1.msra.mxu0 %v612
        %734 = vmatprep.subr.mxu0 0.0
        %735 = vmatpush1.msra.mxu0 %v613
        %736 = vmatprep.subr.mxu0 0.0
        %737 = vmatpush1.msra.mxu0 %v614
        %738 = vmatprep.subr.mxu0 0.0
        %739 = vmatpush1.msra.mxu0 %v615
        %740 = vmatprep.subr.mxu0 0.0
        %741 = vmatpush1.msra.mxu0 %v616
        %742 = vmatprep.subr.mxu0 0.0
        %743 = vmatpush1.msra.mxu0 %v617
        %744 = vmatprep.subr.mxu0 0.0
        %745 = vmatpush1.msra.mxu0 %v618
        %746 = vmatprep.subr.mxu0 0.0
        %747 = vmatpush1.msra.mxu0 %v619
        %748 = vmatprep.subr.mxu0 0.0
        %749 = vmatpush1.msra.mxu0 %v620
        %750 = vmatprep.subr.mxu0 0.0
        %751 = vmatpush1.msra.mxu0 %v621
        %752 = vmatprep.subr.mxu0 0.0
        %753 = vmatpush1.msra.mxu0 %v622
        %754 = vmatprep.subr.mxu0 0.0
        %755 = vmatpush1.msra.mxu0 0.0
        %756 = vmatprep.subr.mxu0 0.0
        %757 = vmatpush1.msra.mxu0 0.0
        %758 = vmatprep.subr.mxu0 0.0
        %759 = vmatpush1.msra.mxu0 0.0
        %760 = vmatprep.subr.mxu0 0.0
        %761 = vmatpush1.msra.mxu0 0.0
        %762 = vmatprep.subr.mxu0 0.0
        %763 = vmatpush1.msra.mxu0 0.0
        %764 = vmatprep.subr.mxu0 0.0
        %765 = vmatpush1.msra.mxu0 0.0
        %766 = vmatprep.subr.mxu0 0.0
        %767 = vmatpush1.msra.mxu0 0.0
        %768 = vmatprep.subr.mxu0 0.0
        %769 = vmatpush1.msra.mxu0 0.0
        %770 = vmatprep.subr.mxu0 0.0
        %771 = vmatpush1.msra.mxu0 0.0
        %772 = vmatprep.subr.mxu0 0.0
        %773 = vmatpush1.msra.mxu0 0.0
        %774 = vmatprep.mubr.f32.mxu0 %v631
        %775 = vmatmul.mubr.f32.gmra.mrb[0].mxu0 %v567
        %v776 = vpop.f32.mrb[0].mxu0
        %v777 = vadd.f32 %v702, %v776
        %v778 = vpop.f32.mrb[0].mxu0
        %779 = vmatprep.mubr.f32.mxu0 %v633
        %780 = vmatmul.mubr.f32.gmra.mrb[0].mxu0 %v568
        %v781 = vpop.f32.mrb[0].mxu0
        %v782 = vadd.f32 %v707, %v781
        %v783 = vpop.f32.mrb[0].mxu0
        %784 = vdwg.mxu0
        %v785 = vxor.u32 %v777, 2147483648
        %v786 = vxor.u32 %v782, 2147483648
        %v787 = vmul.f32 %v785, 1.442695
        %v788 = vpow.pop %v787
        %v789 = vmul.f32 %v786, 1.442695
        %v790 = vpow.pop %v789
        %v791 = vadd.f32 %v788, 1.0
        %v792 = vadd.f32 %v790, 1.0
        %v793 = vrcp.pop %v791
        %v794 = vmul.f32 1.0, %v793
        %v795 = vrcp.pop %v792
        %v796 = vmul.f32 1.0, %v795
        %799 = vrot.lane.b32.xlu0 %v339, 120
        %v800 = vpop.permute.xlu0 %799
        %801 = vrot.lane.b32.xlu0 %v340, 120
        %v802 = vpop.permute.xlu0 %801
        %v805 = vmul.f32 %v794, %v800
        %v806 = vmul.f32 %v796, %v802
        %807 = vmatprep.subr.mxu0 0.0
        %808 = vmatpush1.msra.mxu0 %v805
        %809 = vmatprep.subr.mxu0 0.0
        %810 = vmatpush1.msra.mxu0 %v806
        %811 = vmatprep.subr.mxu0 0.0
        %812 = vmatpush1.msra.mxu0 0.0
        %813 = vmatprep.subr.mxu0 0.0
        %814 = vmatpush1.msra.mxu0 0.0
        %815 = vmatprep.subr.mxu0 0.0
        %816 = vmatpush1.msra.mxu0 0.0
        %817 = vmatprep.subr.mxu0 0.0
        %818 = vmatpush1.msra.mxu0 0.0
        %819 = vmatprep.subr.mxu0 0.0
        %820 = vmatpush1.msra.mxu0 0.0
        %821 = vmatprep.subr.mxu0 0.0
        %822 = vmatpush1.msra.mxu0 0.0
        %823 = vmatprep.subr.mxu0 0.0
        %824 = vmatpush1.msra.mxu0 0.0
        %825 = vmatprep.subr.mxu0 0.0
        %826 = vmatpush1.msra.mxu0 0.0
        %827 = vmatprep.subr.mxu0 0.0
        %828 = vmatpush1.msra.mxu0 0.0
        %829 = vmatprep.subr.mxu0 0.0
        %830 = vmatpush1.msra.mxu0 0.0
        %831 = vmatprep.subr.mxu0 0.0
        %832 = vmatpush1.msra.mxu0 0.0
        %833 = vmatprep.subr.mxu0 0.0
        %834 = vmatpush1.msra.mxu0 0.0
        %835 = vmatprep.subr.mxu0 0.0
        %836 = vmatpush1.msra.mxu0 0.0
        %837 = vmatprep.subr.mxu0 0.0
        %838 = vmatpush1.msra.mxu0 0.0
        %839 = vmatprep.subr.mxu0 0.0
        %840 = vmatpush1.msra.mxu0 0.0
        %841 = vmatprep.subr.mxu0 0.0
        %842 = vmatpush1.msra.mxu0 0.0
        %843 = vmatprep.subr.mxu0 0.0
        %844 = vmatpush1.msra.mxu0 0.0
        %845 = vmatprep.subr.mxu0 0.0
        %846 = vmatpush1.msra.mxu0 0.0
        %847 = vmatprep.subr.mxu0 0.0
        %848 = vmatpush1.msra.mxu0 0.0
        %849 = vmatprep.subr.mxu0 0.0
        %850 = vmatpush1.msra.mxu0 0.0
        %851 = vmatprep.subr.mxu0 0.0
        %852 = vmatpush1.msra.mxu0 0.0
        %853 = vmatprep.subr.mxu0 0.0
        %854 = vmatpush1.msra.mxu0 0.0
        %855 = vmatprep.subr.mxu0 0.0
        %856 = vmatpush1.msra.mxu0 0.0
        %857 = vmatprep.subr.mxu0 0.0
        %858 = vmatpush1.msra.mxu0 0.0
        %859 = vmatprep.subr.mxu0 0.0
        %860 = vmatpush1.msra.mxu0 0.0
        %861 = vmatprep.subr.mxu0 0.0
        %862 = vmatpush1.msra.mxu0 0.0
        %863 = vmatprep.subr.mxu0 0.0
        %864 = vmatpush1.msra.mxu0 0.0
        %865 = vmatprep.subr.mxu0 0.0
        %866 = vmatpush1.msra.mxu0 0.0
        %867 = vmatprep.subr.mxu0 0.0
        %868 = vmatpush1.msra.mxu0 0.0
        %869 = vmatprep.subr.mxu0 0.0
        %870 = vmatpush1.msra.mxu0 0.0
        %871 = vmatprep.mubr.f32.mxu0 0.0
        %872 = vmatmul.mubr.f32.gmra.mrb[0].mxu0 %v355
        %v873 = vpop.f32.mrb[0].mxu0
        %v874 = vadd.f32 0.0, %v873
        %v875 = vpop.f32.mrb[0].mxu0
        %876 = vmatprep.mubr.f32.mxu0 0.0
        %877 = vmatmul.mubr.f32.gmra.mrb[0].mxu0 %v358
        %v878 = vpop.f32.mrb[0].mxu0
        %v879 = vadd.f32 0.0, %v878
        %v880 = vpop.f32.mrb[0].mxu0
        %881 = vmatprep.mubr.f32.mxu0 0.0
        %882 = vmatmul.mubr.f32.gmra.mrb[0].mxu0 %v361
        %v883 = vpop.f32.mrb[0].mxu0
        %v884 = vadd.f32 0.0, %v883
        %v885 = vpop.f32.mrb[0].mxu0
        %886 = vmatprep.mubr.f32.mxu0 0.0
        %887 = vmatmul.mubr.f32.gmra.mrb[0].mxu0 %v364
        %v888 = vpop.f32.mrb[0].mxu0
        %v889 = vadd.f32 0.0, %v888
        %v890 = vpop.f32.mrb[0].mxu0
        %891 = vmatprep.mubr.f32.mxu0 0.0
        %892 = vmatmul.mubr.f32.gmra.mrb[0].mxu0 %v367
        %v893 = vpop.f32.mrb[0].mxu0
        %v894 = vadd.f32 0.0, %v893
        %v895 = vpop.f32.mrb[0].mxu0
        %896 = vmatprep.mubr.f32.mxu0 0.0
        %897 = vmatmul.mubr.f32.gmra.mrb[0].mxu0 %v370
        %v898 = vpop.f32.mrb[0].mxu0
        %v899 = vadd.f32 0.0, %v898
        %v900 = vpop.f32.mrb[0].mxu0
        %901 = vmatprep.mubr.f32.mxu0 0.0
        %902 = vmatmul.mubr.f32.gmra.mrb[0].mxu0 %v373
        %v903 = vpop.f32.mrb[0].mxu0
        %v904 = vadd.f32 0.0, %v903
        %v905 = vpop.f32.mrb[0].mxu0
        %906 = vmatprep.mubr.f32.mxu0 0.0
        %907 = vmatmul.mubr.f32.gmra.mrb[0].mxu0 %v376
        %v908 = vpop.f32.mrb[0].mxu0
        %v909 = vadd.f32 0.0, %v908
        %v910 = vpop.f32.mrb[0].mxu0
        %911 = vmatprep.mubr.f32.mxu0 0.0
        %912 = vmatmul.mubr.f32.gmra.mrb[0].mxu0 %v379
        %v913 = vpop.f32.mrb[0].mxu0
        %v914 = vadd.f32 0.0, %v913
        %v915 = vpop.f32.mrb[0].mxu0
        %916 = vmatprep.mubr.f32.mxu0 0.0
        %917 = vmatmul.mubr.f32.gmra.mrb[0].mxu0 %v382
        %v918 = vpop.f32.mrb[0].mxu0
        %v919 = vadd.f32 0.0, %v918
        %v920 = vpop.f32.mrb[0].mxu0
        %921 = vmatprep.mubr.f32.mxu0 0.0
        %922 = vmatmul.mubr.f32.gmra.mrb[0].mxu0 %v385
        %v923 = vpop.f32.mrb[0].mxu0
        %v924 = vadd.f32 0.0, %v923
        %v925 = vpop.f32.mrb[0].mxu0
        %926 = vmatprep.mubr.f32.mxu0 0.0
        %927 = vmatmul.mubr.f32.gmra.mrb[0].mxu0 %v388
        %v928 = vpop.f32.mrb[0].mxu0
        %v929 = vadd.f32 0.0, %v928
        %v930 = vpop.f32.mrb[0].mxu0
        %931 = vdwg.mxu0
        %934 = vrot.lane.b32.xlu0 %v874, 8
        %v935 = vpop.permute.xlu0 %934
        %936 = vrot.lane.b32.xlu0 %v879, 8
        %v937 = vpop.permute.xlu0 %936
        %942 = vrot.lane.b32.xlu0 %v884, 80
        %v943 = vpop.permute.xlu0 %942
        %944 = vrot.lane.b32.xlu0 %v889, 80
        %v945 = vpop.permute.xlu0 %944
        %950 = vrot.lane.b32.xlu0 %v894, 24
        %v951 = vpop.permute.xlu0 %950
        %952 = vrot.lane.b32.xlu0 %v899, 24
        %v953 = vpop.permute.xlu0 %952
        %958 = vrot.lane.b32.xlu0 %v904, 96
        %v959 = vpop.permute.xlu0 %958
        %960 = vrot.lane.b32.xlu0 %v909, 96
        %v961 = vpop.permute.xlu0 %960
        %966 = vrot.lane.b32.xlu0 %v914, 40
        %v967 = vpop.permute.xlu0 %966
        %968 = vrot.lane.b32.xlu0 %v919, 40
        %v969 = vpop.permute.xlu0 %968
        %974 = vrot.lane.b32.xlu0 %v924, 112
        %v975 = vpop.permute.xlu0 %974
        %976 = vrot.lane.b32.xlu0 %v929, 112
        %v977 = vpop.permute.xlu0 %976
        %vm980 = vcmask 64512
        %v981 = vsel %vm980, %v457, %v935
        %v982 = vsel %vm980, %v462, %v937
        %v983 = vsel %vm555, %v981, %v518
        %v984 = vsel %vm555, %v982, %v520
        %vm985 = vcmask 654336
        %v986 = vsel %vm985, %v983, %v943
        %v987 = vsel %vm985, %v984, %v945
        %v988 = vsel %vm353, %v943, %v526
        %v989 = vsel %vm353, %v945, %v528
        %vm990 = vcmask 195584
        %v991 = vsel %vm990, %v988, %v951
        %v992 = vsel %vm990, %v989, %v953
        %v993 = vsel %vm560, %v991, %v534
        %v994 = vsel %vm560, %v992, %v536
        %vm995 = vcmask 785408
        %v996 = vsel %vm995, %v993, %v959
        %v997 = vsel %vm995, %v994, %v961
        %v998 = vsel %vm563, %v959, %v542
        %v999 = vsel %vm563, %v961, %v544
        %vm1000 = vcmask 326656
        %v1001 = vsel %vm1000, %v998, %v967
        %v1002 = vsel %vm1000, %v999, %v969
        %v1003 = vsel %vm566, %v1001, %v550
        %v1004 = vsel %vm566, %v1002, %v552
        %vm1005 = vcmask 916480
        %v1006 = vsel %vm1005, %v1003, %v975
        %v1007 = vsel %vm1005, %v1004, %v977
        %v1008 = vld [vmem:[#allocation10] sm:$0xff]
        %v1009 = vld [vmem:[#allocation10 + $0x8] sm:$0xff]
        %v1010 = vld [vmem:[#allocation10 + $0x10] sm:$0xff]
        %v1011 = vld [vmem:[#allocation10 + $0x18] sm:$0xff]
        %v1012 = vld [vmem:[#allocation10 + $0x20] sm:$0xff]
        %v1013 = vld [vmem:[#allocation10 + $0x28] sm:$0xff]
        %v1014 = vld [vmem:[#allocation10 + $0x30] sm:$0xff]
        %v1015 = vld [vmem:[#allocation10 + $0x38] sm:$0xff]
        %v1016 = vld [vmem:[#allocation10 + $0x40] sm:$0xff]
        %v1017 = vld [vmem:[#allocation10 + $0x48] sm:$0xff]
        %v1018 = vld [vmem:[#allocation10 + $0x50] sm:$0xff]
        %v1019 = vld [vmem:[#allocation10 + $0x58] sm:$0xff]
        %v1020 = vld [vmem:[#allocation10 + $0x60] sm:$0xff]
        %v1021 = vld [vmem:[#allocation10 + $0x68] sm:$0xff]
        %v1022 = vld [vmem:[#allocation10 + $0x70] sm:$0xff]
        %v1023 = vld [vmem:[#allocation10 + $0x78] sm:$0xff]
        %v1024 = vld [vmem:[#allocation10 + $0x80] sm:$0xff]
        %v1025 = vld [vmem:[#allocation10 + $0x88] sm:$0xff]
        %v1026 = vld [vmem:[#allocation10 + $0x90] sm:$0xff]
        %v1027 = vld [vmem:[#allocation10 + $0x98] sm:$0xff]
        %v1028 = vld [vmem:[#allocation10 + $0xa0] sm:$0xff]
        %v1029 = vld [vmem:[#allocation10 + $0xa8] sm:$0xff]
        %v1030 = vld [vmem:[#allocation10 + $0xb0] sm:$0xff]
        %v1031 = vld [vmem:[#allocation10 + $0xb8] sm:$0xff]
        %v1032 = vld [vmem:[#allocation10 + $0xc0] sm:$0xff]
        %v1033 = vld [vmem:[#allocation10 + $0xc8] sm:$0xff]
        %v1034 = vld [vmem:[#allocation10 + $0xd0] sm:$0xff]
        %v1035 = vld [vmem:[#allocation10 + $0xd8] sm:$0xff]
        %v1036 = vld [vmem:[#allocation10 + $0xe0] sm:$0xff]
        %v1037 = vld [vmem:[#allocation10 + $0xe8] sm:$0xff]
        %v1038 = vld [vmem:[#allocation10 + $0xf0] sm:$0xff]
        %v1039 = vld [vmem:[#allocation10 + $0xf8] sm:$0xff]
        %v1040 = vld [vmem:[#allocation10 + $0x100] sm:$0xff]
        %v1041 = vld [vmem:[#allocation10 + $0x108] sm:$0xff]
        %v1042 = vld [vmem:[#allocation10 + $0x110] sm:$0xff]
        %v1043 = vld [vmem:[#allocation10 + $0x118] sm:$0xff]
        %v1044 = vld [vmem:[#allocation10 + $0x120] sm:$0xff]
        %v1045 = vld [vmem:[#allocation10 + $0x128] sm:$0xff]
        %v1046 = vld [vmem:[#allocation10 + $0x130] sm:$0xff]
        %v1047 = vld [vmem:[#allocation10 + $0x138] sm:$0xff]
        %v1048 = vld [vmem:[#allocation10 + $0x140] sm:$0xff]
        %v1049 = vld [vmem:[#allocation10 + $0x148] sm:$0xff]
        %v1050 = vld [vmem:[#allocation10 + $0x150] sm:$0xff]
        %v1051 = vld [vmem:[#allocation10 + $0x158] sm:$0xff]
        %v1052 = vld [vmem:[#allocation10 + $0x160] sm:$0xff]
        %v1053 = vld [vmem:[#allocation10 + $0x168] sm:$0xff]
        %v1054 = vld [vmem:[#allocation10 + $0x170] sm:$0xff]
        %v1055 = vld [vmem:[#allocation10 + $0x178] sm:$0xff]
        %v1056 = vld [vmem:[#allocation10 + $0x180] sm:$0xff]
        %v1057 = vld [vmem:[#allocation10 + $0x188] sm:$0xff]
        %v1058 = vld [vmem:[#allocation10 + $0x190] sm:$0xff]
        %v1059 = vld [vmem:[#allocation10 + $0x198] sm:$0xff]
        %v1060 = vld [vmem:[#allocation10 + $0x1a0] sm:$0xff]
        %v1061 = vld [vmem:[#allocation10 + $0x1a8] sm:$0xff]
        %v1062 = vld [vmem:[#allocation11] sm:$0x1]
        %v1064 = vlaneseq
        %v1065 = vshrl.u32 %v1064, 7
        %v1066 = vsub.s32 0, %v1065
        %v1067 = vrot.slane %v1062, %v1066
        %v1069 = vsel %vm630, %v975, 0
        %v1071 = vsel %vm630, %v977, 0
        %1073 = vmatprep.subr.mxu0 0.0
        %1074 = vmatpush1.msra.mxu0 %v1008
        %1075 = vmatprep.subr.mxu0 0.0
        %1076 = vmatpush1.msra.mxu0 %v1009
        %1077 = vmatprep.subr.mxu0 0.0
        %1078 = vmatpush1.msra.mxu0 %v1010
        %1079 = vmatprep.subr.mxu0 0.0
        %1080 = vmatpush1.msra.mxu0 %v1011
        %1081 = vmatprep.subr.mxu0 0.0
        %1082 = vmatpush1.msra.mxu0 %v1012
        %1083 = vmatprep.subr.mxu0 0.0
        %1084 = vmatpush1.msra.mxu0 %v1013
        %1085 = vmatprep.subr.mxu0 0.0
        %1086 = vmatpush1.msra.mxu0 %v1014
        %1087 = vmatprep.subr.mxu0 0.0
        %1088 = vmatpush1.msra.mxu0 %v1015
        %1089 = vmatprep.subr.mxu0 0.0
        %1090 = vmatpush1.msra.mxu0 %v1016
        %1091 = vmatprep.subr.mxu0 0.0
        %1092 = vmatpush1.msra.mxu0 %v1017
        %1093 = vmatprep.subr.mxu0 0.0
        %1094 = vmatpush1.msra.mxu0 %v1018
        %1095 = vmatprep.subr.mxu0 0.0
        %1096 = vmatpush1.msra.mxu0 %v1019
        %1097 = vmatprep.subr.mxu0 0.0
        %1098 = vmatpush1.msra.mxu0 %v1020
        %1099 = vmatprep.subr.mxu0 0.0
        %1100 = vmatpush1.msra.mxu0 %v1021
        %1101 = vmatprep.subr.mxu0 0.0
        %1102 = vmatpush1.msra.mxu0 %v1022
        %1103 = vmatprep.subr.mxu0 0.0
        %1104 = vmatpush1.msra.mxu0 %v1023
        %1105 = vmatprep.subr.mxu0 0.0
        %1106 = vmatpush1.msra.mxu0 %v1024
        %1107 = vmatprep.subr.mxu0 0.0
        %1108 = vmatpush1.msra.mxu0 %v1025
        %1109 = vmatprep.subr.mxu0 0.0
        %1110 = vmatpush1.msra.mxu0 %v1026
        %1111 = vmatprep.subr.mxu0 0.0
        %1112 = vmatpush1.msra.mxu0 %v1027
        %1113 = vmatprep.subr.mxu0 0.0
        %1114 = vmatpush1.msra.mxu0 %v1028
        %1115 = vmatprep.subr.mxu0 0.0
        %1116 = vmatpush1.msra.mxu0 %v1029
        %1117 = vmatprep.subr.mxu0 0.0
        %1118 = vmatpush1.msra.mxu0 %v1030
        %1119 = vmatprep.subr.mxu0 0.0
        %1120 = vmatpush1.msra.mxu0 %v1031
        %1121 = vmatprep.subr.mxu0 0.0
        %1122 = vmatpush1.msra.mxu0 %v1032
        %1123 = vmatprep.subr.mxu0 0.0
        %1124 = vmatpush1.msra.mxu0 %v1033
        %1125 = vmatprep.subr.mxu0 0.0
        %1126 = vmatpush1.msra.mxu0 %v1034
        %1127 = vmatprep.subr.mxu0 0.0
        %1128 = vmatpush1.msra.mxu0 %v1035
        %1129 = vmatprep.subr.mxu0 0.0
        %1130 = vmatpush1.msra.mxu0 %v1036
        %1131 = vmatprep.subr.mxu0 0.0
        %1132 = vmatpush1.msra.mxu0 %v1037
        %1133 = vmatprep.subr.mxu0 0.0
        %1134 = vmatpush1.msra.mxu0 %v1038
        %1135 = vmatprep.subr.mxu0 0.0
        %1136 = vmatpush1.msra.mxu0 %v1039
        %1137 = vmatprep.mubr.f32.mxu0 %v996
        %1138 = vmatmul.mubr.f32.gmra.mrb[0].mxu0 %v986
        %v1139 = vpop.f32.mrb[0].mxu0
        %v1140 = vadd.f32 %v1067, %v1139
        %v1141 = vpop.f32.mrb[0].mxu0
        %1142 = vmatprep.mubr.f32.mxu0 %v997
        %1143 = vmatmul.mubr.f32.gmra.mrb[0].mxu0 %v987
        %v1144 = vpop.f32.mrb[0].mxu0
        %v1145 = vadd.f32 %v1067, %v1144
        %v1146 = vpop.f32.mrb[0].mxu0
        %1147 = vdwg.mxu0
        %1148 = vmatprep.subr.mxu0 0.0
        %1149 = vmatpush1.msra.mxu0 %v1040
        %1150 = vmatprep.subr.mxu0 0.0
        %1151 = vmatpush1.msra.mxu0 %v1041
        %1152 = vmatprep.subr.mxu0 0.0
        %1153 = vmatpush1.msra.mxu0 %v1042
        %1154 = vmatprep.subr.mxu0 0.0
        %1155 = vmatpush1.msra.mxu0 %v1043
        %1156 = vmatprep.subr.mxu0 0.0
        %1157 = vmatpush1.msra.mxu0 %v1044
        %1158 = vmatprep.subr.mxu0 0.0
        %1159 = vmatpush1.msra.mxu0 %v1045
        %1160 = vmatprep.subr.mxu0 0.0
        %1161 = vmatpush1.msra.mxu0 %v1046
        %1162 = vmatprep.subr.mxu0 0.0
        %1163 = vmatpush1.msra.mxu0 %v1047
        %1164 = vmatprep.subr.mxu0 0.0
        %1165 = vmatpush1.msra.mxu0 %v1048
        %1166 = vmatprep.subr.mxu0 0.0
        %1167 = vmatpush1.msra.mxu0 %v1049
        %1168 = vmatprep.subr.mxu0 0.0
        %1169 = vmatpush1.msra.mxu0 %v1050
        %1170 = vmatprep.subr.mxu0 0.0
        %1171 = vmatpush1.msra.mxu0 %v1051
        %1172 = vmatprep.subr.mxu0 0.0
        %1173 = vmatpush1.msra.mxu0 %v1052
        %1174 = vmatprep.subr.mxu0 0.0
        %1175 = vmatpush1.msra.mxu0 %v1053
        %1176 = vmatprep.subr.mxu0 0.0
        %1177 = vmatpush1.msra.mxu0 %v1054
        %1178 = vmatprep.subr.mxu0 0.0
        %1179 = vmatpush1.msra.mxu0 %v1055
        %1180 = vmatprep.subr.mxu0 0.0
        %1181 = vmatpush1.msra.mxu0 %v1056
        %1182 = vmatprep.subr.mxu0 0.0
        %1183 = vmatpush1.msra.mxu0 %v1057
        %1184 = vmatprep.subr.mxu0 0.0
        %1185 = vmatpush1.msra.mxu0 %v1058
        %1186 = vmatprep.subr.mxu0 0.0
        %1187 = vmatpush1.msra.mxu0 %v1059
        %1188 = vmatprep.subr.mxu0 0.0
        %1189 = vmatpush1.msra.mxu0 %v1060
        %1190 = vmatprep.subr.mxu0 0.0
        %1191 = vmatpush1.msra.mxu0 %v1061
        %1192 = vmatprep.subr.mxu0 0.0
        %1193 = vmatpush1.msra.mxu0 0.0
        %1194 = vmatprep.subr.mxu0 0.0
        %1195 = vmatpush1.msra.mxu0 0.0
        %1196 = vmatprep.subr.mxu0 0.0
        %1197 = vmatpush1.msra.mxu0 0.0
        %1198 = vmatprep.subr.mxu0 0.0
        %1199 = vmatpush1.msra.mxu0 0.0
        %1200 = vmatprep.subr.mxu0 0.0
        %1201 = vmatpush1.msra.mxu0 0.0
        %1202 = vmatprep.subr.mxu0 0.0
        %1203 = vmatpush1.msra.mxu0 0.0
        %1204 = vmatprep.subr.mxu0 0.0
        %1205 = vmatpush1.msra.mxu0 0.0
        %1206 = vmatprep.subr.mxu0 0.0
        %1207 = vmatpush1.msra.mxu0 0.0
        %1208 = vmatprep.subr.mxu0 0.0
        %1209 = vmatpush1.msra.mxu0 0.0
        %1210 = vmatprep.subr.mxu0 0.0
        %1211 = vmatpush1.msra.mxu0 0.0
        %1212 = vmatprep.mubr.f32.mxu0 %v1069
        %1213 = vmatmul.mubr.f32.gmra.mrb[0].mxu0 %v1006
        %v1214 = vpop.f32.mrb[0].mxu0
        %v1215 = vadd.f32 %v1140, %v1214
        %v1216 = vpop.f32.mrb[0].mxu0
        %1217 = vmatprep.mubr.f32.mxu0 %v1071
        %1218 = vmatmul.mubr.f32.gmra.mrb[0].mxu0 %v1007
        %v1219 = vpop.f32.mrb[0].mxu0
        %v1220 = vadd.f32 %v1145, %v1219
        %v1221 = vpop.f32.mrb[0].mxu0
        %1222 = vdwg.mxu0
        %v1223 = vtanh.pop %v1215
        %v1224 = vtanh.pop %v1220
        %1225 = vrot.lane.b32.xlu0 %v339, 56
        %v1226 = vpop.permute.xlu0 %1225
        %1227 = vrot.lane.b32.xlu0 %v340, 56
        %v1228 = vpop.permute.xlu0 %1227
        %v1231 = vmul.f32 %v794, %v1226
        %v1232 = vmul.f32 %v796, %v1228
        %v1233 = vsub.f32 1.0, %v794
        %v1234 = vsub.f32 1.0, %v796
        %1237 = vrot.lane.b32.xlu0 %v1223, 64
        %v1238 = vpop.permute.xlu0 %1237
        %1239 = vrot.lane.b32.xlu0 %v1224, 64
        %v1240 = vpop.permute.xlu0 %1239
        %v1243 = vmul.f32 %v1233, %v1238
        %v1244 = vmul.f32 %v1234, %v1240
        %v1245 = vadd.f32 %v1231, %v1243
        %v1246 = vadd.f32 %v1232, %v1244
        %1249 = vrot.lane.b32.xlu0 %v1245, 64
        %v1250 = vpop.permute.xlu0 %1249
        %1251 = vrot.lane.b32.xlu0 %v1246, 64
        %v1252 = vpop.permute.xlu0 %1251
        %vm1255 = vcmask 523264
        %1256 = vst.msk [vmem:[%s338] sm:$0xff] %vm1255, %v1250
        %1257 = vst.msk [vmem:[%s338 + $0x8] sm:$0xff] %vm1255, %v1252
        %s1258 = sand.u32 %s165, 1
        %s1259 = scalar_lea.sflag [#allocation4], %s1258
        %s1260 = sand.u32 %s165, 1
        %s1261 = smul.addr %s1260, 16
        %s1262 = scalar_lea.vmem [#allocation13], %s1261
        // Predicated region
        $region69: #{_agcrn_forward.1} parent=43 // pred_check
          %p1263 = pneg %p175
        $region70: #{_agcrn_forward.1} parent=43 // pred_check_branch
          %1265 = sbr.rel (%p1263) target = $region72
        $region71: #{_agcrn_forward.1} parent=43 // pred_region
          %s1267 = ssub.s32 256, 256
          %1268 = vsyncadd %s1259, %s1267
          %s1269 = smul.addr %s26, 2
          %s1270 = smul.addr %s1269, 128
          %s1271 = scalar_lea.hbm %s6, %s1270
          %s1272 = sshll.u32 %s1262, 4
          %s1273 = int_to_ptr.vmem [resolvable:$true] %s1272
          %1278 = dma.vmem_to_hbm [thread:$0]  %s1273, 256, %s1271, %s1259, 128, 128, 8
        $region72: #{_agcrn_forward.1} parent=43 // pred_fallthru
          _
      $region44: #{_agcrn_forward.1} parent=5 // pred_fallthru
        _
      %p1279 = scmp.le.s32.totalorder 2, %s21
      // Predicated region
      $region73: #{_agcrn_forward.1} parent=5 // pred_check
        %p1280 = pneg %p1279
      $region74: #{_agcrn_forward.1} parent=5 // pred_check_branch
        %1282 = sbr.rel (%p1280) target = $region76
      $region75: #{_agcrn_forward.1} parent=5 // pred_region
        %s1283 = ssub.s32 %s21, 2
        // Predicated region
        $region77: #{_agcrn_forward.1} parent=75 // pred_check
          %p1284 = pneg %p181
        $region78: #{_agcrn_forward.1} parent=75 // pred_check_branch
          %1286 = sbr.rel (%p1284) target = $region80
        $region79: #{_agcrn_forward.1} parent=75 // pred_region
          %s1287 = sand.u32 %s166, 1
          %s1288 = scalar_lea.sflag [#allocation4], %s1287
          %s1289 = sand.u32 %s166, 1
          %s1290 = smul.addr %s1289, 16
          %s1291 = scalar_lea.vmem [#allocation13], %s1290
          %1292 = dma.done %s1288, 256
        $region80: #{_agcrn_forward.1} parent=75 // pred_fallthru
          _
      $region76: #{_agcrn_forward.1} parent=5 // pred_fallthru
        _
    $region6: #{_agcrn_forward.1} parent=1 // loop_footer
      %s25 = sadd.s32 1, %s21
    $region7: #{_agcrn_forward.1} parent=1 // loop_footer_branch
      %20 = sbr.rel target = $region3
    $region8: #{_agcrn_forward.1} parent=1 // loop_exit
      _
    %1293 = vsyncpa [#allocation3], 1
    %s1294 = scalar_lea.sflag [#allocation3], 1
    %1295 = vsyncpa %s1294, 1
    %1296 = vsyncpa [#allocation6], 1
    %1297 = vsyncpa [#allocation9], 1
    %1298 = vsyncpa [#allocation12], 1
    %1299 = vsyncpa [#allocation4], 1
    %s1300 = scalar_lea.sflag [#allocation4], 1
    %1301 = vsyncpa %s1300, 1

// kernel: tile.29
$region0: #{tile.29}
  %s0 = inlined_call_operand.vmem [shape: f32[2,32], index: 0, kind: input, shape index: {}]
  %s1 = inlined_call_operand.hbm [shape: f32[1,64], index: 1, kind: output, shape index: {}]
  $region1: #{tile.29} parent=0
    #allocation0 [shape = 'u8[512]{0}', space=vmem, size = 0x400, scoped, tag = 'operand span for operand 1']
    #allocation1 [shape = 's32[1]{0}', space=sflag, size = 0x4, scoped, tag = 'scoped memory for tile.29']
    #allocation2 [shape = 'u8[4096]{0}', space=vmem, size = 0x1000, scoped, tag = 'scoped mem for output reshape']
    #allocation3 [shape = 'u8[4096]{0}', space=vmem, size = 0x1000, scoped, tag = 'scoped mem for input reshape']
    %2 = vsyncpa [#allocation1], 0
    %s4 = sshllo.u32 0, 2
    %v5 = vld [vmem:[%s0] sm:%s4]
    %6 = vst [vmem:[#allocation3] sm:%s4] %v5
    %v7 = vld [vmem:[#allocation3] sm:$0x1]
    %vm8 = vcmask 261120
    %9 = vst.msk [vmem:[#allocation2] sm:$0x1] %vm8, %v7
    %s10 = scalar_lea.vmem [#allocation3], 1
    %v11 = vld [vmem:[%s10] sm:$0x1]
    %12 = vrot.lane.b32.xlu0 %v11, 32
    %v13 = vpop.permute.xlu0 %12
    %vm14 = vcmask 523520
    %15 = vst.msk [vmem:[#allocation2] sm:$0x1] %vm14, %v13
    %s17 = sshllo.u32 0, 1
    %v19 = vld [vmem:[#allocation2] sm:%s17]
    %s20 = sshllo.u32 0, 1
    %21 = vst [vmem:[#allocation0] sm:%s20] %v19
    %s23 = ssub.s32 16, 16
    %24 = vsyncadd [#allocation1], %s23
    %s26 = sshll.u32 [#allocation0], 4
    %s27 = int_to_ptr.vmem [resolvable:$true] %s26
    %29 = dma.vmem_to_hbm [thread:$0]  %s27, 16, %s1, [#allocation1]
    %30 = dma.done [#allocation1], 16
    %31 = vsyncpa [#allocation1], 1

// kernel: tile.28
$region0: #{tile.28}
  #allocation0 [shape = 's32[1]{0}', space=sflag, size = 0x4, scoped, tag = 'scoped memory for tile.28']
  %s0 = inlined_call_operand.vmem [shape: f32[32], index: 0, kind: input, shape index: {}]
  %s1 = inlined_call_operand.vmem [shape: f32[2,32], index: 1, kind: output, shape index: {}]
  // Predicated region
  $region2: #{tile.28} parent=0 // pred_check
    _
  $region3: #{tile.28} parent=0 // pred_check_branch
    %3 = sbr.rel (0) target = $region5
  $region4: #{tile.28} parent=0 // pred_region
    _
  $region5: #{tile.28} parent=0 // pred_fallthru
    _
  %v4 = vld [vmem:[%s0] ss:$0 sm:$0xff]
  %5 = vst [vmem:[%s1] sm:$0x3] %v4

// kernel: tile.19
$region0: #{tile.19}
  %s0 = inlined_call_operand.vmem [shape: f32[2,32], index: 0, kind: input, shape index: {}]
  %s1 = inlined_call_operand.vmem [shape: f32[64], index: 1, kind: output, shape index: {}]
  $region1: #{tile.19} parent=0
    #allocation0 [shape = 'u8[4096]{0}', space=vmem, size = 0x1000, scoped, tag = 'scoped mem for output reshape']
    #allocation1 [shape = 'u8[4096]{0}', space=vmem, size = 0x1000, scoped, tag = 'scoped mem for input reshape']
    %s3 = sshllo.u32 0, 2
    %v4 = vld [vmem:[%s0] sm:%s3]
    %5 = vst [vmem:[#allocation1] sm:%s3] %v4
    %v6 = vld [vmem:[#allocation1] sm:$0x1]
    %vm7 = vcmask 261120
    %8 = vst.msk [vmem:[#allocation0] sm:$0x1] %vm7, %v6
    %s9 = scalar_lea.vmem [#allocation1], 1
    %v10 = vld [vmem:[%s9] sm:$0x1]
    %11 = vrot.lane.b32.xlu0 %v10, 32
    %v12 = vpop.permute.xlu0 %11
    %vm13 = vcmask 523520
    %14 = vst.msk [vmem:[#allocation0] sm:$0x1] %vm13, %v12
    %s16 = sshllo.u32 0, 1
    %v18 = vld [vmem:[#allocation0] sm:%s16]
    %s19 = sshllo.u32 0, 1
    %20 = vst [vmem:[%s1] sm:%s19] %v18

// kernel: _agcrn_forward.1
$region0: #{_agcrn_forward.1}
  #allocation0 [shape = 'u32[]', space=smem, size = 0x4, offset = 0x4, fixed_abs, tag = 'smem constant byte address 0x4 - core index']
  #allocation1 [shape = 'u32[144,128]{1,0:T(1,128)}', space=vmem, size = 0x12000, scoped, tag = 'internal scratch']
  %s0 = inlined_call_operand.hbm [shape: f32[2,16,72], index: 0, kind: input, shape index: {}]
  %s1 = inlined_call_operand.hbm [shape: f32[96,16], index: 1, kind: input, shape index: {}]
  %s2 = inlined_call_operand.hbm [shape: f32[432,128], index: 2, kind: input, shape index: {}]
  %s3 = inlined_call_operand.hbm [shape: f32[1,128], index: 3, kind: input, shape index: {}]
  %s4 = inlined_call_operand.hbm [shape: f32[432,64], index: 4, kind: input, shape index: {}]
  %s5 = inlined_call_operand.hbm [shape: f32[1,64], index: 5, kind: input, shape index: {}]
  %s6 = inlined_call_operand.hbm [shape: f32[2,16,64], index: 6, kind: output, shape index: {}]
  %s7 = sld [smem:[#allocation0]]
  $region81: #{_agcrn_forward.1} parent=0
    _
  %s9 = ssub.s32 1, %s7
  %s10 = scalar_select 0, %s9, %s7
  $region1: #{_agcrn_forward.1} parent=0
    #allocation2 [shape = 'u8[16384]{0}', space=vmem, size = 0x4000, scoped, tag = 'input window, operand 0']
    #allocation3 [shape = 's32[2]{0}', space=sflag, size = 0x8, scoped, tag = 'scoped memory for _agcrn_forward.1']
    #allocation4 [shape = 's32[2]{0}', space=sflag, size = 0x8, scoped, tag = 'scoped memory for _agcrn_forward.1']
    #allocation5 [shape = 'u8[49152]{0}', space=vmem, size = 0xc000, scoped, tag = 'input window, operand 1, single buffered']
    #allocation6 [shape = 's32[1]{0}', space=sflag, size = 0x4, scoped, tag = 'scoped memory for _agcrn_forward.1']
    #allocation7 [shape = 'u8[221184]{0}', space=vmem, size = 0x36000, scoped, tag = 'input window, operand 2, single buffered']
    #allocation8 [shape = 'u8[512]{0}', space=vmem, size = 0x400, scoped, tag = 'input window, operand 3, single buffered']
    #allocation9 [shape = 's32[1]{0}', space=sflag, size = 0x4, scoped, tag = 'scoped memory for _agcrn_forward.1']
    #allocation10 [shape = 'u8[221184]{0}', space=vmem, size = 0x36000, scoped, tag = 'input window, operand 4, single buffered']
    #allocation11 [shape = 'u8[512]{0}', space=vmem, size = 0x400, scoped, tag = 'input window, operand 5, single buffered']
    #allocation12 [shape = 's32[1]{0}', space=sflag, size = 0x4, scoped, tag = 'scoped memory for _agcrn_forward.1']
    #allocation13 [shape = 'u8[16384]{0}', space=vmem, size = 0x4000, scoped, tag = 'output window, operand 0']
    %11 = vsyncpa [#allocation3], 0
    %s12 = scalar_lea.sflag [#allocation3], 1
    %13 = vsyncpa %s12, 0
    %14 = vsyncpa [#allocation6], 0
    %15 = vsyncpa [#allocation9], 0
    %16 = vsyncpa [#allocation12], 0
    %17 = vsyncpa [#allocation4], 0
    %s18 = scalar_lea.sflag [#allocation4], 1
    %19 = vsyncpa %s18, 0
    loop: start=0, step=1, limit=4
    $region2: #{_agcrn_forward.1} parent=1 // loop_pre_header
      _
    $region3: #{_agcrn_forward.1} parent=1 // loop_header
      %s21 = sphi 0, %s25
      %p22 = scmp.ge.s32.totalorder %s21, 4
      %s31 = sphi 0, %s33
      %s34 = sphi 0, %s31
      %s35 = sphi 0, %s34
      %s51 = sphi 0, %s35
      %s55 = sphi 0, %s55
      %s57 = sphi 0, %s55
      %s58 = sphi 0, %s57
      %s72 = sphi 0, %s58
      %s76 = sphi 0, %s76
      %s78 = sphi 0, %s76
      %s79 = sphi 0, %s78
      %s93 = sphi 0, %s79
      %s97 = sphi 0, %s97
      %s99 = sphi 0, %s97
      %s100 = sphi 0, %s99
      %s114 = sphi 0, %s100
      %s118 = sphi 0, %s118
      %s120 = sphi 0, %s118
      %s121 = sphi 0, %s120
      %s135 = sphi 0, %s121
      %s139 = sphi 0, %s139
      %s141 = sphi 0, %s139
      %s142 = sphi 0, %s141
      %s156 = sphi 0, %s142
      %s162 = sphi 0, %s164
      %s165 = sphi 0, %s162
      %s166 = sphi 0, %s165
      %s182 = sphi 0, %s166
    $region4: #{_agcrn_forward.1} parent=1 // loop_header_branch
      %24 = sbr.rel (%p22) target = $region8
    $region5: #{_agcrn_forward.1} parent=1 // loop_body
      %s26 = ssub.s32 %s21, 1
      %s27 = ssub.s32 %s21, 2
      %s28 = sadd.s32 %s21, 1
      %s29 = ssub.s32 %s21, %s28
      %p30 = scmp.eq.s32.totalorder %s29, 0
      %s32 = sadd.s32 %s31, 1
      %s33 = scalar_select %p30, %s31, %s32
      %p36 = pneg %p30
      %p37 = scmp.eq.s32.totalorder %s21, 1
      %p38 = por %p36, %p37
      %p39 = scmp.ne.s32.totalorder %s31, %s34
      %p40 = scmp.eq.s32.totalorder %s21, 0
      %p41 = por %p39, %p40
      %p42 = scmp.ne.s32.totalorder %s31, %s34
      %p43 = scmp.eq.s32.totalorder %s26, 1
      %p44 = por %p42, %p43
      %p45 = scmp.ne.s32.totalorder %s34, %s35
      %p46 = scmp.eq.s32.totalorder %s26, 0
      %p47 = por %p45, %p46
      %p48 = scmp.ne.s32.totalorder %s34, %s35
      %p49 = scmp.eq.s32.totalorder %s27, 1
      %p50 = por %p48, %p49
      %p52 = scmp.ne.s32.totalorder %s35, %s51
      %p53 = scmp.eq.s32.totalorder %s27, 0
      %p54 = por %p52, %p53
      %s56 = sadd.s32 %s55, 1
      %p59 = scmp.eq.s32.totalorder %s21, 1
      %p60 = scmp.ne.s32.totalorder %s55, %s57
      %p61 = scmp.eq.s32.totalorder %s21, 0
      %p62 = por %p60, %p61
      %p63 = scmp.ne.s32.totalorder %s55, %s57
      %p64 = scmp.eq.s32.totalorder %s26, 1
      %p65 = por %p63, %p64
      %p66 = scmp.ne.s32.totalorder %s57, %s58
      %p67 = scmp.eq.s32.totalorder %s26, 0
      %p68 = por %p66, %p67
      %p69 = scmp.ne.s32.totalorder %s57, %s58
      %p70 = scmp.eq.s32.totalorder %s27, 1
      %p71 = por %p69, %p70
      %p73 = scmp.ne.s32.totalorder %s58, %s72
      %p74 = scmp.eq.s32.totalorder %s27, 0
      %p75 = por %p73, %p74
      %s77 = sadd.s32 %s76, 1
      %p80 = scmp.eq.s32.totalorder %s21, 1
      %p81 = scmp.ne.s32.totalorder %s76, %s78
      %p82 = scmp.eq.s32.totalorder %s21, 0
      %p83 = por %p81, %p82
      %p84 = scmp.ne.s32.totalorder %s76, %s78
      %p85 = scmp.eq.s32.totalorder %s26, 1
      %p86 = por %p84, %p85
      %p87 = scmp.ne.s32.totalorder %s78, %s79
      %p88 = scmp.eq.s32.totalorder %s26, 0
      %p89 = por %p87, %p88
      %p90 = scmp.ne.s32.totalorder %s78, %s79
      %p91 = scmp.eq.s32.totalorder %s27, 1
      %p92 = por %p90, %p91
      %p94 = scmp.ne.s32.totalorder %s79, %s93
      %p95 = scmp.eq.s32.totalorder %s27, 0
      %p96 = por %p94, %p95
      %s98 = sadd.s32 %s97, 1
      %p101 = scmp.eq.s32.totalorder %s21, 1
      %p102 = scmp.ne.s32.totalorder %s97, %s99
      %p103 = scmp.eq.s32.totalorder %s21, 0
      %p104 = por %p102, %p103
      %p105 = scmp.ne.s32.totalorder %s97, %s99
      %p106 = scmp.eq.s32.totalorder %s26, 1
      %p107 = por %p105, %p106
      %p108 = scmp.ne.s32.totalorder %s99, %s100
      %p109 = scmp.eq.s32.totalorder %s26, 0
      %p110 = por %p108, %p109
      %p111 = scmp.ne.s32.totalorder %s99, %s100
      %p112 = scmp.eq.s32.totalorder %s27, 1
      %p113 = por %p111, %p112
      %p115 = scmp.ne.s32.totalorder %s100, %s114
      %p116 = scmp.eq.s32.totalorder %s27, 0
      %p117 = por %p115, %p116
      %s119 = sadd.s32 %s118, 1
      %p122 = scmp.eq.s32.totalorder %s21, 1
      %p123 = scmp.ne.s32.totalorder %s118, %s120
      %p124 = scmp.eq.s32.totalorder %s21, 0
      %p125 = por %p123, %p124
      %p126 = scmp.ne.s32.totalorder %s118, %s120
      %p127 = scmp.eq.s32.totalorder %s26, 1
      %p128 = por %p126, %p127
      %p129 = scmp.ne.s32.totalorder %s120, %s121
      %p130 = scmp.eq.s32.totalorder %s26, 0
      %p131 = por %p129, %p130
      %p132 = scmp.ne.s32.totalorder %s120, %s121
      %p133 = scmp.eq.s32.totalorder %s27, 1
      %p134 = por %p132, %p133
      %p136 = scmp.ne.s32.totalorder %s121, %s135
      %p137 = scmp.eq.s32.totalorder %s27, 0
      %p138 = por %p136, %p137
      %s140 = sadd.s32 %s139, 1
      %p143 = scmp.eq.s32.totalorder %s21, 1
      %p144 = scmp.ne.s32.totalorder %s139, %s141
      %p145 = scmp.eq.s32.totalorder %s21, 0
      %p146 = por %p144, %p145
      %p147 = scmp.ne.s32.totalorder %s139, %s141
      %p148 = scmp.eq.s32.totalorder %s26, 1
      %p149 = por %p147, %p148
      %p150 = scmp.ne.s32.totalorder %s141, %s142
      %p151 = scmp.eq.s32.totalorder %s26, 0
      %p152 = por %p150, %p151
      %p153 = scmp.ne.s32.totalorder %s141, %s142
      %p154 = scmp.eq.s32.totalorder %s27, 1
      %p155 = por %p153, %p154
      %p157 = scmp.ne.s32.totalorder %s142, %s156
      %p158 = scmp.eq.s32.totalorder %s27, 0
      %p159 = por %p157, %p158
      %s160 = ssub.s32 %s21, %s28
      %p161 = scmp.eq.s32.totalorder %s160, 0
      %s163 = sadd.s32 %s162, 1
      %s164 = scalar_select %p161, %s162, %s163
      %p167 = pneg %p161
      %p168 = scmp.eq.s32.totalorder %s21, 1
      %p169 = por %p167, %p168
      %p170 = scmp.ne.s32.totalorder %s162, %s165
      %p171 = scmp.eq.s32.totalorder %s21, 0
      %p172 = por %p170, %p171
      %p173 = scmp.ne.s32.totalorder %s162, %s165
      %p174 = scmp.eq.s32.totalorder %s26, 1
      %p175 = por %p173, %p174
      %p176 = scmp.ne.s32.totalorder %s165, %s166
      %p177 = scmp.eq.s32.totalorder %s26, 0
      %p178 = por %p176, %p177
      %p179 = scmp.ne.s32.totalorder %s165, %s166
      %p180 = scmp.eq.s32.totalorder %s27, 1
      %p181 = por %p179, %p180
      %p183 = scmp.ne.s32.totalorder %s166, %s182
      %p184 = scmp.eq.s32.totalorder %s27, 0
      %p185 = por %p183, %p184
      %p186 = scmp.le.s32.totalorder 1, %s21
      %p187 = scmp.lt.s32.totalorder %s21, 3
      %p188 = pnand %p186, %p187
      %p189 = pneg %p188
      // Predicated region
      $region9: #{_agcrn_forward.1} parent=5 // pred_check
        _
      $region10: #{_agcrn_forward.1} parent=5 // pred_check_branch
        %191 = sbr.rel (%p188) target = $region12
      $region11: #{_agcrn_forward.1} parent=5 // pred_region
        %s192 = ssub.s32 %s21, 1
        // Predicated region
        $region13: #{_agcrn_forward.1} parent=11 // pred_check
          %p193 = pneg %p68
        $region14: #{_agcrn_forward.1} parent=11 // pred_check_branch
          %195 = sbr.rel (%p193) target = $region16
        $region15: #{_agcrn_forward.1} parent=11 // pred_region
          %s197 = ssub.s32 1536, 1536
          %198 = vsyncadd [#allocation6], %s197
          %s199 = sshll.u32 [#allocation5], 4
          %s200 = int_to_ptr.vmem [resolvable:$true] %s199
          %205 = dma.hbm_to_vmem [thread:$0]  %s1, 1536, %s200, [#allocation6], 128, 128, 8
        $region16: #{_agcrn_forward.1} parent=11 // pred_fallthru
          _
        // Predicated region
        $region17: #{_agcrn_forward.1} parent=11 // pred_check
          %p206 = pneg %p89
        $region18: #{_agcrn_forward.1} parent=11 // pred_check_branch
          %208 = sbr.rel (%p206) target = $region20
        $region19: #{_agcrn_forward.1} parent=11 // pred_region
          %s210 = ssub.s32 6912, 6912
          %211 = vsyncadd [#allocation6], %s210
          %s212 = sshll.u32 [#allocation7], 4
          %s213 = int_to_ptr.vmem [resolvable:$true] %s212
          %218 = dma.hbm_to_vmem [thread:$0]  %s2, 6912, %s213, [#allocation6], 128, 128, 8
        $region20: #{_agcrn_forward.1} parent=11 // pred_fallthru
          _
        // Predicated region
        $region21: #{_agcrn_forward.1} parent=11 // pred_check
          %p219 = pneg %p110
        $region22: #{_agcrn_forward.1} parent=11 // pred_check_branch
          %221 = sbr.rel (%p219) target = $region24
        $region23: #{_agcrn_forward.1} parent=11 // pred_region
          %s223 = ssub.s32 16, 16
          %224 = vsyncadd [#allocation9], %s223
          %s226 = sshll.u32 [#allocation8], 4
          %s227 = int_to_ptr.vmem [resolvable:$true] %s226
          %229 = dma.hbm_to_vmem [thread:$0]  %s3, 16, %s227, [#allocation9]
        $region24: #{_agcrn_forward.1} parent=11 // pred_fallthru
          _
        // Predicated region
        $region25: #{_agcrn_forward.1} parent=11 // pred_check
          %p230 = pneg %p131
        $region26: #{_agcrn_forward.1} parent=11 // pred_check_branch
          %232 = sbr.rel (%p230) target = $region28
        $region27: #{_agcrn_forward.1} parent=11 // pred_region
          %s234 = ssub.s32 6912, 6912
          %235 = vsyncadd [#allocation9], %s234
          %s236 = sshll.u32 [#allocation10], 4
          %s237 = int_to_ptr.vmem [resolvable:$true] %s236
          %242 = dma.hbm_to_vmem [thread:$0]  %s4, 6912, %s237, [#allocation9], 128, 128, 8
        $region28: #{_agcrn_forward.1} parent=11 // pred_fallthru
          _
        // Predicated region
        $region29: #{_agcrn_forward.1} parent=11 // pred_check
          %p243 = pneg %p152
        $region30: #{_agcrn_forward.1} parent=11 // pred_check_branch
          %245 = sbr.rel (%p243) target = $region32
        $region31: #{_agcrn_forward.1} parent=11 // pred_region
          %s247 = ssub.s32 16, 16
          %248 = vsyncadd [#allocation12], %s247
          %s250 = sshll.u32 [#allocation11], 4
          %s251 = int_to_ptr.vmem [resolvable:$true] %s250
          %253 = dma.hbm_to_vmem [thread:$0]  %s5, 16, %s251, [#allocation12]
        $region32: #{_agcrn_forward.1} parent=11 // pred_fallthru
          _
      $region12: #{_agcrn_forward.1} parent=5 // pred_fallthru
        _
      %p254 = scmp.lt.s32.totalorder %s21, 2
      // Predicated region
      $region33: #{_agcrn_forward.1} parent=5 // pred_check
        %p255 = pneg %p254
      $region34: #{_agcrn_forward.1} parent=5 // pred_check_branch
        %257 = sbr.rel (%p255) target = $region36
      $region35: #{_agcrn_forward.1} parent=5 // pred_region
        // Predicated region
        $region37: #{_agcrn_forward.1} parent=35 // pred_check
          %p258 = pneg %p41
        $region38: #{_agcrn_forward.1} parent=35 // pred_check_branch
          %260 = sbr.rel (%p258) target = $region40
        $region39: #{_agcrn_forward.1} parent=35 // pred_region
          %s261 = sand.u32 %s31, 1
          %s262 = scalar_lea.sflag [#allocation3], %s261
          %s263 = sand.u32 %s31, 1
          %s264 = smul.addr %s263, 16
          %s265 = scalar_lea.vmem [#allocation2], %s264
          %s267 = ssub.s32 256, 256
          %268 = vsyncadd %s262, %s267
          %s269 = smul.addr %s21, 2
          %s270 = smul.addr %s269, 128
          %s271 = scalar_lea.hbm %s0, %s270
          %s272 = sshll.u32 %s265, 4
          %s273 = int_to_ptr.vmem [resolvable:$true] %s272
          %278 = dma.hbm_to_vmem [thread:$0]  %s271, 256, %s273, %s262, 128, 128, 8
        $region40: #{_agcrn_forward.1} parent=35 // pred_fallthru
          _
      $region36: #{_agcrn_forward.1} parent=5 // pred_fallthru
        _
      %p279 = scmp.le.s32.totalorder 1, %s21
      %p280 = scmp.lt.s32.totalorder %s21, 3
      %p281 = pnand %p279, %p280
      %p282 = pneg %p281
      // Predicated region
      $region41: #{_agcrn_forward.1} parent=5 // pred_check
        _
      $region42: #{_agcrn_forward.1} parent=5 // pred_check_branch
        %284 = sbr.rel (%p281) target = $region44
      $region43: #{_agcrn_forward.1} parent=5 // pred_region
        %s285 = ssub.s32 %s21, 1
        %s286 = sand.u32 %s34, 1
        %s287 = scalar_lea.sflag [#allocation3], %s286
        %s288 = sand.u32 %s34, 1
        %s289 = smul.addr %s288, 16
        %s290 = scalar_lea.vmem [#allocation2], %s289
        // Predicated region
        $region45: #{_agcrn_forward.1} parent=43 // pred_check
          %p291 = pneg %p47
        $region46: #{_agcrn_forward.1} parent=43 // pred_check_branch
          %293 = sbr.rel (%p291) target = $region48
        $region47: #{_agcrn_forward.1} parent=43 // pred_region
          %294 = dma.done %s287, 256
        $region48: #{_agcrn_forward.1} parent=43 // pred_fallthru
          _
        // Predicated region
        $region49: #{_agcrn_forward.1} parent=43 // pred_check
          %p295 = pneg %p68
        $region50: #{_agcrn_forward.1} parent=43 // pred_check_branch
          %297 = sbr.rel (%p295) target = $region52
        $region51: #{_agcrn_forward.1} parent=43 // pred_region
          %298 = dma.done [#allocation6], 1536
        $region52: #{_agcrn_forward.1} parent=43 // pred_fallthru
          _
        // Predicated region
        $region53: #{_agcrn_forward.1} parent=43 // pred_check
          %p299 = pneg %p89
        $region54: #{_agcrn_forward.1} parent=43 // pred_check_branch
          %301 = sbr.rel (%p299) target = $region56
        $region55: #{_agcrn_forward.1} parent=43 // pred_region
          %302 = dma.done [#allocation6], 6912
        $region56: #{_agcrn_forward.1} parent=43 // pred_fallthru
          _
        // Predicated region
        $region57: #{_agcrn_forward.1} parent=43 // pred_check
          %p303 = pneg %p110
        $region58: #{_agcrn_forward.1} parent=43 // pred_check_branch
          %305 = sbr.rel (%p303) target = $region60
        $region59: #{_agcrn_forward.1} parent=43 // pred_region
          %306 = dma.done [#allocation9], 16
        $region60: #{_agcrn_forward.1} parent=43 // pred_fallthru
          _
        // Predicated region
        $region61: #{_agcrn_forward.1} parent=43 // pred_check
          %p307 = pneg %p131
        $region62: #{_agcrn_forward.1} parent=43 // pred_check_branch
          %309 = sbr.rel (%p307) target = $region64
        $region63: #{_agcrn_forward.1} parent=43 // pred_region
          %310 = dma.done [#allocation9], 6912
        $region64: #{_agcrn_forward.1} parent=43 // pred_fallthru
          _
        // Predicated region
        $region65: #{_agcrn_forward.1} parent=43 // pred_check
          %p311 = pneg %p152
        $region66: #{_agcrn_forward.1} parent=43 // pred_check_branch
          %313 = sbr.rel (%p311) target = $region68
        $region67: #{_agcrn_forward.1} parent=43 // pred_region
          %314 = dma.done [#allocation12], 16
        $region68: #{_agcrn_forward.1} parent=43 // pred_fallthru
          _
        %s315 = sand.u32 %s34, 1
        %s316 = scalar_lea.sflag [#allocation3], %s315
        %s317 = sand.u32 %s34, 1
        %s318 = smul.addr %s317, 16
        %s319 = scalar_lea.vmem [#allocation2], %s318
        %p320 = pneg %p47
        %p321 = pneg %p44
        %p322 = pneg %p68
        %p323 = pneg %p65
        %p324 = pneg %p89
        %p325 = pneg %p86
        %p326 = pneg %p110
        %p327 = pneg %p107
        %p328 = pneg %p131
        %p329 = pneg %p128
        %p330 = pneg %p152
        %p331 = pneg %p149
        %p332 = pneg %p178
        %p333 = pneg %p175
        %s334 = sand.u32 %s165, 1
        %s335 = scalar_lea.sflag [#allocation4], %s334
        %s336 = sand.u32 %s165, 1
        %s337 = smul.addr %s336, 16
        %s338 = scalar_lea.vmem [#allocation13], %s337
        %v339 = vld [vmem:[%s290] sm:$0xff]
        %v340 = vld [vmem:[%s290 + $0x8] sm:$0xff]
        %v341 = vld [vmem:[#allocation5] sm:$0xff]
        %v342 = vld [vmem:[#allocation5 + $0x8] sm:$0xff]
        %v343 = vld [vmem:[#allocation5 + $0x10] sm:$0xff]
        %v344 = vld [vmem:[#allocation5 + $0x18] sm:$0xff]
        %v345 = vld [vmem:[#allocation5 + $0x20] sm:$0xff]
        %v346 = vld [vmem:[#allocation5 + $0x28] sm:$0xff]
        %v347 = vld [vmem:[#allocation5 + $0x30] sm:$0xff]
        %v348 = vld [vmem:[#allocation5 + $0x38] sm:$0xff]
        %v349 = vld [vmem:[#allocation5 + $0x40] sm:$0xff]
        %v350 = vld [vmem:[#allocation5 + $0x48] sm:$0xff]
        %v351 = vld [vmem:[#allocation5 + $0x50] sm:$0xff]
        %v352 = vld [vmem:[#allocation5 + $0x58] sm:$0xff]
        %vm353 = vcmask 130048
        %v355 = vsel %vm353, %v341, 0
        %v358 = vsel %vm353, %v342, 0
        %v361 = vsel %vm353, %v343, 0
        %v364 = vsel %vm353, %v344, 0
        %v367 = vsel %vm353, %v345, 0
        %v370 = vsel %vm353, %v346, 0
        %v373 = vsel %vm353, %v347, 0
        %v376 = vsel %vm353, %v348, 0
        %v379 = vsel %vm353, %v349, 0
        %v382 = vsel %vm353, %v350, 0
        %v385 = vsel %vm353, %v351, 0
        %v388 = vsel %vm353, %v352, 0
        %390 = vmatprep.subr.mxu0 0.0
        %391 = vmatpush1.msra.mxu0 %v339
        %392 = vmatprep.subr.mxu0 0.0
        %393 = vmatpush1.msra.mxu0 %v340
        %394 = vmatprep.subr.mxu0 0.0
        %395 = vmatpush1.msra.mxu0 0.0
        %396 = vmatprep.subr.mxu0 0.0
        %397 = vmatpush1.msra.mxu0 0.0
        %398 = vmatprep.subr.mxu0 0.0
        %399 = vmatpush1.msra.mxu0 0.0
        %400 = vmatprep.subr.mxu0 0.0
        %401 = vmatpush1.msra.mxu0 0.0
        %402 = vmatprep.subr.mxu0 0.0
        %403 = vmatpush1.msra.mxu0 0.0
        %404 = vmatprep.subr.mxu0 0.0
        %405 = vmatpush1.msra.mxu0 0.0
        %406 = vmatprep.subr.mxu0 0.0
        %407 = vmatpush1.msra.mxu0 0.0
        %408 = vmatprep.subr.mxu0 0.0
        %409 = vmatpush1.msra.mxu0 0.0
        %410 = vmatprep.subr.mxu0 0.0
        %411 = vmatpush1.msra.mxu0 0.0
        %412 = vmatprep.subr.mxu0 0.0
        %413 = vmatpush1.msra.mxu0 0.0
        %414 = vmatprep.subr.mxu0 0.0
        %415 = vmatpush1.msra.mxu0 0.0
        %416 = vmatprep.subr.mxu0 0.0
        %417 = vmatpush1.msra.mxu0 0.0
        %418 = vmatprep.subr.mxu0 0.0
        %419 = vmatpush1.msra.mxu0 0.0
        %420 = vmatprep.subr.mxu0 0.0
        %421 = vmatpush1.msra.mxu0 0.0
        %422 = vmatprep.subr.mxu0 0.0
        %423 = vmatpush1.msra.mxu0 0.0
        %424 = vmatprep.subr.mxu0 0.0
        %425 = vmatpush1.msra.mxu0 0.0
        %426 = vmatprep.subr.mxu0 0.0
        %427 = vmatpush1.msra.mxu0 0.0
        %428 = vmatprep.subr.mxu0 0.0
        %429 = vmatpush1.msra.mxu0 0.0
        %430 = vmatprep.subr.mxu0 0.0
        %431 = vmatpush1.msra.mxu0 0.0
        %432 = vmatprep.subr.mxu0 0.0
        %433 = vmatpush1.msra.mxu0 0.0
        %434 = vmatprep.subr.mxu0 0.0
        %435 = vmatpush1.msra.mxu0 0.0
        %436 = vmatprep.subr.mxu0 0.0
        %437 = vmatpush1.msra.mxu0 0.0
        %438 = vmatprep.subr.mxu0 0.0
        %439 = vmatpush1.msra.mxu0 0.0
        %440 = vmatprep.subr.mxu0 0.0
        %441 = vmatpush1.msra.mxu0 0.0
        %442 = vmatprep.subr.mxu0 0.0
        %443 = vmatpush1.msra.mxu0 0.0
        %444 = vmatprep.subr.mxu0 0.0
        %445 = vmatpush1.msra.mxu0 0.0
        %446 = vmatprep.subr.mxu0 0.0
        %447 = vmatpush1.msra.mxu0 0.0
        %448 = vmatprep.subr.mxu0 0.0
        %449 = vmatpush1.msra.mxu0 0.0
        %450 = vmatprep.subr.mxu0 0.0
        %451 = vmatpush1.msra.mxu0 0.0
        %452 = vmatprep.subr.mxu0 0.0
        %453 = vmatpush1.msra.mxu0 0.0
        %454 = vmatprep.mubr.f32.mxu0 0.0
        %455 = vmatmul.mubr.f32.gmra.mrb[0].mxu0 %v355
        %v456 = vpop.f32.mrb[0].mxu0
        %v457 = vadd.f32 0.0, %v456
        %v458 = vpop.f32.mrb[0].mxu0
        %459 = vmatprep.mubr.f32.mxu0 0.0
        %460 = vmatmul.mubr.f32.gmra.mrb[0].mxu0 %v358
        %v461 = vpop.f32.mrb[0].mxu0
        %v462 = vadd.f32 0.0, %v461
        %v463 = vpop.f32.mrb[0].mxu0
        %464 = vmatprep.mubr.f32.mxu0 0.0
        %465 = vmatmul.mubr.f32.gmra.mrb[0].mxu0 %v361
        %v466 = vpop.f32.mrb[0].mxu0
        %v467 = vadd.f32 0.0, %v466
        %v468 = vpop.f32.mrb[0].mxu0
        %469 = vmatprep.mubr.f32.mxu0 0.0
        %470 = vmatmul.mubr.f32.gmra.mrb[0].mxu0 %v364
        %v471 = vpop.f32.mrb[0].mxu0
        %v472 = vadd.f32 0.0, %v471
        %v473 = vpop.f32.mrb[0].mxu0
        %474 = vmatprep.mubr.f32.mxu0 0.0
        %475 = vmatmul.mubr.f32.gmra.mrb[0].mxu0 %v367
        %v476 = vpop.f32.mrb[0].mxu0
        %v477 = vadd.f32 0.0, %v476
        %v478 = vpop.f32.mrb[0].mxu0
        %479 = vmatprep.mubr.f32.mxu0 0.0
        %480 = vmatmul.mubr.f32.gmra.mrb[0].mxu0 %v370
        %v481 = vpop.f32.mrb[0].mxu0
        %v482 = vadd.f32 0.0, %v481
        %v483 = vpop.f32.mrb[0].mxu0
        %484 = vmatprep.mubr.f32.mxu0 0.0
        %485 = vmatmul.mubr.f32.gmra.mrb[0].mxu0 %v373
        %v486 = vpop.f32.mrb[0].mxu0
        %v487 = vadd.f32 0.0, %v486
        %v488 = vpop.f32.mrb[0].mxu0
        %489 = vmatprep.mubr.f32.mxu0 0.0
        %490 = vmatmul.mubr.f32.gmra.mrb[0].mxu0 %v376
        %v491 = vpop.f32.mrb[0].mxu0
        %v492 = vadd.f32 0.0, %v491
        %v493 = vpop.f32.mrb[0].mxu0
        %494 = vmatprep.mubr.f32.mxu0 0.0
        %495 = vmatmul.mubr.f32.gmra.mrb[0].mxu0 %v379
        %v496 = vpop.f32.mrb[0].mxu0
        %v497 = vadd.f32 0.0, %v496
        %v498 = vpop.f32.mrb[0].mxu0
        %499 = vmatprep.mubr.f32.mxu0 0.0
        %500 = vmatmul.mubr.f32.gmra.mrb[0].mxu0 %v382
        %v501 = vpop.f32.mrb[0].mxu0
        %v502 = vadd.f32 0.0, %v501
        %v503 = vpop.f32.mrb[0].mxu0
        %504 = vmatprep.mubr.f32.mxu0 0.0
        %505 = vmatmul.mubr.f32.gmra.mrb[0].mxu0 %v385
        %v506 = vpop.f32.mrb[0].mxu0
        %v507 = vadd.f32 0.0, %v506
        %v508 = vpop.f32.mrb[0].mxu0
        %509 = vmatprep.mubr.f32.mxu0 0.0
        %510 = vmatmul.mubr.f32.gmra.mrb[0].mxu0 %v388
        %v511 = vpop.f32.mrb[0].mxu0
        %v512 = vadd.f32 0.0, %v511
        %v513 = vpop.f32.mrb[0].mxu0
        %514 = vdwg.mxu0
        %517 = vrot.lane.b32.xlu0 %v467, 72
        %v518 = vpop.permute.xlu0 %517
        %519 = vrot.lane.b32.xlu0 %v472, 72
        %v520 = vpop.permute.xlu0 %519
        %525 = vrot.lane.b32.xlu0 %v477, 16
        %v526 = vpop.permute.xlu0 %525
        %527 = vrot.lane.b32.xlu0 %v482, 16
        %v528 = vpop.permute.xlu0 %527
        %533 = vrot.lane.b32.xlu0 %v487, 88
        %v534 = vpop.permute.xlu0 %533
        %535 = vrot.lane.b32.xlu0 %v492, 88
        %v536 = vpop.permute.xlu0 %535
        %541 = vrot.lane.b32.xlu0 %v497, 32
        %v542 = vpop.permute.xlu0 %541
        %543 = vrot.lane.b32.xlu0 %v502, 32
        %v544 = vpop.permute.xlu0 %543
        %549 = vrot.lane.b32.xlu0 %v507, 104
        %v550 = vpop.permute.xlu0 %549
        %551 = vrot.lane.b32.xlu0 %v512, 104
        %v552 = vpop.permute.xlu0 %551
        %vm555 = vcmask 588800
        %v556 = vsel %vm555, %v457, %v518
        %v557 = vsel %vm555, %v462, %v520
        %v558 = vsel %vm353, %v518, %v526
        %v559 = vsel %vm353, %v520, %v528
        %vm560 = vcmask 719872
        %v561 = vsel %vm560, %v558, %v534
        %v562 = vsel %vm560, %v559, %v536
        %vm563 = vcmask 261120
        %v564 = vsel %vm563, %v534, %v542
        %v565 = vsel %vm563, %v536, %v544
        %vm566 = vcmask 850944
        %v567 = vsel %vm566, %v564, %v550
        %v568 = vsel %vm566, %v565, %v552
        %v569 = vld [vmem:[#allocation7] sm:$0xff]
        %v570 = vld [vmem:[#allocation7 + $0x8] sm:$0xff]
        %v571 = vld [vmem:[#allocation7 + $0x10] sm:$0xff]
        %v572 = vld [vmem:[#allocation7 + $0x18] sm:$0xff]
        %v573 = vld [vmem:[#allocation7 + $0x20] sm:$0xff]
        %v574 = vld [vmem:[#allocation7 + $0x28] sm:$0xff]
        %v575 = vld [vmem:[#allocation7 + $0x30] sm:$0xff]
        %v576 = vld [vmem:[#allocation7 + $0x38] sm:$0xff]
        %v577 = vld [vmem:[#allocation7 + $0x40] sm:$0xff]
        %v578 = vld [vmem:[#allocation7 + $0x48] sm:$0xff]
        %v579 = vld [vmem:[#allocation7 + $0x50] sm:$0xff]
        %v580 = vld [vmem:[#allocation7 + $0x58] sm:$0xff]
        %v581 = vld [vmem:[#allocation7 + $0x60] sm:$0xff]
        %v582 = vld [vmem:[#allocation7 + $0x68] sm:$0xff]
        %v583 = vld [vmem:[#allocation7 + $0x70] sm:$0xff]
        %v584 = vld [vmem:[#allocation7 + $0x78] sm:$0xff]
        %v585 = vld [vmem:[#allocation7 + $0x80] sm:$0xff]
        %v586 = vld [vmem:[#allocation7 + $0x88] sm:$0xff]
        %v587 = vld [vmem:[#allocation7 + $0x90] sm:$0xff]
        %v588 = vld [vmem:[#allocation7 + $0x98] sm:$0xff]
        %v589 = vld [vmem:[#allocation7 + $0xa0] sm:$0xff]
        %v590 = vld [vmem:[#allocation7 + $0xa8] sm:$0xff]
        %v591 = vld [vmem:[#allocation7 + $0xb0] sm:$0xff]
        %v592 = vld [vmem:[#allocation7 + $0xb8] sm:$0xff]
        %v593 = vld [vmem:[#allocation7 + $0xc0] sm:$0xff]
        %v594 = vld [vmem:[#allocation7 + $0xc8] sm:$0xff]
        %v595 = vld [vmem:[#allocation7 + $0xd0] sm:$0xff]
        %v596 = vld [vmem:[#allocation7 + $0xd8] sm:$0xff]
        %v597 = vld [vmem:[#allocation7 + $0xe0] sm:$0xff]
        %v598 = vld [vmem:[#allocation7 + $0xe8] sm:$0xff]
        %v599 = vld [vmem:[#allocation7 + $0xf0] sm:$0xff]
        %v600 = vld [vmem:[#allocation7 + $0xf8] sm:$0xff]
        %v601 = vld [vmem:[#allocation7 + $0x100] sm:$0xff]
        %v602 = vld [vmem:[#allocation7 + $0x108] sm:$0xff]
        %v603 = vld [vmem:[#allocation7 + $0x110] sm:$0xff]
        %v604 = vld [vmem:[#allocation7 + $0x118] sm:$0xff]
        %v605 = vld [vmem:[#allocation7 + $0x120] sm:$0xff]
        %v606 = vld [vmem:[#allocation7 + $0x128] sm:$0xff]
        %v607 = vld [vmem:[#allocation7 + $0x130] sm:$0xff]
        %v608 = vld [vmem:[#allocation7 + $0x138] sm:$0xff]
        %v609 = vld [vmem:[#allocation7 + $0x140] sm:$0xff]
        %v610 = vld [vmem:[#allocation7 + $0x148] sm:$0xff]
        %v611 = vld [vmem:[#allocation7 + $0x150] sm:$0xff]
        %v612 = vld [vmem:[#allocation7 + $0x158] sm:$0xff]
        %v613 = vld [vmem:[#allocation7 + $0x160] sm:$0xff]
        %v614 = vld [vmem:[#allocation7 + $0x168] sm:$0xff]
        %v615 = vld [vmem:[#allocation7 + $0x170] sm:$0xff]
        %v616 = vld [vmem:[#allocation7 + $0x178] sm:$0xff]
        %v617 = vld [vmem:[#allocation7 + $0x180] sm:$0xff]
        %v618 = vld [vmem:[#allocation7 + $0x188] sm:$0xff]
        %v619 = vld [vmem:[#allocation7 + $0x190] sm:$0xff]
        %v620 = vld [vmem:[#allocation7 + $0x198] sm:$0xff]
        %v621 = vld [vmem:[#allocation7 + $0x1a0] sm:$0xff]
        %v622 = vld [vmem:[#allocation7 + $0x1a8] sm:$0xff]
        %v623 = vld [vmem:[#allocation8] sm:$0x1]
        %v625 = vlaneseq
        %v626 = vshrl.u32 %v625, 7
        %v627 = vsub.s32 0, %v626
        %v628 = vrot.slane %v623, %v627
        %vm630 = vcmask 392192
        %v631 = vsel %vm630, %v550, 0
        %v633 = vsel %vm630, %v552, 0
        %635 = vmatprep.subr.mxu0 0.0
        %636 = vmatpush1.msra.mxu0 %v569
        %637 = vmatprep.subr.mxu0 0.0
        %638 = vmatpush1.msra.mxu0 %v570
        %639 = vmatprep.subr.mxu0 0.0
        %640 = vmatpush1.msra.mxu0 %v571
        %641 = vmatprep.subr.mxu0 0.0
        %642 = vmatpush1.msra.mxu0 %v572
        %643 = vmatprep.subr.mxu0 0.0
        %644 = vmatpush1.msra.mxu0 %v573
        %645 = vmatprep.subr.mxu0 0.0
        %646 = vmatpush1.msra.mxu0 %v574
        %647 = vmatprep.subr.mxu0 0.0
        %648 = vmatpush1.msra.mxu0 %v575
        %649 = vmatprep.subr.mxu0 0.0
        %650 = vmatpush1.msra.mxu0 %v576
        %651 = vmatprep.subr.mxu0 0.0
        %652 = vmatpush1.msra.mxu0 %v577
        %653 = vmatprep.subr.mxu0 0.0
        %654 = vmatpush1.msra.mxu0 %v578
        %655 = vmatprep.subr.mxu0 0.0
        %656 = vmatpush1.msra.mxu0 %v579
        %657 = vmatprep.subr.mxu0 0.0
        %658 = vmatpush1.msra.mxu0 %v580
        %659 = vmatprep.subr.mxu0 0.0
        %660 = vmatpush1.msra.mxu0 %v581
        %661 = vmatprep.subr.mxu0 0.0
        %662 = vmatpush1.msra.mxu0 %v582
        %663 = vmatprep.subr.mxu0 0.0
        %664 = vmatpush1.msra.mxu0 %v583
        %665 = vmatprep.subr.mxu0 0.0
        %666 = vmatpush1.msra.mxu0 %v584
        %667 = vmatprep.subr.mxu0 0.0
        %668 = vmatpush1.msra.mxu0 %v585
        %669 = vmatprep.subr.mxu0 0.0
        %670 = vmatpush1.msra.mxu0 %v586
        %671 = vmatprep.subr.mxu0 0.0
        %672 = vmatpush1.msra.mxu0 %v587
        %673 = vmatprep.subr.mxu0 0.0
        %674 = vmatpush1.msra.mxu0 %v588
        %675 = vmatprep.subr.mxu0 0.0
        %676 = vmatpush1.msra.mxu0 %v589
        %677 = vmatprep.subr.mxu0 0.0
        %678 = vmatpush1.msra.mxu0 %v590
        %679 = vmatprep.subr.mxu0 0.0
        %680 = vmatpush1.msra.mxu0 %v591
        %681 = vmatprep.subr.mxu0 0.0
        %682 = vmatpush1.msra.mxu0 %v592
        %683 = vmatprep.subr.mxu0 0.0
        %684 = vmatpush1.msra.mxu0 %v593
        %685 = vmatprep.subr.mxu0 0.0
        %686 = vmatpush1.msra.mxu0 %v594
        %687 = vmatprep.subr.mxu0 0.0
        %688 = vmatpush1.msra.mxu0 %v595
        %689 = vmatprep.subr.mxu0 0.0
        %690 = vmatpush1.msra.mxu0 %v596
        %691 = vmatprep.subr.mxu0 0.0
        %692 = vmatpush1.msra.mxu0 %v597
        %693 = vmatprep.subr.mxu0 0.0
        %694 = vmatpush1.msra.mxu0 %v598
        %695 = vmatprep.subr.mxu0 0.0
        %696 = vmatpush1.msra.mxu0 %v599
        %697 = vmatprep.subr.mxu0 0.0
        %698 = vmatpush1.msra.mxu0 %v600
        %699 = vmatprep.mubr.f32.mxu0 %v561
        %700 = vmatmul.mubr.f32.gmra.mrb[0].mxu0 %v556
        %v701 = vpop.f32.mrb[0].mxu0
        %v702 = vadd.f32 %v628, %v701
        %v703 = vpop.f32.mrb[0].mxu0
        %704 = vmatprep.mubr.f32.mxu0 %v562
        %705 = vmatmul.mubr.f32.gmra.mrb[0].mxu0 %v557
        %v706 = vpop.f32.mrb[0].mxu0
        %v707 = vadd.f32 %v628, %v706
        %v708 = vpop.f32.mrb[0].mxu0
        %709 = vdwg.mxu0
        %710 = vmatprep.subr.mxu0 0.0
        %711 = vmatpush1.msra.mxu0 %v601
        %712 = vmatprep.subr.mxu0 0.0
        %713 = vmatpush1.msra.mxu0 %v602
        %714 = vmatprep.subr.mxu0 0.0
        %715 = vmatpush1.msra.mxu0 %v603
        %716 = vmatprep.subr.mxu0 0.0
        %717 = vmatpush1.msra.mxu0 %v604
        %718 = vmatprep.subr.mxu0 0.0
        %719 = vmatpush1.msra.mxu0 %v605
        %720 = vmatprep.subr.mxu0 0.0
        %721 = vmatpush1.msra.mxu0 %v606
        %722 = vmatprep.subr.mxu0 0.0
        %723 = vmatpush1.msra.mxu0 %v607
        %724 = vmatprep.subr.mxu0 0.0
        %725 = vmatpush1.msra.mxu0 %v608
        %726 = vmatprep.subr.mxu0 0.0
        %727 = vmatpush1.msra.mxu0 %v609
        %728 = vmatprep.subr.mxu0 0.0
        %729 = vmatpush1.msra.mxu0 %v610
        %730 = vmatprep.subr.mxu0 0.0
        %731 = vmatpush1.msra.mxu0 %v611
        %732 = vmatprep.subr.mxu0 0.0
        %733 = vmatpush1.msra.mxu0 %v612
        %734 = vmatprep.subr.mxu0 0.0
        %735 = vmatpush1.msra.mxu0 %v613
        %736 = vmatprep.subr.mxu0 0.0
        %737 = vmatpush1.msra.mxu0 %v614
        %738 = vmatprep.subr.mxu0 0.0
        %739 = vmatpush1.msra.mxu0 %v615
        %740 = vmatprep.subr.mxu0 0.0
        %741 = vmatpush1.msra.mxu0 %v616
        %742 = vmatprep.subr.mxu0 0.0
        %743 = vmatpush1.msra.mxu0 %v617
        %744 = vmatprep.subr.mxu0 0.0
        %745 = vmatpush1.msra.mxu0 %v618
        %746 = vmatprep.subr.mxu0 0.0
        %747 = vmatpush1.msra.mxu0 %v619
        %748 = vmatprep.subr.mxu0 0.0
        %749 = vmatpush1.msra.mxu0 %v620
        %750 = vmatprep.subr.mxu0 0.0
        %751 = vmatpush1.msra.mxu0 %v621
        %752 = vmatprep.subr.mxu0 0.0
        %753 = vmatpush1.msra.mxu0 %v622
        %754 = vmatprep.subr.mxu0 0.0
        %755 = vmatpush1.msra.mxu0 0.0
        %756 = vmatprep.subr.mxu0 0.0
        %757 = vmatpush1.msra.mxu0 0.0
        %758 = vmatprep.subr.mxu0 0.0
        %759 = vmatpush1.msra.mxu0 0.0
        %760 = vmatprep.subr.mxu0 0.0
        %761 = vmatpush1.msra.mxu0 0.0
        %762 = vmatprep.subr.mxu0 0.0
        %763 = vmatpush1.msra.mxu0 0.0
        %764 = vmatprep.subr.mxu0 0.0
        %765 = vmatpush1.msra.mxu0 0.0
        %766 = vmatprep.subr.mxu0 0.0
        %767 = vmatpush1.msra.mxu0 0.0
        %768 = vmatprep.subr.mxu0 0.0
        %769 = vmatpush1.msra.mxu0 0.0
        %770 = vmatprep.subr.mxu0 0.0
        %771 = vmatpush1.msra.mxu0 0.0
        %772 = vmatprep.subr.mxu0 0.0
        %773 = vmatpush1.msra.mxu0 0.0
        %774 = vmatprep.mubr.f32.mxu0 %v631
        %775 = vmatmul.mubr.f32.gmra.mrb[0].mxu0 %v567
        %v776 = vpop.f32.mrb[0].mxu0
        %v777 = vadd.f32 %v702, %v776
        %v778 = vpop.f32.mrb[0].mxu0
        %779 = vmatprep.mubr.f32.mxu0 %v633
        %780 = vmatmul.mubr.f32.gmra.mrb[0].mxu0 %v568
        %v781 = vpop.f32.mrb[0].mxu0
        %v782 = vadd.f32 %v707, %v781
        %v783 = vpop.f32.mrb[0].mxu0
        %784 = vdwg.mxu0
        %v785 = vxor.u32 %v777, 2147483648
        %v786 = vxor.u32 %v782, 2147483648
        %v787 = vmul.f32 %v785, 1.442695
        %v788 = vpow.pop %v787
        %v789 = vmul.f32 %v786, 1.442695
        %v790 = vpow.pop %v789
        %v791 = vadd.f32 %v788, 1.0
        %v792 = vadd.f32 %v790, 1.0
        %v793 = vrcp.pop %v791
        %v794 = vmul.f32 1.0, %v793
        %v795 = vrcp.pop %v792
        %v796 = vmul.f32 1.0, %v795
        %799 = vrot.lane.b32.xlu0 %v339, 120
        %v800 = vpop.permute.xlu0 %799
        %801 = vrot.lane.b32.xlu0 %v340, 120
        %v802 = vpop.permute.xlu0 %801
        %v805 = vmul.f32 %v794, %v800
        %v806 = vmul.f32 %v796, %v802
        %807 = vmatprep.subr.mxu0 0.0
        %808 = vmatpush1.msra.mxu0 %v805
        %809 = vmatprep.subr.mxu0 0.0
        %810 = vmatpush1.msra.mxu0 %v806
        %811 = vmatprep.subr.mxu0 0.0
        %812 = vmatpush1.msra.mxu0 0.0
        %813 = vmatprep.subr.mxu0 0.0
        %814 = vmatpush1.msra.mxu0 0.0
        %815 = vmatprep.subr.mxu0 0.0
        %816 = vmatpush1.msra.mxu0 0.0
        %817 = vmatprep.subr.mxu0 0.0
        %818 = vmatpush1.msra.mxu0 0.0
        %819 = vmatprep.subr.mxu0 0.0
        %820 = vmatpush1.msra.mxu0 0.0
        %821 = vmatprep.subr.mxu0 0.0
        %822 = vmatpush1.msra.mxu0 0.0
        %823 = vmatprep.subr.mxu0 0.0
        %824 = vmatpush1.msra.mxu0 0.0
        %825 = vmatprep.subr.mxu0 0.0
        %826 = vmatpush1.msra.mxu0 0.0
        %827 = vmatprep.subr.mxu0 0.0
        %828 = vmatpush1.msra.mxu0 0.0
        %829 = vmatprep.subr.mxu0 0.0
        %830 = vmatpush1.msra.mxu0 0.0
        %831 = vmatprep.subr.mxu0 0.0
        %832 = vmatpush1.msra.mxu0 0.0
        %833 = vmatprep.subr.mxu0 0.0
        %834 = vmatpush1.msra.mxu0 0.0
        %835 = vmatprep.subr.mxu0 0.0
        %836 = vmatpush1.msra.mxu0 0.0
        %837 = vmatprep.subr.mxu0 0.0
        %838 = vmatpush1.msra.mxu0 0.0
        %839 = vmatprep.subr.mxu0 0.0
        %840 = vmatpush1.msra.mxu0 0.0
        %841 = vmatprep.subr.mxu0 0.0
        %842 = vmatpush1.msra.mxu0 0.0
        %843 = vmatprep.subr.mxu0 0.0
        %844 = vmatpush1.msra.mxu0 0.0
        %845 = vmatprep.subr.mxu0 0.0
        %846 = vmatpush1.msra.mxu0 0.0
        %847 = vmatprep.subr.mxu0 0.0
        %848 = vmatpush1.msra.mxu0 0.0
        %849 = vmatprep.subr.mxu0 0.0
        %850 = vmatpush1.msra.mxu0 0.0
        %851 = vmatprep.subr.mxu0 0.0
        %852 = vmatpush1.msra.mxu0 0.0
        %853 = vmatprep.subr.mxu0 0.0
        %854 = vmatpush1.msra.mxu0 0.0
        %855 = vmatprep.subr.mxu0 0.0
        %856 = vmatpush1.msra.mxu0 0.0
        %857 = vmatprep.subr.mxu0 0.0
        %858 = vmatpush1.msra.mxu0 0.0
        %859 = vmatprep.subr.mxu0 0.0
        %860 = vmatpush1.msra.mxu0 0.0
        %861 = vmatprep.subr.mxu0 0.0
        %862 = vmatpush1.msra.mxu0 0.0
        %863 = vmatprep.subr.mxu0 0.0
        %864 = vmatpush1.msra.mxu0 0.0
        %865 = vmatprep.subr.mxu0 0.0
        %866 = vmatpush1.msra.mxu0 0.0
        %867 = vmatprep.subr.mxu0 0.0
        %868 = vmatpush1.msra.mxu0 0.0
        %869 = vmatprep.subr.mxu0 0.0
        %870 = vmatpush1.msra.mxu0 0.0
        %871 = vmatprep.mubr.f32.mxu0 0.0
        %872 = vmatmul.mubr.f32.gmra.mrb[0].mxu0 %v355
        %v873 = vpop.f32.mrb[0].mxu0
        %v874 = vadd.f32 0.0, %v873
        %v875 = vpop.f32.mrb[0].mxu0
        %876 = vmatprep.mubr.f32.mxu0 0.0
        %877 = vmatmul.mubr.f32.gmra.mrb[0].mxu0 %v358
        %v878 = vpop.f32.mrb[0].mxu0
        %v879 = vadd.f32 0.0, %v878
        %v880 = vpop.f32.mrb[0].mxu0
        %881 = vmatprep.mubr.f32.mxu0 0.0
        %882 = vmatmul.mubr.f32.gmra.mrb[0].mxu0 %v361
        %v883 = vpop.f32.mrb[0].mxu0
        %v884 = vadd.f32 0.0, %v883
        %v885 = vpop.f32.mrb[0].mxu0
        %886 = vmatprep.mubr.f32.mxu0 0.0
        %887 = vmatmul.mubr.f32.gmra.mrb[0].mxu0 %v364
        %v888 = vpop.f32.mrb[0].mxu0
        %v889 = vadd.f32 0.0, %v888
        %v890 = vpop.f32.mrb[0].mxu0
        %891 = vmatprep.mubr.f32.mxu0 0.0
        %892 = vmatmul.mubr.f32.gmra.mrb[0].mxu0 %v367
        %v893 = vpop.f32.mrb[0].mxu0
        %v894 = vadd.f32 0.0, %v893
        %v895 = vpop.f32.mrb[0].mxu0
        %896 = vmatprep.mubr.f32.mxu0 0.0
        %897 = vmatmul.mubr.f32.gmra.mrb[0].mxu0 %v370
        %v898 = vpop.f32.mrb[0].mxu0
        %v899 = vadd.f32 0.0, %v898
        %v900 = vpop.f32.mrb[0].mxu0
        %901 = vmatprep.mubr.f32.mxu0 0.0
        %902 = vmatmul.mubr.f32.gmra.mrb[0].mxu0 %v373
        %v903 = vpop.f32.mrb[0].mxu0
        %v904 = vadd.f32 0.0, %v903
        %v905 = vpop.f32.mrb[0].mxu0
        %906 = vmatprep.mubr.f32.mxu0 0.0
        %907 = vmatmul.mubr.f32.gmra.mrb[0].mxu0 %v376
        %v908 = vpop.f32.mrb[0].mxu0
        %v909 = vadd.f32 0.0, %v908
        %v910 = vpop.f32.mrb[0].mxu0
        %911 = vmatprep.mubr.f32.mxu0 0.0
        %912 = vmatmul.mubr.f32.gmra.mrb[0].mxu0 %v379
        %v913 = vpop.f32.mrb[0].mxu0
        %v914 = vadd.f32 0.0, %v913
        %v915 = vpop.f32.mrb[0].mxu0
        %916 = vmatprep.mubr.f32.mxu0 0.0
        %917 = vmatmul.mubr.f32.gmra.mrb[0].mxu0 %v382
        %v918 = vpop.f32.mrb[0].mxu0
        %v919 = vadd.f32 0.0, %v918
        %v920 = vpop.f32.mrb[0].mxu0
        %921 = vmatprep.mubr.f32.mxu0 0.0
        %922 = vmatmul.mubr.f32.gmra.mrb[0].mxu0 %v385
        %v923 = vpop.f32.mrb[0].mxu0
        %v924 = vadd.f32 0.0, %v923
        %v925 = vpop.f32.mrb[0].mxu0
        %926 = vmatprep.mubr.f32.mxu0 0.0
        %927 = vmatmul.mubr.f32.gmra.mrb[0].mxu0 %v388
        %v928 = vpop.f32.mrb[0].mxu0
        %v929 = vadd.f32 0.0, %v928
        %v930 = vpop.f32.mrb[0].mxu0
        %931 = vdwg.mxu0
        %934 = vrot.lane.b32.xlu0 %v874, 8
        %v935 = vpop.permute.xlu0 %934
        %936 = vrot.lane.b32.xlu0 %v879, 8
        %v937 = vpop.permute.xlu0 %936
        %942 = vrot.lane.b32.xlu0 %v884, 80
        %v943 = vpop.permute.xlu0 %942
        %944 = vrot.lane.b32.xlu0 %v889, 80
        %v945 = vpop.permute.xlu0 %944
        %950 = vrot.lane.b32.xlu0 %v894, 24
        %v951 = vpop.permute.xlu0 %950
        %952 = vrot.lane.b32.xlu0 %v899, 24
        %v953 = vpop.permute.xlu0 %952
        %958 = vrot.lane.b32.xlu0 %v904, 96
        %v959 = vpop.permute.xlu0 %958
        %960 = vrot.lane.b32.xlu0 %v909, 96
        %v961 = vpop.permute.xlu0 %960
        %966 = vrot.lane.b32.xlu0 %v914, 40
        %v967 = vpop.permute.xlu0 %966
        %968 = vrot.lane.b32.xlu0 %v919, 40
        %v969 = vpop.permute.xlu0 %968
        %974 = vrot.lane.b32.xlu0 %v924, 112
        %v975 = vpop.permute.xlu0 %974
        %976 = vrot.lane.b32.xlu0 %v929, 112
        %v977 = vpop.permute.xlu0 %976
        %vm980 = vcmask 64512
        %v981 = vsel %vm980, %v457, %v935
        %v982 = vsel %vm980, %v462, %v937
        %v983 = vsel %vm555, %v981, %v518
        %v984 = vsel %vm555, %v982, %v520
        %vm985 = vcmask 654336
        %v986 = vsel %vm985, %v983, %v943
        %v987 = vsel %vm985, %v984, %v945
        %v988 = vsel %vm353, %v943, %v526
        %v989 = vsel %vm353, %v945, %v528
        %vm990 = vcmask 195584
        %v991 = vsel %vm990, %v988, %v951
        %v992 = vsel %vm990, %v989, %v953
        %v993 = vsel %vm560, %v991, %v534
        %v994 = vsel %vm560, %v992, %v536
        %vm995 = vcmask 785408
        %v996 = vsel %vm995, %v993, %v959
        %v997 = vsel %vm995, %v994, %v961
        %v998 = vsel %vm563, %v959, %v542
        %v999 = vsel %vm563, %v961, %v544
        %vm1000 = vcmask 326656
        %v1001 = vsel %vm1000, %v998, %v967
        %v1002 = vsel %vm1000, %v999, %v969
        %v1003 = vsel %vm566, %v1001, %v550
        %v1004 = vsel %vm566, %v1002, %v552
        %vm1005 = vcmask 916480
        %v1006 = vsel %vm1005, %v1003, %v975
        %v1007 = vsel %vm1005, %v1004, %v977
        %v1008 = vld [vmem:[#allocation10] sm:$0xff]
        %v1009 = vld [vmem:[#allocation10 + $0x8] sm:$0xff]
        %v1010 = vld [vmem:[#allocation10 + $0x10] sm:$0xff]
        %v1011 = vld [vmem:[#allocation10 + $0x18] sm:$0xff]
        %v1012 = vld [vmem:[#allocation10 + $0x20] sm:$0xff]
        %v1013 = vld [vmem:[#allocation10 + $0x28] sm:$0xff]
        %v1014 = vld [vmem:[#allocation10 + $0x30] sm:$0xff]
        %v1015 = vld [vmem:[#allocation10 + $0x38] sm:$0xff]
        %v1016 = vld [vmem:[#allocation10 + $0x40] sm:$0xff]
        %v1017 = vld [vmem:[#allocation10 + $0x48] sm:$0xff]
        %v1018 = vld [vmem:[#allocation10 + $0x50] sm:$0xff]
        %v1019 = vld [vmem:[#allocation10 + $0x58] sm:$0xff]
        %v1020 = vld [vmem:[#allocation10 + $0x60] sm:$0xff]
        %v1021 = vld [vmem:[#allocation10 + $0x68] sm:$0xff]
        %v1022 = vld [vmem:[#allocation10 + $0x70] sm:$0xff]
        %v1023 = vld [vmem:[#allocation10 + $0x78] sm:$0xff]
        %v1024 = vld [vmem:[#allocation10 + $0x80] sm:$0xff]
        %v1025 = vld [vmem:[#allocation10 + $0x88] sm:$0xff]
        %v1026 = vld [vmem:[#allocation10 + $0x90] sm:$0xff]
        %v1027 = vld [vmem:[#allocation10 + $0x98] sm:$0xff]
        %v1028 = vld [vmem:[#allocation10 + $0xa0] sm:$0xff]
        %v1029 = vld [vmem:[#allocation10 + $0xa8] sm:$0xff]
        %v1030 = vld [vmem:[#allocation10 + $0xb0] sm:$0xff]
        %v1031 = vld [vmem:[#allocation10 + $0xb8] sm:$0xff]
        %v1032 = vld [vmem:[#allocation10 + $0xc0] sm:$0xff]
        %v1033 = vld [vmem:[#allocation10 + $0xc8] sm:$0xff]
        %v1034 = vld [vmem:[#allocation10 + $0xd0] sm:$0xff]
        %v1035 = vld [vmem:[#allocation10 + $0xd8] sm:$0xff]
        %v1036 = vld [vmem:[#allocation10 + $0xe0] sm:$0xff]
        %v1037 = vld [vmem:[#allocation10 + $0xe8] sm:$0xff]
        %v1038 = vld [vmem:[#allocation10 + $0xf0] sm:$0xff]
        %v1039 = vld [vmem:[#allocation10 + $0xf8] sm:$0xff]
        %v1040 = vld [vmem:[#allocation10 + $0x100] sm:$0xff]
        %v1041 = vld [vmem:[#allocation10 + $0x108] sm:$0xff]
        %v1042 = vld [vmem:[#allocation10 + $0x110] sm:$0xff]
        %v1043 = vld [vmem:[#allocation10 + $0x118] sm:$0xff]
        %v1044 = vld [vmem:[#allocation10 + $0x120] sm:$0xff]
        %v1045 = vld [vmem:[#allocation10 + $0x128] sm:$0xff]
        %v1046 = vld [vmem:[#allocation10 + $0x130] sm:$0xff]
        %v1047 = vld [vmem:[#allocation10 + $0x138] sm:$0xff]
        %v1048 = vld [vmem:[#allocation10 + $0x140] sm:$0xff]
        %v1049 = vld [vmem:[#allocation10 + $0x148] sm:$0xff]
        %v1050 = vld [vmem:[#allocation10 + $0x150] sm:$0xff]
        %v1051 = vld [vmem:[#allocation10 + $0x158] sm:$0xff]
        %v1052 = vld [vmem:[#allocation10 + $0x160] sm:$0xff]
        %v1053 = vld [vmem:[#allocation10 + $0x168] sm:$0xff]
        %v1054 = vld [vmem:[#allocation10 + $0x170] sm:$0xff]
        %v1055 = vld [vmem:[#allocation10 + $0x178] sm:$0xff]
        %v1056 = vld [vmem:[#allocation10 + $0x180] sm:$0xff]
        %v1057 = vld [vmem:[#allocation10 + $0x188] sm:$0xff]
        %v1058 = vld [vmem:[#allocation10 + $0x190] sm:$0xff]
        %v1059 = vld [vmem:[#allocation10 + $0x198] sm:$0xff]
        %v1060 = vld [vmem:[#allocation10 + $0x1a0] sm:$0xff]
        %v1061 = vld [vmem:[#allocation10 + $0x1a8] sm:$0xff]
        %v1062 = vld [vmem:[#allocation11] sm:$0x1]
        %v1064 = vlaneseq
        %v1065 = vshrl.u32 %v1064, 7
        %v1066 = vsub.s32 0, %v1065
        %v1067 = vrot.slane %v1062, %v1066
        %v1069 = vsel %vm630, %v975, 0
        %v1071 = vsel %vm630, %v977, 0
        %1073 = vmatprep.subr.mxu0 0.0
        %1074 = vmatpush1.msra.mxu0 %v1008
        %1075 = vmatprep.subr.mxu0 0.0
        %1076 = vmatpush1.msra.mxu0 %v1009
        %1077 = vmatprep.subr.mxu0 0.0
        %1078 = vmatpush1.msra.mxu0 %v1010
        %1079 = vmatprep.subr.mxu0 0.0
        %1080 = vmatpush1.msra.mxu0 %v1011
        %1081 = vmatprep.subr.mxu0 0.0
        %1082 = vmatpush1.msra.mxu0 %v1012
        %1083 = vmatprep.subr.mxu0 0.0
        %1084 = vmatpush1.msra.mxu0 %v1013
        %1085 = vmatprep.subr.mxu0 0.0
        %1086 = vmatpush1.msra.mxu0 %v1014
        %1087 = vmatprep.subr.mxu0 0.0
        %1088 = vmatpush1.msra.mxu0 %v1015
        %1089 = vmatprep.subr.mxu0 0.0
        %1090 = vmatpush1.msra.mxu0 %v1016
        %1091 = vmatprep.subr.mxu0 0.0
        %1092 = vmatpush1.msra.mxu0 %v1017
        %1093 = vmatprep.subr.mxu0 0.0
        %1094 = vmatpush1.msra.mxu0 %v1018
        %1095 = vmatprep.subr.mxu0 0.0
        %1096 = vmatpush1.msra.mxu0 %v1019
        %1097 = vmatprep.subr.mxu0 0.0
        %1098 = vmatpush1.msra.mxu0 %v1020
        %1099 = vmatprep.subr.mxu0 0.0
        %1100 = vmatpush1.msra.mxu0 %v1021
        %1101 = vmatprep.subr.mxu0 0.0
        %1102 = vmatpush1.msra.mxu0 %v1022
        %1103 = vmatprep.subr.mxu0 0.0
        %1104 = vmatpush1.msra.mxu0 %v1023
        %1105 = vmatprep.subr.mxu0 0.0
        %1106 = vmatpush1.msra.mxu0 %v1024
        %1107 = vmatprep.subr.mxu0 0.0
        %1108 = vmatpush1.msra.mxu0 %v1025
        %1109 = vmatprep.subr.mxu0 0.0
        %1110 = vmatpush1.msra.mxu0 %v1026
        %1111 = vmatprep.subr.mxu0 0.0
        %1112 = vmatpush1.msra.mxu0 %v1027
        %1113 = vmatprep.subr.mxu0 0.0
        %1114 = vmatpush1.msra.mxu0 %v1028
        %1115 = vmatprep.subr.mxu0 0.0
        %1116 = vmatpush1.msra.mxu0 %v1029
        %1117 = vmatprep.subr.mxu0 0.0
        %1118 = vmatpush1.msra.mxu0 %v1030
        %1119 = vmatprep.subr.mxu0 0.0
        %1120 = vmatpush1.msra.mxu0 %v1031
        %1121 = vmatprep.subr.mxu0 0.0
        %1122 = vmatpush1.msra.mxu0 %v1032
        %1123 = vmatprep.subr.mxu0 0.0
        %1124 = vmatpush1.msra.mxu0 %v1033
        %1125 = vmatprep.subr.mxu0 0.0
        %1126 = vmatpush1.msra.mxu0 %v1034
        %1127 = vmatprep.subr.mxu0 0.0
        %1128 = vmatpush1.msra.mxu0 %v1035
        %1129 = vmatprep.subr.mxu0 0.0
        %1130 = vmatpush1.msra.mxu0 %v1036
        %1131 = vmatprep.subr.mxu0 0.0
        %1132 = vmatpush1.msra.mxu0 %v1037
        %1133 = vmatprep.subr.mxu0 0.0
        %1134 = vmatpush1.msra.mxu0 %v1038
        %1135 = vmatprep.subr.mxu0 0.0
        %1136 = vmatpush1.msra.mxu0 %v1039
        %1137 = vmatprep.mubr.f32.mxu0 %v996
        %1138 = vmatmul.mubr.f32.gmra.mrb[0].mxu0 %v986
        %v1139 = vpop.f32.mrb[0].mxu0
        %v1140 = vadd.f32 %v1067, %v1139
        %v1141 = vpop.f32.mrb[0].mxu0
        %1142 = vmatprep.mubr.f32.mxu0 %v997
        %1143 = vmatmul.mubr.f32.gmra.mrb[0].mxu0 %v987
        %v1144 = vpop.f32.mrb[0].mxu0
        %v1145 = vadd.f32 %v1067, %v1144
        %v1146 = vpop.f32.mrb[0].mxu0
        %1147 = vdwg.mxu0
        %1148 = vmatprep.subr.mxu0 0.0
        %1149 = vmatpush1.msra.mxu0 %v1040
        %1150 = vmatprep.subr.mxu0 0.0
        %1151 = vmatpush1.msra.mxu0 %v1041
        %1152 = vmatprep.subr.mxu0 0.0
        %1153 = vmatpush1.msra.mxu0 %v1042
        %1154 = vmatprep.subr.mxu0 0.0
        %1155 = vmatpush1.msra.mxu0 %v1043
        %1156 = vmatprep.subr.mxu0 0.0
        %1157 = vmatpush1.msra.mxu0 %v1044
        %1158 = vmatprep.subr.mxu0 0.0
        %1159 = vmatpush1.msra.mxu0 %v1045
        %1160 = vmatprep.subr.mxu0 0.0
        %1161 = vmatpush1.msra.mxu0 %v1046
        %1162 = vmatprep.subr.mxu0 0.0
        %1163 = vmatpush1.msra.mxu0 %v1047
        %1164 = vmatprep.subr.mxu0 0.0
        %1165 = vmatpush1.msra.mxu0 %v1048
        %1166 = vmatprep.subr.mxu0 0.0
        %1167 = vmatpush1.msra.mxu0 %v1049
        %1168 = vmatprep.subr.mxu0 0.0
        %1169 = vmatpush1.msra.mxu0 %v1050
        %1170 = vmatprep.subr.mxu0 0.0
        %1171 = vmatpush1.msra.mxu0 %v1051
        %1172 = vmatprep.subr.mxu0 0.0
        %1173 = vmatpush1.msra.mxu0 %v1052
        %1174 = vmatprep.subr.mxu0 0.0
        %1175 = vmatpush1.msra.mxu0 %v1053
        %1176 = vmatprep.subr.mxu0 0.0
        %1177 = vmatpush1.msra.mxu0 %v1054
        %1178 = vmatprep.subr.mxu0 0.0
        %1179 = vmatpush1.msra.mxu0 %v1055
        %1180 = vmatprep.subr.mxu0 0.0
        %1181 = vmatpush1.msra.mxu0 %v1056
        %1182 = vmatprep.subr.mxu0 0.0
        %1183 = vmatpush1.msra.mxu0 %v1057
        %1184 = vmatprep.subr.mxu0 0.0
        %1185 = vmatpush1.msra.mxu0 %v1058
        %1186 = vmatprep.subr.mxu0 0.0
        %1187 = vmatpush1.msra.mxu0 %v1059
        %1188 = vmatprep.subr.mxu0 0.0
        %1189 = vmatpush1.msra.mxu0 %v1060
        %1190 = vmatprep.subr.mxu0 0.0
        %1191 = vmatpush1.msra.mxu0 %v1061
        %1192 = vmatprep.subr.mxu0 0.0
        %1193 = vmatpush1.msra.mxu0 0.0
        %1194 = vmatprep.subr.mxu0 0.0
        %1195 = vmatpush1.msra.mxu0 0.0
        %1196 = vmatprep.subr.mxu0 0.0
        %1197 = vmatpush1.msra.mxu0 0.0
        %1198 = vmatprep.subr.mxu0 0.0
        %1199 = vmatpush1.msra.mxu0 0.0
        %1200 = vmatprep.subr.mxu0 0.0
        %1201 = vmatpush1.msra.mxu0 0.0
        %1202 = vmatprep.subr.mxu0 0.0
        %1203 = vmatpush1.msra.mxu0 0.0
        %1204 = vmatprep.subr.mxu0 0.0
        %1205 = vmatpush1.msra.mxu0 0.0
        %1206 = vmatprep.subr.mxu0 0.0
        %1207 = vmatpush1.msra.mxu0 0.0
        %1208 = vmatprep.subr.mxu0 0.0
        %1209 = vmatpush1.msra.mxu0 0.0
        %1210 = vmatprep.subr.mxu0 0.0
        %1211 = vmatpush1.msra.mxu0 0.0
        %1212 = vmatprep.mubr.f32.mxu0 %v1069
        %1213 = vmatmul.mubr.f32.gmra.mrb[0].mxu0 %v1006
        %v1214 = vpop.f32.mrb[0].mxu0
        %v1215 = vadd.f32 %v1140, %v1214
        %v1216 = vpop.f32.mrb[0].mxu0
        %1217 = vmatprep.mubr.f32.mxu0 %v1071
        %1218 = vmatmul.mubr.f32.gmra.mrb[0].mxu0 %v1007
        %v1219 = vpop.f32.mrb[0].mxu0
        %v1220 = vadd.f32 %v1145, %v1219
        %v1221 = vpop.f32.mrb[0].mxu0
        %1222 = vdwg.mxu0
        %v1223 = vtanh.pop %v1215
        %v1224 = vtanh.pop %v1220
        %1225 = vrot.lane.b32.xlu0 %v339, 56
        %v1226 = vpop.permute.xlu0 %1225
        %1227 = vrot.lane.b32.xlu0 %v340, 56
        %v1228 = vpop.permute.xlu0 %1227
        %v1231 = vmul.f32 %v794, %v1226
        %v1232 = vmul.f32 %v796, %v1228
        %v1233 = vsub.f32 1.0, %v794
        %v1234 = vsub.f32 1.0, %v796
        %1237 = vrot.lane.b32.xlu0 %v1223, 64
        %v1238 = vpop.permute.xlu0 %1237
        %1239 = vrot.lane.b32.xlu0 %v1224, 64
        %v1240 = vpop.permute.xlu0 %1239
        %v1243 = vmul.f32 %v1233, %v1238
        %v1244 = vmul.f32 %v1234, %v1240
        %v1245 = vadd.f32 %v1231, %v1243
        %v1246 = vadd.f32 %v1232, %v1244
        %1249 = vrot.lane.b32.xlu0 %v1245, 64
        %v1250 = vpop.permute.xlu0 %1249
        %1251 = vrot.lane.b32.xlu0 %v1246, 64
        %v1252 = vpop.permute.xlu0 %1251
        %vm1255 = vcmask 523264
        %1256 = vst.msk [vmem:[%s338] sm:$0xff] %vm1255, %v1250
        %1257 = vst.msk [vmem:[%s338 + $0x8] sm:$0xff] %vm1255, %v1252
        %s1258 = sand.u32 %s165, 1
        %s1259 = scalar_lea.sflag [#allocation4], %s1258
        %s1260 = sand.u32 %s165, 1
        %s1261 = smul.addr %s1260, 16
        %s1262 = scalar_lea.vmem [#allocation13], %s1261
        // Predicated region
        $region69: #{_agcrn_forward.1} parent=43 // pred_check
          %p1263 = pneg %p175
        $region70: #{_agcrn_forward.1} parent=43 // pred_check_branch
          %1265 = sbr.rel (%p1263) target = $region72
        $region71: #{_agcrn_forward.1} parent=43 // pred_region
          %s1267 = ssub.s32 256, 256
          %1268 = vsyncadd %s1259, %s1267
          %s1269 = smul.addr %s26, 2
          %s1270 = smul.addr %s1269, 128
          %s1271 = scalar_lea.hbm %s6, %s1270
          %s1272 = sshll.u32 %s1262, 4
          %s1273 = int_to_ptr.vmem [resolvable:$true] %s1272
          %1278 = dma.vmem_to_hbm [thread:$0]  %s1273, 256, %s1271, %s1259, 128, 128, 8
        $region72: #{_agcrn_forward.1} parent=43 // pred_fallthru
          _
      $region44: #{_agcrn_forward.1} parent=5 // pred_fallthru
        _
      %p1279 = scmp.le.s32.totalorder 2, %s21
      // Predicated region
      $region73: #{_agcrn_forward.1} parent=5 // pred_check
        %p1280 = pneg %p1279
      $region74: #{_agcrn_forward.1} parent=5 // pred_check_branch
        %1282 = sbr.rel (%p1280) target = $region76
      $region75: #{_agcrn_forward.1} parent=5 // pred_region
        %s1283 = ssub.s32 %s21, 2
        // Predicated region
        $region77: #{_agcrn_forward.1} parent=75 // pred_check
          %p1284 = pneg %p181
        $region78: #{_agcrn_forward.1} parent=75 // pred_check_branch
          %1286 = sbr.rel (%p1284) target = $region80
        $region79: #{_agcrn_forward.1} parent=75 // pred_region
          %s1287 = sand.u32 %s166, 1
          %s1288 = scalar_lea.sflag [#allocation4], %s1287
          %s1289 = sand.u32 %s166, 1
          %s1290 = smul.addr %s1289, 16
          %s1291 = scalar_lea.vmem [#allocation13], %s1290
          %1292 = dma.done %s1288, 256
        $region80: #{_agcrn_forward.1} parent=75 // pred_fallthru
          _
      $region76: #{_agcrn_forward.1} parent=5 // pred_fallthru
        _
    $region6: #{_agcrn_forward.1} parent=1 // loop_footer
      %s25 = sadd.s32 1, %s21
    $region7: #{_agcrn_forward.1} parent=1 // loop_footer_branch
      %20 = sbr.rel target = $region3
    $region8: #{_agcrn_forward.1} parent=1 // loop_exit
      _
    %1293 = vsyncpa [#allocation3], 1
    %s1294 = scalar_lea.sflag [#allocation3], 1
    %1295 = vsyncpa %s1294, 1
    %1296 = vsyncpa [#allocation6], 1
    %1297 = vsyncpa [#allocation9], 1
    %1298 = vsyncpa [#allocation12], 1
    %1299 = vsyncpa [#allocation4], 1
    %s1300 = scalar_lea.sflag [#allocation4], 1
    %1301 = vsyncpa %s1300, 1

</llo_original>
